<compile_context>
chip_gen: v7x
topology: tpu7x:2x2x1
jax: 0.10.0
libtpu: 0.0.40
codegen_flags: <defaults>
</compile_context>

<pallas_src>
import jax
import jax.numpy as jnp
import numpy as np
from jax import lax
from jax.experimental import pallas as pl
from jax.experimental.pallas import tpu as pltpu

LEAK = 0.1
N_BATCH = 2            # kernel batch interleaving is specialized to batch=2
W_IN = 30              # conv input width -> 160 * 1 * 9 = 1440 flatten features

# ------------------------- packed-slab layout tables -------------------------

_REST_COLS = 160       # lane width of the bf16 "all other weights" slab


def _aligned_layout(specs, align=16):
    """Assign 16-sublane-aligned row offsets inside the bf16 weight slab."""
    layout = {}
    r = 0
    for name, shape in specs:
        layout[name] = (r, shape)
        r = ((r + shape[0] + align - 1) // align) * align
    return layout, r


# (rows, cols) are the regions the kernel slices.  Zero padding (fc2 cols
# 80->128, a1b rows 80->128) is part of the region, so padded lanes/rows read 0.
_REST_LAYOUT, _REST_ROWS = _aligned_layout([
    ('c2',  (120, 100)),   # conv2 taps row-stacked: [tap0^T; tap1^T]
    ('c3',  (200, 120)),
    ('c4',  (240, 160)),
    ('fc2', (600, 128)),   # (600, 80) zero-padded to 128 lanes
    ('l1',  (27, 27)),
    ('l2',  (27, 20)),
    ('l3',  (20, 12)),
    ('a1a', (12, 60)),     # aggr layer 1, logits1 half of the concat
    ('a1b', (128, 60)),    # aggr layer 1, logits2 half (80 rows, padded to 128)
    ('a2',  (60, 30)),
    ('a3',  (30, 20)),
    ('a4',  (20, 7)),
    ('s1a', (7, 6)),       # act_select layer 1, aggr half of the concat
    ('s1b', (2, 6)),       # act_select layer 1, x[2] half
    ('s2',  (6, 3)),
])

# f32 small slab: conv1 1x1 weight row + every bias, one row each.
_SMALL_ROWS = {'c1w': 0, 'c1': 1, 'c2': 2, 'c3': 3, 'c4': 4, 'fc2': 5,
               'l1': 6, 'l2': 7, 'l3': 8, 'a1': 9, 'a2': 10, 'a3': 11,
               'a4': 12, 's1': 13, 's2': 14}
_SMALL_SHAPE = (16, _REST_COLS)

# f32 activation slab: x0 interleaved in col 0 (row = 2*w + n), x1 / x2 rows.
_ACT_SHAPE = (2 * W_IN, 30)


def _leaky(x):
    return jnp.where(x >= 0, x, LEAK * x)


def _isel(rows, cols, stride, offset):
    """Batch-interleaved 0/1 row-selection matrix (batch folded into sublanes).

    Row r encodes (width w = r >> 1, sample n = r & 1) and selects input row
    2*(stride*w + offset) + n; out-of-range targets select nothing, which
    implements the conv/pool zero padding for free.
    """
    r = lax.broadcasted_iota(jnp.int32, (rows, cols), 0)
    q = lax.broadcasted_iota(jnp.int32, (rows, cols), 1)
    tgt = 2 * (stride * (r >> 1) + offset) + (r & 1)
    return (q == tgt).astype(jnp.float32)


# --------------------------------- kernel ------------------------------------

def dqn_t2_kernel(acts_ref, wfc1_ref, wrest_ref, small_ref, out_ref):
    f32 = jnp.float32
    bf16 = jnp.bfloat16

    def dot(a, b):
        # bf16 x bf16 MXU matmul with f32 accumulation (native fast path on
        # v5e/v6e/v7x); elementwise work stays in f32.
        return jnp.dot(a.astype(bf16), b.astype(bf16), preferred_element_type=f32)

    def W(name):                                  # bf16 slab slice
        r, (h, w) = _REST_LAYOUT[name]
        return wrest_ref[r:r + h, 0:w]

    def B(name, width):                           # f32 (1, width) bias row
        r = _SMALL_ROWS[name]
        return small_ref[r:r + 1, 0:width]

    # ---------------- conv branch (x[0]), both samples interleaved -----------
    x0 = acts_ref[0:2 * W_IN, 0:1]                # (60, 1), row = 2*w + n
    # conv1: 1x1, Cin=1 -> pure VPU broadcast multiply (f32)
    y1 = x0 * B('c1w', 60) + B('c1', 60)          # (60, 60)

    # conv2: k=(1,2), stride 2, pad (0,1).  Stride-2 width gather via 0/1
    # selection matmuls, then both taps fused into one K=120 matmul.
    s2_0 = _isel(32, 60, 2, -1)                   # tap0 -> width 2w-1
    s2_1 = _isel(32, 60, 2, 0)                    # tap1 -> width 2w
    im2 = jnp.concatenate([dot(s2_0, y1), dot(s2_1, y1)], axis=1)    # (32, 120)
    y2 = dot(im2, W('c2')) + B('c2', 100)         # (32, 100)
    # (MaxPool2d((1,1), stride=1) is the identity -> skipped)

    # conv3: k=(1,2), stride 1, pad (0,1).  Shifts are zero-pad + sublane
    # concat (no matmul); taps fused into one K=200 matmul.
    z2 = jnp.zeros((2, 100), f32)
    im3 = jnp.concatenate([jnp.concatenate([z2, y2], axis=0),        # width w-1
                           jnp.concatenate([y2, z2], axis=0)],       # width w
                          axis=1)                                    # (34, 200)
    y3 = dot(im3, W('c3')) + B('c3', 120)         # (34, 120)

    # conv4: k=(1,2), stride 1, pad (0,1).
    z3 = jnp.zeros((2, 120), f32)
    im4 = jnp.concatenate([jnp.concatenate([z3, y3], axis=0),
                           jnp.concatenate([y3, z3], axis=0)],
                          axis=1)                                    # (36, 240)
    y4 = dot(im4, W('c4')) + B('c4', 160)         # (36, 160)

    # MaxPool2d((1,2), stride=2): stride-2 gathers + f32 elementwise max.
    sp_0 = _isel(18, 36, 2, 0)
    sp_1 = _isel(18, 36, 2, 1)
    m = jnp.maximum(dot(sp_0, y4), dot(sp_1, y4))                    # (18, 160)

    # Linear(1440, 600) as a single dot: lane-concat the 9 pooled width
    # positions (PyTorch channel-major flatten is matched by the wfc1 row
    # order) plus 8 ones columns that pick up the bias row folded into wfc1.
    lhs = jnp.concatenate([m[2 * w:2 * w + 2, :] for w in range(9)]
                          + [jnp.ones((2, 8), f32)], axis=1)         # (2, 1448)
    h = _leaky(dot(lhs, wfc1_ref[...]))                              # (2, 600)
    # Linear(600, 80); output zero-padded to 128 lanes (lane-dense).
    logits2 = _leaky(dot(h, W('fc2')) + B('fc2', 128))               # (2, 128)

    # ---------------- linear branch (x[1]) ----------------
    v = acts_ref[0:2, 1:28]                                          # (2, 27)
    v = _leaky(dot(v, W('l1')) + B('l1', 27))
    v = _leaky(dot(v, W('l2')) + B('l2', 20))
    logits1 = _leaky(dot(v, W('l3')) + B('l3', 12))                  # (2, 12)

    # ---- aggr on cat(logits1, logits2): concat folded into split weights ----
    a = _leaky(dot(logits1, W('a1a')) + dot(logits2, W('a1b')) + B('a1', 60))
    a = _leaky(dot(a, W('a2')) + B('a2', 30))
    a = _leaky(dot(a, W('a3')) + B('a3', 20))
    a = _leaky(dot(a, W('a4')) + B('a4', 7))                         # (2, 7)

    # ---- act_select on cat(a, x[2]) ----
    xc = acts_ref[0:2, 28:30]                                        # (2, 2)
    s = _leaky(dot(a, W('s1a')) + dot(xc, W('s1b')) + B('s1', 6))
    out_ref[...] = (dot(s, W('s2')) + B('s2', 3)).astype(out_ref.dtype)


# --------------------------- host-side packing --------------------------------

def init_params(key):
    """Deterministic kaiming-uniform weights (bound = sqrt(6/fan_in)), zero biases."""
    f32 = jnp.float32

    def kaiming(k, shape, fan_in):
        bound = float(np.sqrt(6.0 / fan_in))
        return jax.random.uniform(k, shape, f32, -bound, bound)

    ks = jax.random.split(key, 15)
    p = {}
    p['c1_w'] = kaiming(ks[0], (60, 1, 1, 1), 1 * 1)
    p['c1_b'] = jnp.zeros((60,), f32)
    p['c2_w'] = kaiming(ks[1], (100, 60, 1, 2), 60 * 2)
    p['c2_b'] = jnp.zeros((100,), f32)
    p['c3_w'] = kaiming(ks[2], (120, 100, 1, 2), 100 * 2)
    p['c3_b'] = jnp.zeros((120,), f32)
    p['c4_w'] = kaiming(ks[3], (160, 120, 1, 2), 120 * 2)
    p['c4_b'] = jnp.zeros((160,), f32)
    p['fc1_w'] = kaiming(ks[4], (600, 1440), 1440)
    p['fc1_b'] = jnp.zeros((600,), f32)
    p['fc2_w'] = kaiming(ks[5], (80, 600), 600)
    p['fc2_b'] = jnp.zeros((80,), f32)
    p['l1_w'] = kaiming(ks[6], (27, 27), 27)
    p['l1_b'] = jnp.zeros((27,), f32)
    p['l2_w'] = kaiming(ks[7], (20, 27), 27)
    p['l2_b'] = jnp.zeros((20,), f32)
    p['l3_w'] = kaiming(ks[8], (12, 20), 20)
    p['l3_b'] = jnp.zeros((12,), f32)
    p['a1_w'] = kaiming(ks[9], (60, 92), 92)
    p['a1_b'] = jnp.zeros((60,), f32)
    p['a2_w'] = kaiming(ks[10], (30, 60), 60)
    p['a2_b'] = jnp.zeros((30,), f32)
    p['a3_w'] = kaiming(ks[11], (20, 30), 30)
    p['a3_b'] = jnp.zeros((20,), f32)
    p['a4_w'] = kaiming(ks[12], (7, 20), 20)
    p['a4_b'] = jnp.zeros((7,), f32)
    p['s1_w'] = kaiming(ks[13], (6, 9), 9)
    p['s1_b'] = jnp.zeros((6,), f32)
    p['s2_w'] = kaiming(ks[14], (3, 6), 6)
    p['s2_b'] = jnp.zeros((3,), f32)
    return p


def pack_weights(p):
    """One-time packing of all parameters into 3 weight slabs (glue, runs once)."""
    f32, bf16 = jnp.float32, jnp.bfloat16

    def tap_T(w, t):                         # conv tap t -> (Cin, Cout)
        return w[:, :, 0, t].T

    # fc1: row index j = w*160 + c matches the in-kernel im2col lane order
    # (PyTorch flatten index = c*9 + w); bias folded in as row 1440, rows
    # 1441..1447 zero (the LHS appends 8 ones columns).
    wfc1 = jnp.transpose(p['fc1_w'].reshape(600, 160, 9), (2, 1, 0)).reshape(1440, 600)
    wfc1 = jnp.concatenate([wfc1, p['fc1_b'][None, :], jnp.zeros((7, 600), f32)], axis=0)

    rest_items = {
        'c2':  jnp.concatenate([tap_T(p['c2_w'], 0), tap_T(p['c2_w'], 1)], axis=0),
        'c3':  jnp.concatenate([tap_T(p['c3_w'], 0), tap_T(p['c3_w'], 1)], axis=0),
        'c4':  jnp.concatenate([tap_T(p['c4_w'], 0), tap_T(p['c4_w'], 1)], axis=0),
        'fc2': p['fc2_w'].T,                 # (600, 80); zero-padded to 128 lanes
        'l1':  p['l1_w'].T,
        'l2':  p['l2_w'].T,
        'l3':  p['l3_w'].T,
        'a1a': p['a1_w'][:, :12].T,          # logits1 part of the concat
        'a1b': p['a1_w'][:, 12:].T,          # logits2 part; zero-padded to 128 rows
        'a2':  p['a2_w'].T,
        'a3':  p['a3_w'].T,
        'a4':  p['a4_w'].T,
        's1a': p['s1_w'][:, :7].T,
        's1b': p['s1_w'][:, 7:].T,
        's2':  p['s2_w'].T,
    }
    wrest = jnp.zeros((_REST_ROWS, _REST_COLS), f32)
    for name, (r, _shape) in _REST_LAYOUT.items():
        a = rest_items[name].astype(f32)
        wrest = wrest.at[r:r + a.shape[0], :a.shape[1]].set(a)

    small = jnp.zeros(_SMALL_SHAPE, f32)
    bias_items = {
        'c1w': p['c1_w'][:, 0, 0, 0], 'c1': p['c1_b'], 'c2': p['c2_b'],
        'c3': p['c3_b'], 'c4': p['c4_b'], 'fc2': p['fc2_b'],
        'l1': p['l1_b'], 'l2': p['l2_b'], 'l3': p['l3_b'],
        'a1': p['a1_b'], 'a2': p['a2_b'], 'a3': p['a3_b'], 'a4': p['a4_b'],
        's1': p['s1_b'], 's2': p['s2_b'],
    }
    for name, vec in bias_items.items():
        r = _SMALL_ROWS[name]
        small = small.at[r, :vec.shape[0]].set(vec.astype(f32))

    return {'wfc1': wfc1.astype(bf16), 'wrest': wrest.astype(bf16), 'small': small}


def pack_activations(x0_nchw, x1, x2):
    """Per-call activation slab: x0 batch-interleaved into col 0, x1/x2 rows."""
    f32 = jnp.float32
    # Interleave batch into sublanes: row = 2*w + n.
    x0_i = jnp.transpose(x0_nchw[:, 0, 0, :]).reshape(2 * W_IN, 1).astype(f32)
    acts = jnp.zeros(_ACT_SHAPE, f32)
    acts = acts.at[:, 0:1].set(x0_i)
    acts = acts.at[0:2, 1:28].set(x1.astype(f32))
    acts = acts.at[0:2, 28:30].set(x2.astype(f32))
    return acts


def dqn_t2_forward(x0_nchw, x1, x2, packed):
    """Single gridless pallas_call over 4 packed input slabs."""
    n = x0_nchw.shape[0]
    assert n == N_BATCH, "kernel batch interleaving is specialized to batch=2"
    acts = pack_activations(x0_nchw, x1, x2)

    vmem = lambda: pl.BlockSpec(memory_space=pltpu.MemorySpace.VMEM)
    return pl.pallas_call(
        dqn_t2_kernel,
        out_shape=jax.ShapeDtypeStruct((n, 3), jnp.float32),
        in_specs=[vmem(), vmem(), vmem(), vmem()],
        out_specs=vmem(),
        compiler_params=pltpu.CompilerParams(
            vmem_limit_bytes=8 * 1024 * 1024),   # ~3.5 MiB live, single-buffered
    )(acts, packed['wfc1'], packed['wrest'], packed['small'])


# ------------------------------ reference ------------------------------------

def reference_forward(x0_nchw, x1, x2, p):
    """Pure-JAX mirror of the PyTorch forward (NCHW convs) for validation."""
    hp = lax.Precision.HIGHEST
    lk = lambda t: jnp.where(t >= 0, t, LEAK * t)

    def conv(x, w, b, stride, pad_w):
        y = lax.conv_general_dilated(
            x, w, window_strides=stride,
            padding=[(0, 0), (pad_w, pad_w)],
            dimension_numbers=('NCHW', 'OIHW', 'NCHW'),
            precision=hp)
        return y + b[None, :, None, None]

    y = conv(x0_nchw, p['c1_w'], p['c1_b'], (1, 1), 0)
    y = conv(y, p['c2_w'], p['c2_b'], (2, 2), 1)
    # MaxPool2d((1,1), stride=1) is identity
    y = conv(y, p['c3_w'], p['c3_b'], (1, 1), 1)
    y = conv(y, p['c4_w'], p['c4_b'], (1, 1), 1)
    y = lax.reduce_window(y, -jnp.inf, lax.max,
                          (1, 1, 1, 2), (1, 1, 2, 2), 'VALID')
    y = y.reshape(y.shape[0], -1)
    y = lk(jnp.dot(y, p['fc1_w'].T, precision=hp) + p['fc1_b'])
    logits2 = lk(jnp.dot(y, p['fc2_w'].T, precision=hp) + p['fc2_b'])

    v = x1.reshape(x1.shape[0], -1)
    v = lk(jnp.dot(v, p['l1_w'].T, precision=hp) + p['l1_b'])
    v = lk(jnp.dot(v, p['l2_w'].T, precision=hp) + p['l2_b'])
    logits1 = lk(jnp.dot(v, p['l3_w'].T, precision=hp) + p['l3_b'])

    cat = jnp.concatenate([logits1, logits2], axis=1)
    a = lk(jnp.dot(cat, p['a1_w'].T, precision=hp) + p['a1_b'])
    a = lk(jnp.dot(a, p['a2_w'].T, precision=hp) + p['a2_b'])
    a = lk(jnp.dot(a, p['a3_w'].T, precision=hp) + p['a3_b'])
    a = lk(jnp.dot(a, p['a4_w'].T, precision=hp) + p['a4_b'])

    cat1 = jnp.concatenate([a, x2], axis=1)
    s = lk(jnp.dot(cat1, p['s1_w'].T, precision=hp) + p['s1_b'])
    return jnp.dot(s, p['s2_w'].T, precision=hp) + p['s2_b']


if __name__ == "__main__":
    key = jax.random.PRNGKey(0)
    kp, k0, k1, k2 = jax.random.split(key, 4)
    params = init_params(kp)
    packed = pack_weights(params)          # one-time weight packing

    # x = (x[0]: conv image, x[1]: 27-dim features, x[2]: 2 extra features)
    x0 = jax.random.normal(k0, (N_BATCH, 1, 1, W_IN), jnp.float32)
    x1 = jax.random.normal(k1, (N_BATCH, 27), jnp.float32)
    x2 = jax.random.normal(k2, (N_BATCH, 2), jnp.float32)

    out = jax.block_until_ready(dqn_t2_forward(x0, x1, x2, packed))
    assert out.shape == (N_BATCH, 3)

    ref = jax.block_until_ready(reference_forward(x0, x1, x2, params))
    # Tolerance covers bf16 weight storage + bf16 MXU activation casts vs the
    # f32 reference (expected error well below 2e-2 at these magnitudes).
    if not np.allclose(np.asarray(out), np.asarray(ref), rtol=5e-2, atol=5e-2):
        raise SystemExit(f"mismatch:\nkernel={np.asarray(out)}\nref={np.asarray(ref)}")

    print("KERNEL_OK")
</pallas_src>

<mosaic_0001>
module attributes {stable_mosaic.version = 11 : i64} {
  func.func @dqn_t2_kernel(%arg0: memref<60x30xf32, #tpu.memory_space<vmem>>, %arg1: memref<1448x600xbf16, #tpu.memory_space<vmem>>, %arg2: memref<1600x160xbf16, #tpu.memory_space<vmem>>, %arg3: memref<16x160xf32, #tpu.memory_space<vmem>>, %arg4: memref<2x3xf32, #tpu.memory_space<vmem>>) attributes {dimension_semantics = [], scalar_prefetch = 0 : i64, scratch_operands = 0 : i64, tpu.core_type = #tpu.core_type<tc>} {
    %c0 = arith.constant 0 : index
    %c0_0 = arith.constant 0 : index
    %0 = vector.load %arg0[%c0, %c0_0] : memref<60x30xf32, #tpu.memory_space<vmem>>, vector<60x1xf32>
    %c0_1 = arith.constant 0 : index
    %c0_2 = arith.constant 0 : index
    %1 = vector.load %arg3[%c0_1, %c0_2] : memref<16x160xf32, #tpu.memory_space<vmem>>, vector<1x60xf32>
    %2 = vector.broadcast %0 : vector<60x1xf32> to vector<60x60xf32>
    %3 = vector.broadcast %1 : vector<1x60xf32> to vector<60x60xf32>
    %4 = arith.mulf %2, %3 : vector<60x60xf32>
    %c1 = arith.constant 1 : index
    %c0_3 = arith.constant 0 : index
    %5 = vector.load %arg3[%c1, %c0_3] : memref<16x160xf32, #tpu.memory_space<vmem>>, vector<1x60xf32>
    %6 = vector.broadcast %5 : vector<1x60xf32> to vector<60x60xf32>
    %7 = arith.addf %4, %6 : vector<60x60xf32>
    %8 = tpu.iota {dimensions = array<i32: 0>} : vector<32x60xi32>
    %9 = tpu.iota {dimensions = array<i32: 1>} : vector<32x60xi32>
    %c1_i32 = arith.constant 1 : i32
    %10 = vector.broadcast %c1_i32 : i32 to vector<32x60xi32>
    %11 = arith.shrsi %8, %10 : vector<32x60xi32>
    %c2_i32 = arith.constant 2 : i32
    %12 = vector.broadcast %c2_i32 : i32 to vector<32x60xi32>
    %13 = arith.muli %12, %11 : vector<32x60xi32>
    %c-1_i32 = arith.constant -1 : i32
    %14 = vector.broadcast %c-1_i32 : i32 to vector<32x60xi32>
    %15 = arith.addi %13, %14 : vector<32x60xi32>
    %c2_i32_4 = arith.constant 2 : i32
    %16 = vector.broadcast %c2_i32_4 : i32 to vector<32x60xi32>
    %17 = arith.muli %16, %15 : vector<32x60xi32>
    %c1_i32_5 = arith.constant 1 : i32
    %18 = vector.broadcast %c1_i32_5 : i32 to vector<32x60xi32>
    %19 = arith.andi %8, %18 : vector<32x60xi32>
    %20 = arith.addi %17, %19 : vector<32x60xi32>
    %21 = arith.cmpi eq, %9, %20 : vector<32x60xi32>
    %22 = arith.extui %21 : vector<32x60xi1> to vector<32x60xi32>
    %23 = arith.sitofp %22 : vector<32x60xi32> to vector<32x60xf32>
    %24 = tpu.iota {dimensions = array<i32: 0>} : vector<32x60xi32>
    %25 = tpu.iota {dimensions = array<i32: 1>} : vector<32x60xi32>
    %c1_i32_6 = arith.constant 1 : i32
    %26 = vector.broadcast %c1_i32_6 : i32 to vector<32x60xi32>
    %27 = arith.shrsi %24, %26 : vector<32x60xi32>
    %c2_i32_7 = arith.constant 2 : i32
    %28 = vector.broadcast %c2_i32_7 : i32 to vector<32x60xi32>
    %29 = arith.muli %28, %27 : vector<32x60xi32>
    %c0_i32 = arith.constant 0 : i32
    %30 = vector.broadcast %c0_i32 : i32 to vector<32x60xi32>
    %31 = arith.addi %29, %30 : vector<32x60xi32>
    %c2_i32_8 = arith.constant 2 : i32
    %32 = vector.broadcast %c2_i32_8 : i32 to vector<32x60xi32>
    %33 = arith.muli %32, %31 : vector<32x60xi32>
    %c1_i32_9 = arith.constant 1 : i32
    %34 = vector.broadcast %c1_i32_9 : i32 to vector<32x60xi32>
    %35 = arith.andi %24, %34 : vector<32x60xi32>
    %36 = arith.addi %33, %35 : vector<32x60xi32>
    %37 = arith.cmpi eq, %25, %36 : vector<32x60xi32>
    %38 = arith.extui %37 : vector<32x60xi1> to vector<32x60xi32>
    %39 = arith.sitofp %38 : vector<32x60xi32> to vector<32x60xf32>
    %40 = arith.truncf %23 : vector<32x60xf32> to vector<32x60xbf16>
    %41 = arith.truncf %7 : vector<60x60xf32> to vector<60x60xbf16>
    %cst = arith.constant dense<0.000000e+00> : vector<32x60xf32>
    %42 = tpu.matmul %40, %41, %cst {dimension_numbers = #tpu.dot_dimension_numbers<[1], [0], [0], [1], [0, 0, 1, 1], [], []>} : vector<32x60xbf16>, vector<60x60xbf16>, vector<32x60xf32> -> vector<32x60xf32>
    %43 = arith.truncf %39 : vector<32x60xf32> to vector<32x60xbf16>
    %44 = arith.truncf %7 : vector<60x60xf32> to vector<60x60xbf16>
    %cst_10 = arith.constant dense<0.000000e+00> : vector<32x60xf32>
    %45 = tpu.matmul %43, %44, %cst_10 {dimension_numbers = #tpu.dot_dimension_numbers<[1], [0], [0], [1], [0, 0, 1, 1], [], []>} : vector<32x60xbf16>, vector<60x60xbf16>, vector<32x60xf32> -> vector<32x60xf32>
    %46 = tpu.concatenate %42, %45 in 1 : vector<32x60xf32>, vector<32x60xf32> -> vector<32x120xf32>
    %c0_11 = arith.constant 0 : index
    %c0_12 = arith.constant 0 : index
    %47 = vector.load %arg2[%c0_11, %c0_12] : memref<1600x160xbf16, #tpu.memory_space<vmem>>, vector<120x100xbf16>
    %48 = arith.truncf %46 : vector<32x120xf32> to vector<32x120xbf16>
    %cst_13 = arith.constant dense<0.000000e+00> : vector<32x100xf32>
    %49 = tpu.matmul %48, %47, %cst_13 {dimension_numbers = #tpu.dot_dimension_numbers<[1], [0], [0], [1], [0, 0, 1, 1], [], []>} : vector<32x120xbf16>, vector<120x100xbf16>, vector<32x100xf32> -> vector<32x100xf32>
    %c2 = arith.constant 2 : index
    %c0_14 = arith.constant 0 : index
    %50 = vector.load %arg3[%c2, %c0_14] : memref<16x160xf32, #tpu.memory_space<vmem>>, vector<1x100xf32>
    %51 = vector.broadcast %50 : vector<1x100xf32> to vector<32x100xf32>
    %52 = arith.addf %49, %51 : vector<32x100xf32>
    %cst_15 = arith.constant 0.000000e+00 : f32
    %53 = vector.broadcast %cst_15 : f32 to vector<2x100xf32>
    %54 = tpu.concatenate %53, %52 in 0 : vector<2x100xf32>, vector<32x100xf32> -> vector<34x100xf32>
    %55 = tpu.concatenate %52, %53 in 0 : vector<32x100xf32>, vector<2x100xf32> -> vector<34x100xf32>
    %56 = tpu.concatenate %54, %55 in 1 : vector<34x100xf32>, vector<34x100xf32> -> vector<34x200xf32>
    %c128 = arith.constant 128 : index
    %c0_16 = arith.constant 0 : index
    %57 = vector.load %arg2[%c128, %c0_16] : memref<1600x160xbf16, #tpu.memory_space<vmem>>, vector<200x120xbf16>
    %58 = arith.truncf %56 : vector<34x200xf32> to vector<34x200xbf16>
    %cst_17 = arith.constant dense<0.000000e+00> : vector<34x120xf32>
    %59 = tpu.matmul %58, %57, %cst_17 {dimension_numbers = #tpu.dot_dimension_numbers<[1], [0], [0], [1], [0, 0, 1, 1], [], []>} : vector<34x200xbf16>, vector<200x120xbf16>, vector<34x120xf32> -> vector<34x120xf32>
    %c3 = arith.constant 3 : index
    %c0_18 = arith.constant 0 : index
    %60 = vector.load %arg3[%c3, %c0_18] : memref<16x160xf32, #tpu.memory_space<vmem>>, vector<1x120xf32>
    %61 = vector.broadcast %60 : vector<1x120xf32> to vector<34x120xf32>
    %62 = arith.addf %59, %61 : vector<34x120xf32>
    %cst_19 = arith.constant 0.000000e+00 : f32
    %63 = vector.broadcast %cst_19 : f32 to vector<2x120xf32>
    %64 = tpu.concatenate %63, %62 in 0 : vector<2x120xf32>, vector<34x120xf32> -> vector<36x120xf32>
    %65 = tpu.concatenate %62, %63 in 0 : vector<34x120xf32>, vector<2x120xf32> -> vector<36x120xf32>
    %66 = tpu.concatenate %64, %65 in 1 : vector<36x120xf32>, vector<36x120xf32> -> vector<36x240xf32>
    %c336 = arith.constant 336 : index
    %c0_20 = arith.constant 0 : index
    %67 = vector.load %arg2[%c336, %c0_20] : memref<1600x160xbf16, #tpu.memory_space<vmem>>, vector<240x160xbf16>
    %68 = arith.truncf %66 : vector<36x240xf32> to vector<36x240xbf16>
    %cst_21 = arith.constant dense<0.000000e+00> : vector<36x160xf32>
    %69 = tpu.matmul %68, %67, %cst_21 {dimension_numbers = #tpu.dot_dimension_numbers<[1], [0], [0], [1], [0, 0, 1, 1], [], []>} : vector<36x240xbf16>, vector<240x160xbf16>, vector<36x160xf32> -> vector<36x160xf32>
    %c4 = arith.constant 4 : index
    %c0_22 = arith.constant 0 : index
    %70 = vector.load %arg3[%c4, %c0_22] : memref<16x160xf32, #tpu.memory_space<vmem>>, vector<1x160xf32>
    %71 = vector.broadcast %70 : vector<1x160xf32> to vector<36x160xf32>
    %72 = arith.addf %69, %71 : vector<36x160xf32>
    %73 = tpu.iota {dimensions = array<i32: 0>} : vector<18x36xi32>
    %74 = tpu.iota {dimensions = array<i32: 1>} : vector<18x36xi32>
    %c1_i32_23 = arith.constant 1 : i32
    %75 = vector.broadcast %c1_i32_23 : i32 to vector<18x36xi32>
    %76 = arith.shrsi %73, %75 : vector<18x36xi32>
    %c2_i32_24 = arith.constant 2 : i32
    %77 = vector.broadcast %c2_i32_24 : i32 to vector<18x36xi32>
    %78 = arith.muli %77, %76 : vector<18x36xi32>
    %c0_i32_25 = arith.constant 0 : i32
    %79 = vector.broadcast %c0_i32_25 : i32 to vector<18x36xi32>
    %80 = arith.addi %78, %79 : vector<18x36xi32>
    %c2_i32_26 = arith.constant 2 : i32
    %81 = vector.broadcast %c2_i32_26 : i32 to vector<18x36xi32>
    %82 = arith.muli %81, %80 : vector<18x36xi32>
    %c1_i32_27 = arith.constant 1 : i32
    %83 = vector.broadcast %c1_i32_27 : i32 to vector<18x36xi32>
    %84 = arith.andi %73, %83 : vector<18x36xi32>
    %85 = arith.addi %82, %84 : vector<18x36xi32>
    %86 = arith.cmpi eq, %74, %85 : vector<18x36xi32>
    %87 = arith.extui %86 : vector<18x36xi1> to vector<18x36xi32>
    %88 = arith.sitofp %87 : vector<18x36xi32> to vector<18x36xf32>
    %89 = tpu.iota {dimensions = array<i32: 0>} : vector<18x36xi32>
    %90 = tpu.iota {dimensions = array<i32: 1>} : vector<18x36xi32>
    %c1_i32_28 = arith.constant 1 : i32
    %91 = vector.broadcast %c1_i32_28 : i32 to vector<18x36xi32>
    %92 = arith.shrsi %89, %91 : vector<18x36xi32>
    %c2_i32_29 = arith.constant 2 : i32
    %93 = vector.broadcast %c2_i32_29 : i32 to vector<18x36xi32>
    %94 = arith.muli %93, %92 : vector<18x36xi32>
    %c1_i32_30 = arith.constant 1 : i32
    %95 = vector.broadcast %c1_i32_30 : i32 to vector<18x36xi32>
    %96 = arith.addi %94, %95 : vector<18x36xi32>
    %c2_i32_31 = arith.constant 2 : i32
    %97 = vector.broadcast %c2_i32_31 : i32 to vector<18x36xi32>
    %98 = arith.muli %97, %96 : vector<18x36xi32>
    %c1_i32_32 = arith.constant 1 : i32
    %99 = vector.broadcast %c1_i32_32 : i32 to vector<18x36xi32>
    %100 = arith.andi %89, %99 : vector<18x36xi32>
    %101 = arith.addi %98, %100 : vector<18x36xi32>
    %102 = arith.cmpi eq, %90, %101 : vector<18x36xi32>
    %103 = arith.extui %102 : vector<18x36xi1> to vector<18x36xi32>
    %104 = arith.sitofp %103 : vector<18x36xi32> to vector<18x36xf32>
    %105 = arith.truncf %88 : vector<18x36xf32> to vector<18x36xbf16>
    %106 = arith.truncf %72 : vector<36x160xf32> to vector<36x160xbf16>
    %cst_33 = arith.constant dense<0.000000e+00> : vector<18x160xf32>
    %107 = tpu.matmul %105, %106, %cst_33 {dimension_numbers = #tpu.dot_dimension_numbers<[1], [0], [0], [1], [0, 0, 1, 1], [], []>} : vector<18x36xbf16>, vector<36x160xbf16>, vector<18x160xf32> -> vector<18x160xf32>
    %108 = arith.truncf %104 : vector<18x36xf32> to vector<18x36xbf16>
    %109 = arith.truncf %72 : vector<36x160xf32> to vector<36x160xbf16>
    %cst_34 = arith.constant dense<0.000000e+00> : vector<18x160xf32>
    %110 = tpu.matmul %108, %109, %cst_34 {dimension_numbers = #tpu.dot_dimension_numbers<[1], [0], [0], [1], [0, 0, 1, 1], [], []>} : vector<18x36xbf16>, vector<36x160xbf16>, vector<18x160xf32> -> vector<18x160xf32>
    %111 = arith.maximumf %107, %110 : vector<18x160xf32>
    %112 = vector.extract_strided_slice %111 {offsets = [0, 0], sizes = [2, 160], strides = [1, 1]} : vector<18x160xf32> to vector<2x160xf32>
    %113 = vector.extract_strided_slice %111 {offsets = [2, 0], sizes = [2, 160], strides = [1, 1]} : vector<18x160xf32> to vector<2x160xf32>
    %114 = vector.extract_strided_slice %111 {offsets = [4, 0], sizes = [2, 160], strides = [1, 1]} : vector<18x160xf32> to vector<2x160xf32>
    %115 = vector.extract_strided_slice %111 {offsets = [6, 0], sizes = [2, 160], strides = [1, 1]} : vector<18x160xf32> to vector<2x160xf32>
    %116 = vector.extract_strided_slice %111 {offsets = [8, 0], sizes = [2, 160], strides = [1, 1]} : vector<18x160xf32> to vector<2x160xf32>
    %117 = vector.extract_strided_slice %111 {offsets = [10, 0], sizes = [2, 160], strides = [1, 1]} : vector<18x160xf32> to vector<2x160xf32>
    %118 = vector.extract_strided_slice %111 {offsets = [12, 0], sizes = [2, 160], strides = [1, 1]} : vector<18x160xf32> to vector<2x160xf32>
    %119 = vector.extract_strided_slice %111 {offsets = [14, 0], sizes = [2, 160], strides = [1, 1]} : vector<18x160xf32> to vector<2x160xf32>
    %120 = vector.extract_strided_slice %111 {offsets = [16, 0], sizes = [2, 160], strides = [1, 1]} : vector<18x160xf32> to vector<2x160xf32>
    %cst_35 = arith.constant 1.000000e+00 : f32
    %121 = vector.broadcast %cst_35 : f32 to vector<2x8xf32>
    %122 = tpu.concatenate %112, %113, %114, %115, %116, %117, %118, %119, %120, %121 in 1 : vector<2x160xf32>, vector<2x160xf32>, vector<2x160xf32>, vector<2x160xf32>, vector<2x160xf32>, vector<2x160xf32>, vector<2x160xf32>, vector<2x160xf32>, vector<2x160xf32>, vector<2x8xf32> -> vector<2x1448xf32>
    %c0_36 = arith.constant 0 : index
    %c0_37 = arith.constant 0 : index
    %123 = vector.load %arg1[%c0_36, %c0_37] : memref<1448x600xbf16, #tpu.memory_space<vmem>>, vector<1448x600xbf16>
    %124 = arith.truncf %122 : vector<2x1448xf32> to vector<2x1448xbf16>
    %cst_38 = arith.constant dense<0.000000e+00> : vector<2x600xf32>
    %125 = tpu.matmul %124, %123, %cst_38 {dimension_numbers = #tpu.dot_dimension_numbers<[1], [0], [0], [1], [0, 0, 1, 1], [], []>} : vector<2x1448xbf16>, vector<1448x600xbf16>, vector<2x600xf32> -> vector<2x600xf32>
    %cst_39 = arith.constant 0.000000e+00 : f32
    %126 = vector.broadcast %cst_39 : f32 to vector<2x600xf32>
    %127 = arith.cmpf oge, %125, %126 : vector<2x600xf32>
    %cst_40 = arith.constant 1.000000e-01 : f32
    %128 = vector.broadcast %cst_40 : f32 to vector<2x600xf32>
    %129 = arith.mulf %128, %125 : vector<2x600xf32>
    %130 = arith.select %127, %125, %129 : vector<2x600xi1>, vector<2x600xf32>
    %c576 = arith.constant 576 : index
    %c0_41 = arith.constant 0 : index
    %131 = vector.load %arg2[%c576, %c0_41] : memref<1600x160xbf16, #tpu.memory_space<vmem>>, vector<600x128xbf16>
    %132 = arith.truncf %130 : vector<2x600xf32> to vector<2x600xbf16>
    %cst_42 = arith.constant dense<0.000000e+00> : vector<2x128xf32>
    %133 = tpu.matmul %132, %131, %cst_42 {dimension_numbers = #tpu.dot_dimension_numbers<[1], [0], [0], [1], [0, 0, 1, 1], [], []>} : vector<2x600xbf16>, vector<600x128xbf16>, vector<2x128xf32> -> vector<2x128xf32>
    %c5 = arith.constant 5 : index
    %c0_43 = arith.constant 0 : index
    %134 = vector.load %arg3[%c5, %c0_43] : memref<16x160xf32, #tpu.memory_space<vmem>>, vector<1x128xf32>
    %135 = vector.broadcast %134 : vector<1x128xf32> to vector<2x128xf32>
    %136 = arith.addf %133, %135 : vector<2x128xf32>
    %cst_44 = arith.constant 0.000000e+00 : f32
    %137 = vector.broadcast %cst_44 : f32 to vector<2x128xf32>
    %138 = arith.cmpf oge, %136, %137 : vector<2x128xf32>
    %cst_45 = arith.constant 1.000000e-01 : f32
    %139 = vector.broadcast %cst_45 : f32 to vector<2x128xf32>
    %140 = arith.mulf %139, %136 : vector<2x128xf32>
    %141 = arith.select %138, %136, %140 : vector<2x128xi1>, vector<2x128xf32>
    %c0_46 = arith.constant 0 : index
    %c1_47 = arith.constant 1 : index
    %142 = vector.load %arg0[%c0_46, %c1_47] : memref<60x30xf32, #tpu.memory_space<vmem>>, vector<2x27xf32>
    %c1184 = arith.constant 1184 : index
    %c0_48 = arith.constant 0 : index
    %143 = vector.load %arg2[%c1184, %c0_48] : memref<1600x160xbf16, #tpu.memory_space<vmem>>, vector<27x27xbf16>
    %144 = arith.truncf %142 : vector<2x27xf32> to vector<2x27xbf16>
    %cst_49 = arith.constant dense<0.000000e+00> : vector<2x27xf32>
    %145 = tpu.matmul %144, %143, %cst_49 {dimension_numbers = #tpu.dot_dimension_numbers<[1], [0], [0], [1], [0, 0, 1, 1], [], []>} : vector<2x27xbf16>, vector<27x27xbf16>, vector<2x27xf32> -> vector<2x27xf32>
    %c6 = arith.constant 6 : index
    %c0_50 = arith.constant 0 : index
    %146 = vector.load %arg3[%c6, %c0_50] : memref<16x160xf32, #tpu.memory_space<vmem>>, vector<1x27xf32>
    %147 = vector.broadcast %146 : vector<1x27xf32> to vector<2x27xf32>
    %148 = arith.addf %145, %147 : vector<2x27xf32>
    %cst_51 = arith.constant 0.000000e+00 : f32
    %149 = vector.broadcast %cst_51 : f32 to vector<2x27xf32>
    %150 = arith.cmpf oge, %148, %149 : vector<2x27xf32>
    %cst_52 = arith.constant 1.000000e-01 : f32
    %151 = vector.broadcast %cst_52 : f32 to vector<2x27xf32>
    %152 = arith.mulf %151, %148 : vector<2x27xf32>
    %153 = arith.select %150, %148, %152 : vector<2x27xi1>, vector<2x27xf32>
    %c1216 = arith.constant 1216 : index
    %c0_53 = arith.constant 0 : index
    %154 = vector.load %arg2[%c1216, %c0_53] : memref<1600x160xbf16, #tpu.memory_space<vmem>>, vector<27x20xbf16>
    %155 = arith.truncf %153 : vector<2x27xf32> to vector<2x27xbf16>
    %cst_54 = arith.constant dense<0.000000e+00> : vector<2x20xf32>
    %156 = tpu.matmul %155, %154, %cst_54 {dimension_numbers = #tpu.dot_dimension_numbers<[1], [0], [0], [1], [0, 0, 1, 1], [], []>} : vector<2x27xbf16>, vector<27x20xbf16>, vector<2x20xf32> -> vector<2x20xf32>
    %c7 = arith.constant 7 : index
    %c0_55 = arith.constant 0 : index
    %157 = vector.load %arg3[%c7, %c0_55] : memref<16x160xf32, #tpu.memory_space<vmem>>, vector<1x20xf32>
    %158 = vector.broadcast %157 : vector<1x20xf32> to vector<2x20xf32>
    %159 = arith.addf %156, %158 : vector<2x20xf32>
    %cst_56 = arith.constant 0.000000e+00 : f32
    %160 = vector.broadcast %cst_56 : f32 to vector<2x20xf32>
    %161 = arith.cmpf oge, %159, %160 : vector<2x20xf32>
    %cst_57 = arith.constant 1.000000e-01 : f32
    %162 = vector.broadcast %cst_57 : f32 to vector<2x20xf32>
    %163 = arith.mulf %162, %159 : vector<2x20xf32>
    %164 = arith.select %161, %159, %163 : vector<2x20xi1>, vector<2x20xf32>
    %c1248 = arith.constant 1248 : index
    %c0_58 = arith.constant 0 : index
    %165 = vector.load %arg2[%c1248, %c0_58] : memref<1600x160xbf16, #tpu.memory_space<vmem>>, vector<20x12xbf16>
    %166 = arith.truncf %164 : vector<2x20xf32> to vector<2x20xbf16>
    %cst_59 = arith.constant dense<0.000000e+00> : vector<2x12xf32>
    %167 = tpu.matmul %166, %165, %cst_59 {dimension_numbers = #tpu.dot_dimension_numbers<[1], [0], [0], [1], [0, 0, 1, 1], [], []>} : vector<2x20xbf16>, vector<20x12xbf16>, vector<2x12xf32> -> vector<2x12xf32>
    %c8 = arith.constant 8 : index
    %c0_60 = arith.constant 0 : index
    %168 = vector.load %arg3[%c8, %c0_60] : memref<16x160xf32, #tpu.memory_space<vmem>>, vector<1x12xf32>
    %169 = vector.broadcast %168 : vector<1x12xf32> to vector<2x12xf32>
    %170 = arith.addf %167, %169 : vector<2x12xf32>
    %cst_61 = arith.constant 0.000000e+00 : f32
    %171 = vector.broadcast %cst_61 : f32 to vector<2x12xf32>
    %172 = arith.cmpf oge, %170, %171 : vector<2x12xf32>
    %cst_62 = arith.constant 1.000000e-01 : f32
    %173 = vector.broadcast %cst_62 : f32 to vector<2x12xf32>
    %174 = arith.mulf %173, %170 : vector<2x12xf32>
    %175 = arith.select %172, %170, %174 : vector<2x12xi1>, vector<2x12xf32>
    %c1280 = arith.constant 1280 : index
    %c0_63 = arith.constant 0 : index
    %176 = vector.load %arg2[%c1280, %c0_63] : memref<1600x160xbf16, #tpu.memory_space<vmem>>, vector<12x60xbf16>
    %177 = arith.truncf %175 : vector<2x12xf32> to vector<2x12xbf16>
    %cst_64 = arith.constant dense<0.000000e+00> : vector<2x60xf32>
    %178 = tpu.matmul %177, %176, %cst_64 {dimension_numbers = #tpu.dot_dimension_numbers<[1], [0], [0], [1], [0, 0, 1, 1], [], []>} : vector<2x12xbf16>, vector<12x60xbf16>, vector<2x60xf32> -> vector<2x60xf32>
    %c1296 = arith.constant 1296 : index
    %c0_65 = arith.constant 0 : index
    %179 = vector.load %arg2[%c1296, %c0_65] : memref<1600x160xbf16, #tpu.memory_space<vmem>>, vector<128x60xbf16>
    %180 = arith.truncf %141 : vector<2x128xf32> to vector<2x128xbf16>
    %cst_66 = arith.constant dense<0.000000e+00> : vector<2x60xf32>
    %181 = tpu.matmul %180, %179, %cst_66 {dimension_numbers = #tpu.dot_dimension_numbers<[1], [0], [0], [1], [0, 0, 1, 1], [], []>} : vector<2x128xbf16>, vector<128x60xbf16>, vector<2x60xf32> -> vector<2x60xf32>
    %182 = arith.addf %178, %181 : vector<2x60xf32>
    %c9 = arith.constant 9 : index
    %c0_67 = arith.constant 0 : index
    %183 = vector.load %arg3[%c9, %c0_67] : memref<16x160xf32, #tpu.memory_space<vmem>>, vector<1x60xf32>
    %184 = vector.broadcast %183 : vector<1x60xf32> to vector<2x60xf32>
    %185 = arith.addf %182, %184 : vector<2x60xf32>
    %cst_68 = arith.constant 0.000000e+00 : f32
    %186 = vector.broadcast %cst_68 : f32 to vector<2x60xf32>
    %187 = arith.cmpf oge, %185, %186 : vector<2x60xf32>
    %cst_69 = arith.constant 1.000000e-01 : f32
    %188 = vector.broadcast %cst_69 : f32 to vector<2x60xf32>
    %189 = arith.mulf %188, %185 : vector<2x60xf32>
    %190 = arith.select %187, %185, %189 : vector<2x60xi1>, vector<2x60xf32>
    %c1424 = arith.constant 1424 : index
    %c0_70 = arith.constant 0 : index
    %191 = vector.load %arg2[%c1424, %c0_70] : memref<1600x160xbf16, #tpu.memory_space<vmem>>, vector<60x30xbf16>
    %192 = arith.truncf %190 : vector<2x60xf32> to vector<2x60xbf16>
    %cst_71 = arith.constant dense<0.000000e+00> : vector<2x30xf32>
    %193 = tpu.matmul %192, %191, %cst_71 {dimension_numbers = #tpu.dot_dimension_numbers<[1], [0], [0], [1], [0, 0, 1, 1], [], []>} : vector<2x60xbf16>, vector<60x30xbf16>, vector<2x30xf32> -> vector<2x30xf32>
    %c10 = arith.constant 10 : index
    %c0_72 = arith.constant 0 : index
    %194 = vector.load %arg3[%c10, %c0_72] : memref<16x160xf32, #tpu.memory_space<vmem>>, vector<1x30xf32>
    %195 = vector.broadcast %194 : vector<1x30xf32> to vector<2x30xf32>
    %196 = arith.addf %193, %195 : vector<2x30xf32>
    %cst_73 = arith.constant 0.000000e+00 : f32
    %197 = vector.broadcast %cst_73 : f32 to vector<2x30xf32>
    %198 = arith.cmpf oge, %196, %197 : vector<2x30xf32>
    %cst_74 = arith.constant 1.000000e-01 : f32
    %199 = vector.broadcast %cst_74 : f32 to vector<2x30xf32>
    %200 = arith.mulf %199, %196 : vector<2x30xf32>
    %201 = arith.select %198, %196, %200 : vector<2x30xi1>, vector<2x30xf32>
    %c1488 = arith.constant 1488 : index
    %c0_75 = arith.constant 0 : index
    %202 = vector.load %arg2[%c1488, %c0_75] : memref<1600x160xbf16, #tpu.memory_space<vmem>>, vector<30x20xbf16>
    %203 = arith.truncf %201 : vector<2x30xf32> to vector<2x30xbf16>
    %cst_76 = arith.constant dense<0.000000e+00> : vector<2x20xf32>
    %204 = tpu.matmul %203, %202, %cst_76 {dimension_numbers = #tpu.dot_dimension_numbers<[1], [0], [0], [1], [0, 0, 1, 1], [], []>} : vector<2x30xbf16>, vector<30x20xbf16>, vector<2x20xf32> -> vector<2x20xf32>
    %c11 = arith.constant 11 : index
    %c0_77 = arith.constant 0 : index
    %205 = vector.load %arg3[%c11, %c0_77] : memref<16x160xf32, #tpu.memory_space<vmem>>, vector<1x20xf32>
    %206 = vector.broadcast %205 : vector<1x20xf32> to vector<2x20xf32>
    %207 = arith.addf %204, %206 : vector<2x20xf32>
    %cst_78 = arith.constant 0.000000e+00 : f32
    %208 = vector.broadcast %cst_78 : f32 to vector<2x20xf32>
    %209 = arith.cmpf oge, %207, %208 : vector<2x20xf32>
    %cst_79 = arith.constant 1.000000e-01 : f32
    %210 = vector.broadcast %cst_79 : f32 to vector<2x20xf32>
    %211 = arith.mulf %210, %207 : vector<2x20xf32>
    %212 = arith.select %209, %207, %211 : vector<2x20xi1>, vector<2x20xf32>
    %c1520 = arith.constant 1520 : index
    %c0_80 = arith.constant 0 : index
    %213 = vector.load %arg2[%c1520, %c0_80] : memref<1600x160xbf16, #tpu.memory_space<vmem>>, vector<20x7xbf16>
    %214 = arith.truncf %212 : vector<2x20xf32> to vector<2x20xbf16>
    %cst_81 = arith.constant dense<0.000000e+00> : vector<2x7xf32>
    %215 = tpu.matmul %214, %213, %cst_81 {dimension_numbers = #tpu.dot_dimension_numbers<[1], [0], [0], [1], [0, 0, 1, 1], [], []>} : vector<2x20xbf16>, vector<20x7xbf16>, vector<2x7xf32> -> vector<2x7xf32>
    %c12 = arith.constant 12 : index
    %c0_82 = arith.constant 0 : index
    %216 = vector.load %arg3[%c12, %c0_82] : memref<16x160xf32, #tpu.memory_space<vmem>>, vector<1x7xf32>
    %217 = vector.broadcast %216 : vector<1x7xf32> to vector<2x7xf32>
    %218 = arith.addf %215, %217 : vector<2x7xf32>
    %cst_83 = arith.constant 0.000000e+00 : f32
    %219 = vector.broadcast %cst_83 : f32 to vector<2x7xf32>
    %220 = arith.cmpf oge, %218, %219 : vector<2x7xf32>
    %cst_84 = arith.constant 1.000000e-01 : f32
    %221 = vector.broadcast %cst_84 : f32 to vector<2x7xf32>
    %222 = arith.mulf %221, %218 : vector<2x7xf32>
    %223 = arith.select %220, %218, %222 : vector<2x7xi1>, vector<2x7xf32>
    %c0_85 = arith.constant 0 : index
    %c28 = arith.constant 28 : index
    %224 = vector.load %arg0[%c0_85, %c28] : memref<60x30xf32, #tpu.memory_space<vmem>>, vector<2x2xf32>
    %c1552 = arith.constant 1552 : index
    %c0_86 = arith.constant 0 : index
    %225 = vector.load %arg2[%c1552, %c0_86] : memref<1600x160xbf16, #tpu.memory_space<vmem>>, vector<7x6xbf16>
    %226 = arith.truncf %223 : vector<2x7xf32> to vector<2x7xbf16>
    %cst_87 = arith.constant dense<0.000000e+00> : vector<2x6xf32>
    %227 = tpu.matmul %226, %225, %cst_87 {dimension_numbers = #tpu.dot_dimension_numbers<[1], [0], [0], [1], [0, 0, 1, 1], [], []>} : vector<2x7xbf16>, vector<7x6xbf16>, vector<2x6xf32> -> vector<2x6xf32>
    %c1568 = arith.constant 1568 : index
    %c0_88 = arith.constant 0 : index
    %228 = vector.load %arg2[%c1568, %c0_88] : memref<1600x160xbf16, #tpu.memory_space<vmem>>, vector<2x6xbf16>
    %229 = arith.truncf %224 : vector<2x2xf32> to vector<2x2xbf16>
    %cst_89 = arith.constant dense<0.000000e+00> : vector<2x6xf32>
    %230 = tpu.matmul %229, %228, %cst_89 {dimension_numbers = #tpu.dot_dimension_numbers<[1], [0], [0], [1], [0, 0, 1, 1], [], []>} : vector<2x2xbf16>, vector<2x6xbf16>, vector<2x6xf32> -> vector<2x6xf32>
    %231 = arith.addf %227, %230 : vector<2x6xf32>
    %c13 = arith.constant 13 : index
    %c0_90 = arith.constant 0 : index
    %232 = vector.load %arg3[%c13, %c0_90] : memref<16x160xf32, #tpu.memory_space<vmem>>, vector<1x6xf32>
    %233 = vector.broadcast %232 : vector<1x6xf32> to vector<2x6xf32>
    %234 = arith.addf %231, %233 : vector<2x6xf32>
    %cst_91 = arith.constant 0.000000e+00 : f32
    %235 = vector.broadcast %cst_91 : f32 to vector<2x6xf32>
    %236 = arith.cmpf oge, %234, %235 : vector<2x6xf32>
    %cst_92 = arith.constant 1.000000e-01 : f32
    %237 = vector.broadcast %cst_92 : f32 to vector<2x6xf32>
    %238 = arith.mulf %237, %234 : vector<2x6xf32>
    %239 = arith.select %236, %234, %238 : vector<2x6xi1>, vector<2x6xf32>
    %c1584 = arith.constant 1584 : index
    %c0_93 = arith.constant 0 : index
    %240 = vector.load %arg2[%c1584, %c0_93] : memref<1600x160xbf16, #tpu.memory_space<vmem>>, vector<6x3xbf16>
    %241 = arith.truncf %239 : vector<2x6xf32> to vector<2x6xbf16>
    %cst_94 = arith.constant dense<0.000000e+00> : vector<2x3xf32>
    %242 = tpu.matmul %241, %240, %cst_94 {dimension_numbers = #tpu.dot_dimension_numbers<[1], [0], [0], [1], [0, 0, 1, 1], [], []>} : vector<2x6xbf16>, vector<6x3xbf16>, vector<2x3xf32> -> vector<2x3xf32>
    %c14 = arith.constant 14 : index
    %c0_95 = arith.constant 0 : index
    %243 = vector.load %arg3[%c14, %c0_95] : memref<16x160xf32, #tpu.memory_space<vmem>>, vector<1x3xf32>
    %244 = vector.broadcast %243 : vector<1x3xf32> to vector<2x3xf32>
    %245 = arith.addf %242, %244 : vector<2x3xf32>
    %c0_96 = arith.constant 0 : index
    %c0_97 = arith.constant 0 : index
    %246 = vector.load %arg4[%c0_96, %c0_97] : memref<2x3xf32, #tpu.memory_space<vmem>>, vector<2x3xf32>
    tpu.vector_store %arg4[%c0_96, %c0_97], %245 {strides = array<i32>} : memref<2x3xf32, #tpu.memory_space<vmem>>, vector<2x3xf32>,
    return
  }
}

</mosaic_0001>

<llo_original>
// kernel: tpu_custom_call.1
$region0: #{tpu_custom_call.1}
  #allocation0 [shape = 'u32[]', space=smem, size = 0x4, offset = 0x4, fixed_abs, tag = 'smem constant byte address 0x4 - core index']
  #allocation1 [shape = 'u32[144,128]{1,0:T(1,128)}', space=vmem, size = 0x12000, scoped, tag = 'internal scratch']
  %s0 = inlined_call_operand.vmem [shape: f32[60,30], index: 0, kind: input, shape index: {}]
  %s1 = inlined_call_operand.vmem [shape: bf16[1448,600], index: 1, kind: input, shape index: {}]
  %s2 = inlined_call_operand.vmem [shape: bf16[1600,160], index: 2, kind: input, shape index: {}]
  %s3 = inlined_call_operand.vmem [shape: f32[16,160], index: 3, kind: input, shape index: {}]
  %s4 = inlined_call_operand.hbm [shape: f32[2,3], index: 4, kind: output, shape index: {}]
  %s5 = sld [smem:[#allocation0]]
  $region26: #{tpu_custom_call.1} parent=0
    _
  %s7 = ssub.s32 1, %s5
  %s8 = scalar_select 0, %s7, %s5
  $region1: #{tpu_custom_call.1} parent=0
    #allocation2 [shape = 'u8[1024]{0}', space=vmem, size = 0x400, scoped, tag = 'output window, operand 0, single buffered']
    #allocation3 [shape = 's32[1]{0}', space=sflag, size = 0x4, scoped, tag = 'scoped memory for tpu_custom_call.1']
    %9 = vsyncpa [#allocation3], 0
    // Predicated region
    $region2: #{tpu_custom_call.1} parent=1 // pred_check
      _
    $region3: #{tpu_custom_call.1} parent=1 // pred_check_branch
      %11 = sbr.rel (0) target = $region5
    $region4: #{tpu_custom_call.1} parent=1 // pred_region
      _
    $region5: #{tpu_custom_call.1} parent=1 // pred_fallthru
      _
    // Predicated region
    $region6: #{tpu_custom_call.1} parent=1 // pred_check
      _
    $region7: #{tpu_custom_call.1} parent=1 // pred_check_branch
      %13 = sbr.rel (0) target = $region9
    $region8: #{tpu_custom_call.1} parent=1 // pred_region
      _
    $region9: #{tpu_custom_call.1} parent=1 // pred_fallthru
      _
    // Predicated region
    $region10: #{tpu_custom_call.1} parent=1 // pred_check
      _
    $region11: #{tpu_custom_call.1} parent=1 // pred_check_branch
      %15 = sbr.rel (0) target = $region13
    $region12: #{tpu_custom_call.1} parent=1 // pred_region
      _
    $region13: #{tpu_custom_call.1} parent=1 // pred_fallthru
      _
    // Predicated region
    $region14: #{tpu_custom_call.1} parent=1 // pred_check
      _
    $region15: #{tpu_custom_call.1} parent=1 // pred_check_branch
      %17 = sbr.rel (0) target = $region17
    $region16: #{tpu_custom_call.1} parent=1 // pred_region
      _
    $region17: #{tpu_custom_call.1} parent=1 // pred_fallthru
      _
    %v19 = vld [vmem:[%s0] sm:$0xff]
    %v20 = vld [vmem:[%s0 + $0x8] sm:$0xff]
    %v21 = vld [vmem:[%s0 + $0x10] sm:$0xff]
    %v22 = vld [vmem:[%s0 + $0x18] sm:$0xff]
    %v23 = vld [vmem:[%s0 + $0x20] sm:$0xff]
    %v24 = vld [vmem:[%s0 + $0x28] sm:$0xff]
    %v25 = vld [vmem:[%s0 + $0x30] sm:$0xff]
    %v26 = vld [vmem:[%s0 + $0x38] sm:$0xf]
    %v27 = vld [vmem:[%s3] ss:$0 sm:$0xff]
    %29 = vset.pattern.permute.xlu0 0
    %30 = vperm.xlu0 %29, %v19
    %v31 = vpop.permute.xlu0 %30
    %34 = vset.pattern.permute.xlu0 0
    %35 = vperm.xlu0 %34, %v20
    %v36 = vpop.permute.xlu0 %35
    %39 = vset.pattern.permute.xlu0 0
    %40 = vperm.xlu0 %39, %v21
    %v41 = vpop.permute.xlu0 %40
    %44 = vset.pattern.permute.xlu0 0
    %45 = vperm.xlu0 %44, %v22
    %v46 = vpop.permute.xlu0 %45
    %49 = vset.pattern.permute.xlu0 0
    %50 = vperm.xlu0 %49, %v23
    %v51 = vpop.permute.xlu0 %50
    %54 = vset.pattern.permute.xlu0 0
    %55 = vperm.xlu0 %54, %v24
    %v56 = vpop.permute.xlu0 %55
    %59 = vset.pattern.permute.xlu0 0
    %60 = vperm.xlu0 %59, %v25
    %v61 = vpop.permute.xlu0 %60
    %64 = vset.pattern.permute.xlu0 0
    %65 = vperm.xlu0 %64, %v26
    %v66 = vpop.permute.xlu0 %65
    %v68 = vmul.f32 %v31, %v27
    %v69 = vmul.f32 %v36, %v27
    %v70 = vmul.f32 %v41, %v27
    %v71 = vmul.f32 %v46, %v27
    %v72 = vmul.f32 %v51, %v27
    %v73 = vmul.f32 %v56, %v27
    %v74 = vmul.f32 %v61, %v27
    %v75 = vmul.f32 %v66, %v27
    %v76 = vld [vmem:[%s3 + $0x1] ss:$0 sm:$0xff]
    %v77 = vadd.f32 %v68, %v76
    %v78 = vadd.f32 %v69, %v76
    %v79 = vadd.f32 %v70, %v76
    %v80 = vadd.f32 %v71, %v76
    %v81 = vadd.f32 %v72, %v76
    %v82 = vadd.f32 %v73, %v76
    %v83 = vadd.f32 %v74, %v76
    %v84 = vadd.f32 %v75, %v76
    %v85 = vlaneseq
    %v86 = vshrl.u32 %v85, 7
    %v87 = vadd.s32 %v86, 8
    %v88 = vadd.s32 %v86, 16
    %v89 = vadd.s32 %v86, 24
    %v90 = vlaneseq
    %v91 = vand.u32 %v90, 127
    %v92 = vshra.s32 %v86, 1
    %v93 = vshra.s32 %v87, 1
    %v94 = vshra.s32 %v88, 1
    %v95 = vshra.s32 %v89, 1
    %v96 = vmul.u32 %v92, 2
    %v97 = vmul.u32 %v93, 2
    %v98 = vmul.u32 %v94, 2
    %v99 = vmul.u32 %v95, 2
    %v100 = vadd.s32 %v96, 4294967295
    %v101 = vadd.s32 %v97, 4294967295
    %v102 = vadd.s32 %v98, 4294967295
    %v103 = vadd.s32 %v99, 4294967295
    %v104 = vmul.u32 %v100, 2
    %v105 = vmul.u32 %v101, 2
    %v106 = vmul.u32 %v102, 2
    %v107 = vmul.u32 %v103, 2
    %v108 = vand.u32 %v86, 1
    %v109 = vand.u32 %v87, 1
    %v110 = vand.u32 %v88, 1
    %v111 = vand.u32 %v89, 1
    %v112 = vadd.s32 %v104, %v108
    %v113 = vadd.s32 %v105, %v109
    %v114 = vadd.s32 %v106, %v110
    %v115 = vadd.s32 %v107, %v111
    %vm116 = vcmp.eq.s32.totalorder %v91, %v112
    %vm117 = vcmp.eq.s32.totalorder %v91, %v113
    %vm118 = vcmp.eq.s32.totalorder %v91, %v114
    %vm119 = vcmp.eq.s32.totalorder %v91, %v115
    %v120 = vmul.u32 %v96, 2
    %v121 = vmul.u32 %v97, 2
    %v122 = vmul.u32 %v98, 2
    %v123 = vmul.u32 %v99, 2
    %v124 = vadd.s32 %v120, %v108
    %v125 = vadd.s32 %v121, %v109
    %v126 = vadd.s32 %v122, %v110
    %v127 = vadd.s32 %v123, %v111
    %vm128 = vcmp.eq.s32.totalorder %v91, %v124
    %vm129 = vcmp.eq.s32.totalorder %v91, %v125
    %vm130 = vcmp.eq.s32.totalorder %v91, %v126
    %vm131 = vcmp.eq.s32.totalorder %v91, %v127
    %v132 = vsel %vm116, 1, 0
    %v133 = vsel %vm117, 1, 0
    %v134 = vsel %vm118, 1, 0
    %v135 = vsel %vm119, 1, 0
    %v136 = vcvt.s32.f32 %v132
    %v137 = vcvt.s32.f32 %v133
    %v138 = vcvt.s32.f32 %v134
    %v139 = vcvt.s32.f32 %v135
    %v140 = vpack.c.bf16 %v137, %v136
    %v141 = vpack.c.bf16 %v139, %v138
    %v142 = vpack.c.bf16 %v78, %v77
    %v143 = vpack.c.bf16 %v80, %v79
    %v144 = vpack.c.bf16 %v82, %v81
    %v145 = vpack.c.bf16 %v84, %v83
    %vm146 = vcmask 490496
    %v148 = vsel %vm146, %v140, 0
    %v151 = vsel %vm146, %v141, 0
    %vm153 = vcmask 1045504
    %v155 = vsel %vm153, %v145, 0
    %157 = vmatprep.subr.bf16.mxu0 0
    %158 = vmatpush1.bf16.msra.mxu0 %v142
    %159 = vmatprep.subr.bf16.mxu0 0
    %160 = vmatpush1.bf16.msra.mxu0 %v143
    %161 = vmatprep.subr.bf16.mxu0 0
    %162 = vmatpush1.bf16.msra.mxu0 %v144
    %163 = vmatprep.subr.bf16.mxu0 0
    %164 = vmatpush1.bf16.msra.mxu0 %v155
    %165 = vmatprep.subr.bf16.mxu0 0
    %166 = vmatpush1.bf16.msra.mxu0 0
    %167 = vmatprep.subr.bf16.mxu0 0
    %168 = vmatpush1.bf16.msra.mxu0 0
    %169 = vmatprep.subr.bf16.mxu0 0
    %170 = vmatpush1.bf16.msra.mxu0 0
    %171 = vmatprep.subr.bf16.mxu0 0
    %172 = vmatpush1.bf16.msra.mxu0 0
    %173 = vmatprep.subr.bf16.mxu0 0
    %174 = vmatpush1.bf16.msra.mxu0 0
    %175 = vmatprep.subr.bf16.mxu0 0
    %176 = vmatpush1.bf16.msra.mxu0 0
    %177 = vmatprep.subr.bf16.mxu0 0
    %178 = vmatpush1.bf16.msra.mxu0 0
    %179 = vmatprep.subr.bf16.mxu0 0
    %180 = vmatpush1.bf16.msra.mxu0 0
    %181 = vmatprep.subr.bf16.mxu0 0
    %182 = vmatpush1.bf16.msra.mxu0 0
    %183 = vmatprep.subr.bf16.mxu0 0
    %184 = vmatpush1.bf16.msra.mxu0 0
    %185 = vmatprep.subr.bf16.mxu0 0
    %186 = vmatpush1.bf16.msra.mxu0 0
    %187 = vmatprep.subr.bf16.mxu0 0
    %188 = vmatpush1.bf16.msra.mxu0 0
    %189 = vmatprep.mubr.bf16.mxu0 0
    %190 = vmatmul.mubr.bf16.gmra.mrb[0].mxu0 %v148
    %v191 = vpop.f32.mrb[0].mxu0
    %v192 = vadd.f32 0.0, %v191
    %v193 = vpop.f32.mrb[0].mxu0
    %v194 = vpop.f32.mrb[0].mxu0
    %v195 = vadd.f32 0.0, %v194
    %v196 = vpop.f32.mrb[0].mxu0
    %197 = vmatprep.mubr.bf16.mxu0 0
    %198 = vmatmul.mubr.bf16.gmra.mrb[0].mxu0 %v151
    %v199 = vpop.f32.mrb[0].mxu0
    %v200 = vadd.f32 0.0, %v199
    %v201 = vpop.f32.mrb[0].mxu0
    %v202 = vpop.f32.mrb[0].mxu0
    %v203 = vadd.f32 0.0, %v202
    %v204 = vpop.f32.mrb[0].mxu0
    %205 = vdwg.mxu0
    %v206 = vsel %vm128, 1, 0
    %v207 = vsel %vm129, 1, 0
    %v208 = vsel %vm130, 1, 0
    %v209 = vsel %vm131, 1, 0
    %v210 = vcvt.s32.f32 %v206
    %v211 = vcvt.s32.f32 %v207
    %v212 = vcvt.s32.f32 %v208
    %v213 = vcvt.s32.f32 %v209
    %v214 = vpack.c.bf16 %v211, %v210
    %v215 = vpack.c.bf16 %v213, %v212
    %v217 = vsel %vm146, %v214, 0
    %v220 = vsel %vm146, %v215, 0
    %222 = vmatprep.subr.bf16.mxu0 0
    %223 = vmatpush1.bf16.msra.mxu0 %v142
    %224 = vmatprep.subr.bf16.mxu0 0
    %225 = vmatpush1.bf16.msra.mxu0 %v143
    %226 = vmatprep.subr.bf16.mxu0 0
    %227 = vmatpush1.bf16.msra.mxu0 %v144
    %228 = vmatprep.subr.bf16.mxu0 0
    %229 = vmatpush1.bf16.msra.mxu0 %v155
    %230 = vmatprep.subr.bf16.mxu0 0
    %231 = vmatpush1.bf16.msra.mxu0 0
    %232 = vmatprep.subr.bf16.mxu0 0
    %233 = vmatpush1.bf16.msra.mxu0 0
    %234 = vmatprep.subr.bf16.mxu0 0
    %235 = vmatpush1.bf16.msra.mxu0 0
    %236 = vmatprep.subr.bf16.mxu0 0
    %237 = vmatpush1.bf16.msra.mxu0 0
    %238 = vmatprep.subr.bf16.mxu0 0
    %239 = vmatpush1.bf16.msra.mxu0 0
    %240 = vmatprep.subr.bf16.mxu0 0
    %241 = vmatpush1.bf16.msra.mxu0 0
    %242 = vmatprep.subr.bf16.mxu0 0
    %243 = vmatpush1.bf16.msra.mxu0 0
    %244 = vmatprep.subr.bf16.mxu0 0
    %245 = vmatpush1.bf16.msra.mxu0 0
    %246 = vmatprep.subr.bf16.mxu0 0
    %247 = vmatpush1.bf16.msra.mxu0 0
    %248 = vmatprep.subr.bf16.mxu0 0
    %249 = vmatpush1.bf16.msra.mxu0 0
    %250 = vmatprep.subr.bf16.mxu0 0
    %251 = vmatpush1.bf16.msra.mxu0 0
    %252 = vmatprep.subr.bf16.mxu0 0
    %253 = vmatpush1.bf16.msra.mxu0 0
    %254 = vmatprep.mubr.bf16.mxu0 0
    %255 = vmatmul.mubr.bf16.gmra.mrb[0].mxu0 %v217
    %v256 = vpop.f32.mrb[0].mxu0
    %v257 = vadd.f32 0.0, %v256
    %v258 = vpop.f32.mrb[0].mxu0
    %v259 = vpop.f32.mrb[0].mxu0
    %v260 = vadd.f32 0.0, %v259
    %v261 = vpop.f32.mrb[0].mxu0
    %262 = vmatprep.mubr.bf16.mxu0 0
    %263 = vmatmul.mubr.bf16.gmra.mrb[0].mxu0 %v220
    %v264 = vpop.f32.mrb[0].mxu0
    %v265 = vadd.f32 0.0, %v264
    %v266 = vpop.f32.mrb[0].mxu0
    %v267 = vpop.f32.mrb[0].mxu0
    %v268 = vadd.f32 0.0, %v267
    %v269 = vpop.f32.mrb[0].mxu0
    %270 = vdwg.mxu0
    %275 = vrot.lane.b32.xlu0 %v257, 60
    %v276 = vpop.permute.xlu0 %275
    %277 = vrot.lane.b32.xlu0 %v260, 60
    %v278 = vpop.permute.xlu0 %277
    %279 = vrot.lane.b32.xlu0 %v265, 60
    %v280 = vpop.permute.xlu0 %279
    %281 = vrot.lane.b32.xlu0 %v268, 60
    %v282 = vpop.permute.xlu0 %281
    %v287 = vsel %vm146, %v192, %v276
    %v288 = vsel %vm146, %v195, %v278
    %v289 = vsel %vm146, %v200, %v280
    %v290 = vsel %vm146, %v203, %v282
    %v291 = vld [vmem:[%s2] sm:$0xf]
    %v292 = vld [vmem:[%s2 + $0x8] sm:$0xf]
    %v293 = vld [vmem:[%s2 + $0x10] sm:$0xf]
    %v294 = vld [vmem:[%s2 + $0x18] sm:$0xf]
    %v295 = vld [vmem:[%s2 + $0x20] sm:$0xf]
    %v296 = vld [vmem:[%s2 + $0x28] sm:$0xf]
    %v297 = vld [vmem:[%s2 + $0x30] sm:$0xf]
    %v298 = vld [vmem:[%s2 + $0x38] sm:$0xf]
    %v299 = vld [vmem:[%s2 + $0x40] sm:$0xf]
    %v300 = vld [vmem:[%s2 + $0x48] sm:$0xf]
    %v301 = vld [vmem:[%s2 + $0x50] sm:$0xf]
    %v302 = vld [vmem:[%s2 + $0x58] sm:$0xf]
    %v303 = vld [vmem:[%s2 + $0x60] sm:$0xf]
    %v304 = vld [vmem:[%s2 + $0x68] sm:$0xf]
    %v305 = vld [vmem:[%s2 + $0x70] sm:$0xf]
    %v306 = vpack.c.bf16 %v288, %v287
    %v307 = vpack.c.bf16 %v290, %v289
    %v308 = vld [vmem:[%s3 + $0x2] ss:$0 sm:$0xff]
    %v324 = vunpack.c.l.b16 %v291
    %v325 = vunpack.c.l.b16 %v292
    %v326 = vunpack.c.l.b16 %v293
    %v327 = vunpack.c.l.b16 %v294
    %v328 = vunpack.c.l.b16 %v295
    %v329 = vunpack.c.l.b16 %v296
    %v330 = vunpack.c.l.b16 %v297
    %v331 = vunpack.c.l.b16 %v298
    %v332 = vunpack.c.l.b16 %v299
    %v333 = vunpack.c.l.b16 %v300
    %v334 = vunpack.c.l.b16 %v301
    %v335 = vunpack.c.l.b16 %v302
    %v336 = vunpack.c.l.b16 %v303
    %v337 = vunpack.c.l.b16 %v304
    %v338 = vunpack.c.l.b16 %v305
    %v339 = vpack.c.b16 %v325, %v324
    %v340 = vpack.c.b16 %v327, %v326
    %v341 = vpack.c.b16 %v329, %v328
    %v342 = vpack.c.b16 %v331, %v330
    %v343 = vpack.c.b16 %v333, %v332
    %v344 = vpack.c.b16 %v335, %v334
    %v345 = vpack.c.b16 %v337, %v336
    %v346 = vpack.c.b16 %v338, %v338
    %vm354 = vcmask 982016
    %v356 = vsel %vm354, %v306, 0
    %v359 = vsel %vm354, %v307, 0
    %vm361 = vcmask 1043456
    %v363 = vsel %vm361, %v346, 0
    %365 = vmatprep.subr.bf16.mxu0 0
    %366 = vmatpush1.bf16.msra.mxu0 %v339
    %367 = vmatprep.subr.bf16.mxu0 0
    %368 = vmatpush1.bf16.msra.mxu0 %v340
    %369 = vmatprep.subr.bf16.mxu0 0
    %370 = vmatpush1.bf16.msra.mxu0 %v341
    %371 = vmatprep.subr.bf16.mxu0 0
    %372 = vmatpush1.bf16.msra.mxu0 %v342
    %373 = vmatprep.subr.bf16.mxu0 0
    %374 = vmatpush1.bf16.msra.mxu0 %v343
    %375 = vmatprep.subr.bf16.mxu0 0
    %376 = vmatpush1.bf16.msra.mxu0 %v344
    %377 = vmatprep.subr.bf16.mxu0 0
    %378 = vmatpush1.bf16.msra.mxu0 %v345
    %379 = vmatprep.subr.bf16.mxu0 0
    %380 = vmatpush1.bf16.msra.mxu0 %v363
    %381 = vmatprep.subr.bf16.mxu0 0
    %382 = vmatpush1.bf16.msra.mxu0 0
    %383 = vmatprep.subr.bf16.mxu0 0
    %384 = vmatpush1.bf16.msra.mxu0 0
    %385 = vmatprep.subr.bf16.mxu0 0
    %386 = vmatpush1.bf16.msra.mxu0 0
    %387 = vmatprep.subr.bf16.mxu0 0
    %388 = vmatpush1.bf16.msra.mxu0 0
    %389 = vmatprep.subr.bf16.mxu0 0
    %390 = vmatpush1.bf16.msra.mxu0 0
    %391 = vmatprep.subr.bf16.mxu0 0
    %392 = vmatpush1.bf16.msra.mxu0 0
    %393 = vmatprep.subr.bf16.mxu0 0
    %394 = vmatpush1.bf16.msra.mxu0 0
    %395 = vmatprep.subr.bf16.mxu0 0
    %396 = vmatpush1.bf16.msra.mxu0 0
    %397 = vmatprep.mubr.bf16.mxu0 0
    %398 = vmatmul.mubr.bf16.gmra.mrb[0].mxu0 %v356
    %v399 = vpop.f32.mrb[0].mxu0
    %v400 = vadd.f32 %v308, %v399
    %v401 = vpop.f32.mrb[0].mxu0
    %v402 = vpop.f32.mrb[0].mxu0
    %v403 = vadd.f32 %v308, %v402
    %v404 = vpop.f32.mrb[0].mxu0
    %405 = vmatprep.mubr.bf16.mxu0 0
    %406 = vmatmul.mubr.bf16.gmra.mrb[0].mxu0 %v359
    %v407 = vpop.f32.mrb[0].mxu0
    %v408 = vadd.f32 %v308, %v407
    %v409 = vpop.f32.mrb[0].mxu0
    %v410 = vpop.f32.mrb[0].mxu0
    %v411 = vadd.f32 %v308, %v410
    %v412 = vpop.f32.mrb[0].mxu0
    %413 = vdwg.mxu0
    %vm418 = vcmask 1041408
    %v419 = vrot.slane %v400, 6
    %v420 = vrot.slane %v403, 6
    %v421 = vsel %vm418, %v419, %v420
    %v422 = vrot.slane %v408, 6
    %v423 = vsel %vm418, %v420, %v422
    %v424 = vrot.slane %v411, 6
    %v425 = vsel %vm418, %v422, %v424
    %v431 = vsel %vm418, 0.0, %v419
    %433 = vrot.lane.b32.xlu0 %v400, 100
    %v434 = vpop.permute.xlu0 %433
    %435 = vrot.lane.b32.xlu0 %v403, 100
    %v436 = vpop.permute.xlu0 %435
    %437 = vrot.lane.b32.xlu0 %v408, 100
    %v438 = vpop.permute.xlu0 %437
    %439 = vrot.lane.b32.xlu0 %v411, 100
    %v440 = vpop.permute.xlu0 %439
    %441 = vrot.lane.b32.xlu0 0.0, 100
    %v442 = vpop.permute.xlu0 %441
    %vm448 = vcmask 818176
    %v449 = vsel %vm448, %v431, %v434
    %v450 = vsel %vm448, %v421, %v436
    %v451 = vsel %vm448, %v423, %v438
    %v452 = vsel %vm448, %v425, %v440
    %v453 = vsel %vm448, %v424, %v442
    %v454 = vld [vmem:[%s2 + $0x80] sm:$0xf]
    %v455 = vld [vmem:[%s2 + $0x88] sm:$0xf]
    %v456 = vld [vmem:[%s2 + $0x90] sm:$0xf]
    %v457 = vld [vmem:[%s2 + $0x98] sm:$0xf]
    %v458 = vld [vmem:[%s2 + $0xa0] sm:$0xf]
    %v459 = vld [vmem:[%s2 + $0xa8] sm:$0xf]
    %v460 = vld [vmem:[%s2 + $0xb0] sm:$0xf]
    %v461 = vld [vmem:[%s2 + $0xb8] sm:$0xf]
    %v462 = vld [vmem:[%s2 + $0xc0] sm:$0xf]
    %v463 = vld [vmem:[%s2 + $0xc8] sm:$0xf]
    %v464 = vld [vmem:[%s2 + $0xd0] sm:$0xf]
    %v465 = vld [vmem:[%s2 + $0xd8] sm:$0xf]
    %v466 = vld [vmem:[%s2 + $0xe0] sm:$0xf]
    %v467 = vld [vmem:[%s2 + $0xe8] sm:$0xf]
    %v468 = vld [vmem:[%s2 + $0xf0] sm:$0xf]
    %v469 = vld [vmem:[%s2 + $0xf8] sm:$0xf]
    %v470 = vld [vmem:[%s2 + $0x100] sm:$0xf]
    %v471 = vld [vmem:[%s2 + $0x108] sm:$0xf]
    %v472 = vld [vmem:[%s2 + $0x110] sm:$0xf]
    %v473 = vld [vmem:[%s2 + $0x118] sm:$0xf]
    %v474 = vld [vmem:[%s2 + $0x120] sm:$0xf]
    %v475 = vld [vmem:[%s2 + $0x128] sm:$0xf]
    %v476 = vld [vmem:[%s2 + $0x130] sm:$0xf]
    %v477 = vld [vmem:[%s2 + $0x138] sm:$0xf]
    %v478 = vld [vmem:[%s2 + $0x140] sm:$0xf]
    %v479 = vpack.c.bf16 %v450, %v449
    %v480 = vpack.c.bf16 %v436, %v434
    %v481 = vpack.c.bf16 %v452, %v451
    %v482 = vpack.c.bf16 %v440, %v438
    %v483 = vpack.c.bf16 %v453, %v453
    %v484 = vpack.c.bf16 %v442, %v442
    %v485 = vld [vmem:[%s3 + $0x3] ss:$0 sm:$0xff]
    %v511 = vunpack.c.l.b16 %v454
    %v512 = vunpack.c.l.b16 %v455
    %v513 = vunpack.c.l.b16 %v456
    %v514 = vunpack.c.l.b16 %v457
    %v515 = vunpack.c.l.b16 %v458
    %v516 = vunpack.c.l.b16 %v459
    %v517 = vunpack.c.l.b16 %v460
    %v518 = vunpack.c.l.b16 %v461
    %v519 = vunpack.c.l.b16 %v462
    %v520 = vunpack.c.l.b16 %v463
    %v521 = vunpack.c.l.b16 %v464
    %v522 = vunpack.c.l.b16 %v465
    %v523 = vunpack.c.l.b16 %v466
    %v524 = vunpack.c.l.b16 %v467
    %v525 = vunpack.c.l.b16 %v468
    %v526 = vunpack.c.l.b16 %v469
    %v527 = vunpack.c.l.b16 %v470
    %v528 = vunpack.c.l.b16 %v471
    %v529 = vunpack.c.l.b16 %v472
    %v530 = vunpack.c.l.b16 %v473
    %v531 = vunpack.c.l.b16 %v474
    %v532 = vunpack.c.l.b16 %v475
    %v533 = vunpack.c.l.b16 %v476
    %v534 = vunpack.c.l.b16 %v477
    %v535 = vunpack.c.l.b16 %v478
    %v536 = vpack.c.b16 %v512, %v511
    %v537 = vpack.c.b16 %v514, %v513
    %v538 = vpack.c.b16 %v516, %v515
    %v539 = vpack.c.b16 %v518, %v517
    %v540 = vpack.c.b16 %v520, %v519
    %v541 = vpack.c.b16 %v522, %v521
    %v542 = vpack.c.b16 %v524, %v523
    %v543 = vpack.c.b16 %v526, %v525
    %v544 = vpack.c.b16 %v528, %v527
    %v545 = vpack.c.b16 %v530, %v529
    %v546 = vpack.c.b16 %v532, %v531
    %v547 = vpack.c.b16 %v534, %v533
    %v548 = vpack.c.b16 %v535, %v535
    %vm561 = vcmask 588800
    %v563 = vsel %vm561, %v480, 0
    %v566 = vsel %vm561, %v482, 0
    %v569 = vsel %vm561, %v484, 0
    %v572 = vsel %vm361, %v548, 0
    %574 = vmatprep.subr.bf16.mxu0 0
    %575 = vmatpush1.bf16.msra.mxu0 %v536
    %576 = vmatprep.subr.bf16.mxu0 0
    %577 = vmatpush1.bf16.msra.mxu0 %v537
    %578 = vmatprep.subr.bf16.mxu0 0
    %579 = vmatpush1.bf16.msra.mxu0 %v538
    %580 = vmatprep.subr.bf16.mxu0 0
    %581 = vmatpush1.bf16.msra.mxu0 %v539
    %582 = vmatprep.subr.bf16.mxu0 0
    %583 = vmatpush1.bf16.msra.mxu0 %v540
    %584 = vmatprep.subr.bf16.mxu0 0
    %585 = vmatpush1.bf16.msra.mxu0 %v541
    %586 = vmatprep.subr.bf16.mxu0 0
    %587 = vmatpush1.bf16.msra.mxu0 %v542
    %588 = vmatprep.subr.bf16.mxu0 0
    %589 = vmatpush1.bf16.msra.mxu0 %v543
    %590 = vmatprep.subr.bf16.mxu0 0
    %591 = vmatpush1.bf16.msra.mxu0 %v544
    %592 = vmatprep.subr.bf16.mxu0 0
    %593 = vmatpush1.bf16.msra.mxu0 %v545
    %594 = vmatprep.subr.bf16.mxu0 0
    %595 = vmatpush1.bf16.msra.mxu0 %v546
    %596 = vmatprep.subr.bf16.mxu0 0
    %597 = vmatpush1.bf16.msra.mxu0 %v547
    %598 = vmatprep.subr.bf16.mxu0 0
    %599 = vmatpush1.bf16.msra.mxu0 %v572
    %600 = vmatprep.subr.bf16.mxu0 0
    %601 = vmatpush1.bf16.msra.mxu0 0
    %602 = vmatprep.subr.bf16.mxu0 0
    %603 = vmatpush1.bf16.msra.mxu0 0
    %604 = vmatprep.subr.bf16.mxu0 0
    %605 = vmatpush1.bf16.msra.mxu0 0
    %606 = vmatprep.mubr.bf16.mxu0 %v563
    %607 = vmatmul.mubr.bf16.gmra.mrb[0].mxu0 %v479
    %v608 = vpop.f32.mrb[0].mxu0
    %v609 = vadd.f32 %v485, %v608
    %v610 = vpop.f32.mrb[0].mxu0
    %v611 = vpop.f32.mrb[0].mxu0
    %v612 = vadd.f32 %v485, %v611
    %v613 = vpop.f32.mrb[0].mxu0
    %614 = vmatprep.mubr.bf16.mxu0 %v566
    %615 = vmatmul.mubr.bf16.gmra.mrb[0].mxu0 %v481
    %v616 = vpop.f32.mrb[0].mxu0
    %v617 = vadd.f32 %v485, %v616
    %v618 = vpop.f32.mrb[0].mxu0
    %v619 = vpop.f32.mrb[0].mxu0
    %v620 = vadd.f32 %v485, %v619
    %v621 = vpop.f32.mrb[0].mxu0
    %622 = vmatprep.mubr.bf16.mxu0 %v569
    %623 = vmatmul.mubr.bf16.gmra.mrb[0].mxu0 %v483
    %v624 = vpop.f32.mrb[0].mxu0
    %v625 = vadd.f32 %v485, %v624
    %v626 = vpop.f32.mrb[0].mxu0
    %v627 = vpop.f32.mrb[0].mxu0
    %v628 = vpop.f32.mrb[0].mxu0
    %629 = vdwg.mxu0
    %v635 = vrot.slane %v609, 6
    %v636 = vrot.slane %v612, 6
    %v637 = vsel %vm418, %v635, %v636
    %v638 = vrot.slane %v617, 6
    %v639 = vsel %vm418, %v636, %v638
    %v640 = vrot.slane %v620, 6
    %v641 = vsel %vm418, %v638, %v640
    %v642 = vrot.slane %v625, 6
    %v643 = vsel %vm418, %v640, %v642
    %v649 = vsel %vm418, 0.0, %v635
    %v650 = vsel %vm418, %v625, 0.0
    %652 = vrot.lane.b32.xlu0 %v609, 120
    %v653 = vpop.permute.xlu0 %652
    %654 = vrot.lane.b32.xlu0 %v612, 120
    %v655 = vpop.permute.xlu0 %654
    %656 = vrot.lane.b32.xlu0 %v617, 120
    %v657 = vpop.permute.xlu0 %656
    %658 = vrot.lane.b32.xlu0 %v620, 120
    %v659 = vpop.permute.xlu0 %658
    %660 = vrot.lane.b32.xlu0 %v650, 120
    %v661 = vpop.permute.xlu0 %660
    %v667 = vsel %vm354, %v649, %v653
    %v668 = vsel %vm354, %v637, %v655
    %v669 = vsel %vm354, %v639, %v657
    %v670 = vsel %vm354, %v641, %v659
    %v671 = vsel %vm354, %v643, %v661
    %v672 = vld [vmem:[%s2 + $0x150] sm:$0xff]
    %v673 = vld [vmem:[%s2 + $0x158] sm:$0xff]
    %v674 = vld [vmem:[%s2 + $0x160] sm:$0xff]
    %v675 = vld [vmem:[%s2 + $0x168] sm:$0xff]
    %v676 = vld [vmem:[%s2 + $0x170] sm:$0xff]
    %v677 = vld [vmem:[%s2 + $0x178] sm:$0xff]
    %v678 = vld [vmem:[%s2 + $0x180] sm:$0xff]
    %v679 = vld [vmem:[%s2 + $0x188] sm:$0xff]
    %v680 = vld [vmem:[%s2 + $0x190] sm:$0xff]
    %v681 = vld [vmem:[%s2 + $0x198] sm:$0xff]
    %v682 = vld [vmem:[%s2 + $0x1a0] sm:$0xff]
    %v683 = vld [vmem:[%s2 + $0x1a8] sm:$0xff]
    %v684 = vld [vmem:[%s2 + $0x1b0] sm:$0xff]
    %v685 = vld [vmem:[%s2 + $0x1b8] sm:$0xff]
    %v686 = vld [vmem:[%s2 + $0x1c0] sm:$0xff]
    %v687 = vld [vmem:[%s2 + $0x1c8] sm:$0xff]
    %v688 = vld [vmem:[%s2 + $0x1d0] sm:$0xff]
    %v689 = vld [vmem:[%s2 + $0x1d8] sm:$0xff]
    %v690 = vld [vmem:[%s2 + $0x1e0] sm:$0xff]
    %v691 = vld [vmem:[%s2 + $0x1e8] sm:$0xff]
    %v692 = vld [vmem:[%s2 + $0x1f0] sm:$0xff]
    %v693 = vld [vmem:[%s2 + $0x1f8] sm:$0xff]
    %v694 = vld [vmem:[%s2 + $0x200] sm:$0xff]
    %v695 = vld [vmem:[%s2 + $0x208] sm:$0xff]
    %v696 = vld [vmem:[%s2 + $0x210] sm:$0xff]
    %v697 = vld [vmem:[%s2 + $0x218] sm:$0xff]
    %v698 = vld [vmem:[%s2 + $0x220] sm:$0xff]
    %v699 = vld [vmem:[%s2 + $0x228] sm:$0xff]
    %v700 = vld [vmem:[%s2 + $0x230] sm:$0xff]
    %v701 = vld [vmem:[%s2 + $0x238] sm:$0xff]
    %v702 = vpack.c.bf16 %v668, %v667
    %v703 = vpack.c.bf16 %v655, %v653
    %v704 = vpack.c.bf16 %v670, %v669
    %v705 = vpack.c.bf16 %v659, %v657
    %v706 = vpack.c.bf16 %v671, %v671
    %v707 = vpack.c.bf16 %v661, %v661
    %s708 = scalar_lea.vmem %s3, 4
    %v709 = vld [vmem:[%s708] ss:$8 sm:$0x3]
    %v711 = vlaneseq
    %v712 = vshrl.u32 %v711, 7
    %v713 = vsub.s32 0, %v712
    %v714 = vrot.slane %v709, %v713
    %v715 = vlaneseq
    %v716 = vshrl.u32 %v715, 7
    %v717 = vsub.s32 1, %v716
    %v718 = vrot.slane %v709, %v717
    %v751 = vunpack.c.l.b16 %v672
    %v752 = vunpack.c.h.b16 %v672
    %v753 = vunpack.c.l.b16 %v673
    %v754 = vunpack.c.h.b16 %v673
    %v755 = vunpack.c.l.b16 %v674
    %v756 = vunpack.c.h.b16 %v674
    %v757 = vunpack.c.l.b16 %v675
    %v758 = vunpack.c.h.b16 %v675
    %v759 = vunpack.c.l.b16 %v676
    %v760 = vunpack.c.h.b16 %v676
    %v761 = vunpack.c.l.b16 %v677
    %v762 = vunpack.c.h.b16 %v677
    %v763 = vunpack.c.l.b16 %v678
    %v764 = vunpack.c.h.b16 %v678
    %v765 = vunpack.c.l.b16 %v679
    %v766 = vunpack.c.h.b16 %v679
    %v767 = vunpack.c.l.b16 %v680
    %v768 = vunpack.c.h.b16 %v680
    %v769 = vunpack.c.l.b16 %v681
    %v770 = vunpack.c.h.b16 %v681
    %v771 = vunpack.c.l.b16 %v682
    %v772 = vunpack.c.h.b16 %v682
    %v773 = vunpack.c.l.b16 %v683
    %v774 = vunpack.c.h.b16 %v683
    %v775 = vunpack.c.l.b16 %v684
    %v776 = vunpack.c.h.b16 %v684
    %v777 = vunpack.c.l.b16 %v685
    %v778 = vunpack.c.h.b16 %v685
    %v779 = vunpack.c.l.b16 %v686
    %v780 = vunpack.c.h.b16 %v686
    %v781 = vunpack.c.l.b16 %v687
    %v782 = vunpack.c.h.b16 %v687
    %v783 = vunpack.c.l.b16 %v688
    %v784 = vunpack.c.h.b16 %v688
    %v785 = vunpack.c.l.b16 %v689
    %v786 = vunpack.c.h.b16 %v689
    %v787 = vunpack.c.l.b16 %v690
    %v788 = vunpack.c.h.b16 %v690
    %v789 = vunpack.c.l.b16 %v691
    %v790 = vunpack.c.h.b16 %v691
    %v791 = vunpack.c.l.b16 %v692
    %v792 = vunpack.c.h.b16 %v692
    %v793 = vunpack.c.l.b16 %v693
    %v794 = vunpack.c.h.b16 %v693
    %v795 = vunpack.c.l.b16 %v694
    %v796 = vunpack.c.h.b16 %v694
    %v797 = vunpack.c.l.b16 %v695
    %v798 = vunpack.c.h.b16 %v695
    %v799 = vunpack.c.l.b16 %v696
    %v800 = vunpack.c.h.b16 %v696
    %v801 = vunpack.c.l.b16 %v697
    %v802 = vunpack.c.h.b16 %v697
    %v803 = vunpack.c.l.b16 %v698
    %v804 = vunpack.c.h.b16 %v698
    %v805 = vunpack.c.l.b16 %v699
    %v806 = vunpack.c.h.b16 %v699
    %v807 = vunpack.c.l.b16 %v700
    %v808 = vunpack.c.h.b16 %v700
    %v809 = vunpack.c.l.b16 %v701
    %v810 = vunpack.c.h.b16 %v701
    %v811 = vpack.c.b16 %v753, %v751
    %v812 = vpack.c.b16 %v754, %v752
    %v813 = vpack.c.b16 %v757, %v755
    %v814 = vpack.c.b16 %v758, %v756
    %v815 = vpack.c.b16 %v761, %v759
    %v816 = vpack.c.b16 %v762, %v760
    %v817 = vpack.c.b16 %v765, %v763
    %v818 = vpack.c.b16 %v766, %v764
    %v819 = vpack.c.b16 %v769, %v767
    %v820 = vpack.c.b16 %v770, %v768
    %v821 = vpack.c.b16 %v773, %v771
    %v822 = vpack.c.b16 %v774, %v772
    %v823 = vpack.c.b16 %v777, %v775
    %v824 = vpack.c.b16 %v778, %v776
    %v825 = vpack.c.b16 %v781, %v779
    %v826 = vpack.c.b16 %v782, %v780
    %v827 = vpack.c.b16 %v785, %v783
    %v828 = vpack.c.b16 %v786, %v784
    %v829 = vpack.c.b16 %v789, %v787
    %v830 = vpack.c.b16 %v790, %v788
    %v831 = vpack.c.b16 %v793, %v791
    %v832 = vpack.c.b16 %v794, %v792
    %v833 = vpack.c.b16 %v797, %v795
    %v834 = vpack.c.b16 %v798, %v796
    %v835 = vpack.c.b16 %v801, %v799
    %v836 = vpack.c.b16 %v802, %v800
    %v837 = vpack.c.b16 %v805, %v803
    %v838 = vpack.c.b16 %v806, %v804
    %v839 = vpack.c.b16 %v809, %v807
    %v840 = vpack.c.b16 %v810, %v808
    %vm871 = vcmask 916480
    %v873 = vsel %vm871, %v703, 0
    %v876 = vsel %vm871, %v705, 0
    %v879 = vsel %vm871, %v707, 0
    %881 = vmatprep.subr.bf16.mxu0 %v812
    %882 = vmatpush1.bf16.msra.mxu0 %v811
    %883 = vmatprep.subr.bf16.mxu0 %v814
    %884 = vmatpush1.bf16.msra.mxu0 %v813
    %885 = vmatprep.subr.bf16.mxu0 %v816
    %886 = vmatpush1.bf16.msra.mxu0 %v815
    %887 = vmatprep.subr.bf16.mxu0 %v818
    %888 = vmatpush1.bf16.msra.mxu0 %v817
    %889 = vmatprep.subr.bf16.mxu0 %v820
    %890 = vmatpush1.bf16.msra.mxu0 %v819
    %891 = vmatprep.subr.bf16.mxu0 %v822
    %892 = vmatpush1.bf16.msra.mxu0 %v821
    %893 = vmatprep.subr.bf16.mxu0 %v824
    %894 = vmatpush1.bf16.msra.mxu0 %v823
    %895 = vmatprep.subr.bf16.mxu0 %v826
    %896 = vmatpush1.bf16.msra.mxu0 %v825
    %897 = vmatprep.subr.bf16.mxu0 %v828
    %898 = vmatpush1.bf16.msra.mxu0 %v827
    %899 = vmatprep.subr.bf16.mxu0 %v830
    %900 = vmatpush1.bf16.msra.mxu0 %v829
    %901 = vmatprep.subr.bf16.mxu0 %v832
    %902 = vmatpush1.bf16.msra.mxu0 %v831
    %903 = vmatprep.subr.bf16.mxu0 %v834
    %904 = vmatpush1.bf16.msra.mxu0 %v833
    %905 = vmatprep.subr.bf16.mxu0 %v836
    %906 = vmatpush1.bf16.msra.mxu0 %v835
    %907 = vmatprep.subr.bf16.mxu0 %v838
    %908 = vmatpush1.bf16.msra.mxu0 %v837
    %909 = vmatprep.subr.bf16.mxu0 %v840
    %910 = vmatpush1.bf16.msra.mxu0 %v839
    %911 = vmatprep.subr.bf16.mxu0 0
    %912 = vmatpush1.bf16.msra.mxu0 0
    %913 = vmatprep.mubr.bf16.mxu0 %v873
    %914 = vmatmul.mubr.bf16.gmra.mrb[0].mxu0 %v702
    %v915 = vpop.f32.mrb[0].mxu0
    %v916 = vadd.f32 %v714, %v915
    %v917 = vpop.f32.mrb[0].mxu0
    %v918 = vadd.f32 %v718, %v917
    %v919 = vpop.f32.mrb[0].mxu0
    %v920 = vadd.f32 %v714, %v919
    %v921 = vpop.f32.mrb[0].mxu0
    %v922 = vadd.f32 %v718, %v921
    %923 = vmatprep.mubr.bf16.mxu0 %v876
    %924 = vmatmul.mubr.bf16.gmra.mrb[0].mxu0 %v704
    %v925 = vpop.f32.mrb[0].mxu0
    %v926 = vadd.f32 %v714, %v925
    %v927 = vpop.f32.mrb[0].mxu0
    %v928 = vadd.f32 %v718, %v927
    %v929 = vpop.f32.mrb[0].mxu0
    %v930 = vadd.f32 %v714, %v929
    %v931 = vpop.f32.mrb[0].mxu0
    %v932 = vadd.f32 %v718, %v931
    %933 = vmatprep.mubr.bf16.mxu0 %v879
    %934 = vmatmul.mubr.bf16.gmra.mrb[0].mxu0 %v706
    %v935 = vpop.f32.mrb[0].mxu0
    %v936 = vadd.f32 %v714, %v935
    %v937 = vpop.f32.mrb[0].mxu0
    %v938 = vadd.f32 %v718, %v937
    %v939 = vpop.f32.mrb[0].mxu0
    %v940 = vpop.f32.mrb[0].mxu0
    %941 = vdwg.mxu0
    %v942 = vadd.s32 %v96, 1
    %v943 = vadd.s32 %v97, 1
    %v944 = vadd.s32 %v98, 1
    %v945 = vmul.u32 %v942, 2
    %v946 = vmul.u32 %v943, 2
    %v947 = vmul.u32 %v944, 2
    %v948 = vadd.s32 %v945, %v108
    %v949 = vadd.s32 %v946, %v109
    %v950 = vadd.s32 %v947, %v110
    %vm951 = vcmp.eq.s32.totalorder %v91, %v948
    %vm952 = vcmp.eq.s32.totalorder %v91, %v949
    %vm953 = vcmp.eq.s32.totalorder %v91, %v950
    %v954 = vpack.c.bf16 %v212, %v212
    %v955 = vpack.c.bf16 %v920, %v916
    %v956 = vpack.c.bf16 %v922, %v918
    %v957 = vpack.c.bf16 %v930, %v926
    %v958 = vpack.c.bf16 %v932, %v928
    %v959 = vpack.c.bf16 %v936, %v936
    %v960 = vpack.c.bf16 %v938, %v938
    %vm961 = vcmask 293888
    %v962 = vsel %vm961, %v214, 0
    %v965 = vsel %vm961, %v954, 0
    %v968 = vsel %vm418, %v959, 0
    %v971 = vsel %vm418, %v960, 0
    %973 = vmatprep.subr.bf16.mxu0 %v956
    %974 = vmatpush1.bf16.msra.mxu0 %v955
    %975 = vmatprep.subr.bf16.mxu0 %v958
    %976 = vmatpush1.bf16.msra.mxu0 %v957
    %977 = vmatprep.subr.bf16.mxu0 %v971
    %978 = vmatpush1.bf16.msra.mxu0 %v968
    %979 = vmatprep.subr.bf16.mxu0 0
    %980 = vmatpush1.bf16.msra.mxu0 0
    %981 = vmatprep.subr.bf16.mxu0 0
    %982 = vmatpush1.bf16.msra.mxu0 0
    %983 = vmatprep.subr.bf16.mxu0 0
    %984 = vmatpush1.bf16.msra.mxu0 0
    %985 = vmatprep.subr.bf16.mxu0 0
    %986 = vmatpush1.bf16.msra.mxu0 0
    %987 = vmatprep.subr.bf16.mxu0 0
    %988 = vmatpush1.bf16.msra.mxu0 0
    %989 = vmatprep.subr.bf16.mxu0 0
    %990 = vmatpush1.bf16.msra.mxu0 0
    %991 = vmatprep.subr.bf16.mxu0 0
    %992 = vmatpush1.bf16.msra.mxu0 0
    %993 = vmatprep.subr.bf16.mxu0 0
    %994 = vmatpush1.bf16.msra.mxu0 0
    %995 = vmatprep.subr.bf16.mxu0 0
    %996 = vmatpush1.bf16.msra.mxu0 0
    %997 = vmatprep.subr.bf16.mxu0 0
    %998 = vmatpush1.bf16.msra.mxu0 0
    %999 = vmatprep.subr.bf16.mxu0 0
    %1000 = vmatpush1.bf16.msra.mxu0 0
    %1001 = vmatprep.subr.bf16.mxu0 0
    %1002 = vmatpush1.bf16.msra.mxu0 0
    %1003 = vmatprep.subr.bf16.mxu0 0
    %1004 = vmatpush1.bf16.msra.mxu0 0
    %1005 = vmatprep.mubr.bf16.mxu0 0
    %1006 = vmatmul.mubr.bf16.gmra.mrb[0].mxu0 %v962
    %v1007 = vpop.f32.mrb[0].mxu0
    %v1008 = vadd.f32 0.0, %v1007
    %v1009 = vpop.f32.mrb[0].mxu0
    %v1010 = vadd.f32 0.0, %v1009
    %v1011 = vpop.f32.mrb[0].mxu0
    %v1012 = vadd.f32 0.0, %v1011
    %v1013 = vpop.f32.mrb[0].mxu0
    %v1014 = vadd.f32 0.0, %v1013
    %1015 = vmatprep.mubr.bf16.mxu0 0
    %1016 = vmatmul.mubr.bf16.gmra.mrb[0].mxu0 %v965
    %v1017 = vpop.f32.mrb[0].mxu0
    %v1018 = vadd.f32 0.0, %v1017
    %v1019 = vpop.f32.mrb[0].mxu0
    %v1020 = vadd.f32 0.0, %v1019
    %v1021 = vpop.f32.mrb[0].mxu0
    %v1022 = vpop.f32.mrb[0].mxu0
    %1023 = vdwg.mxu0
    %v1024 = vsel %vm951, 1, 0
    %v1025 = vsel %vm952, 1, 0
    %v1026 = vsel %vm953, 1, 0
    %v1027 = vcvt.s32.f32 %v1024
    %v1028 = vcvt.s32.f32 %v1025
    %v1029 = vcvt.s32.f32 %v1026
    %v1030 = vpack.c.bf16 %v1028, %v1027
    %v1031 = vpack.c.bf16 %v1029, %v1029
    %v1033 = vsel %vm961, %v1030, 0
    %v1036 = vsel %vm961, %v1031, 0
    %1038 = vmatprep.subr.bf16.mxu0 %v956
    %1039 = vmatpush1.bf16.msra.mxu0 %v955
    %1040 = vmatprep.subr.bf16.mxu0 %v958
    %1041 = vmatpush1.bf16.msra.mxu0 %v957
    %1042 = vmatprep.subr.bf16.mxu0 %v971
    %1043 = vmatpush1.bf16.msra.mxu0 %v968
    %1044 = vmatprep.subr.bf16.mxu0 0
    %1045 = vmatpush1.bf16.msra.mxu0 0
    %1046 = vmatprep.subr.bf16.mxu0 0
    %1047 = vmatpush1.bf16.msra.mxu0 0
    %1048 = vmatprep.subr.bf16.mxu0 0
    %1049 = vmatpush1.bf16.msra.mxu0 0
    %1050 = vmatprep.subr.bf16.mxu0 0
    %1051 = vmatpush1.bf16.msra.mxu0 0
    %1052 = vmatprep.subr.bf16.mxu0 0
    %1053 = vmatpush1.bf16.msra.mxu0 0
    %1054 = vmatprep.subr.bf16.mxu0 0
    %1055 = vmatpush1.bf16.msra.mxu0 0
    %1056 = vmatprep.subr.bf16.mxu0 0
    %1057 = vmatpush1.bf16.msra.mxu0 0
    %1058 = vmatprep.subr.bf16.mxu0 0
    %1059 = vmatpush1.bf16.msra.mxu0 0
    %1060 = vmatprep.subr.bf16.mxu0 0
    %1061 = vmatpush1.bf16.msra.mxu0 0
    %1062 = vmatprep.subr.bf16.mxu0 0
    %1063 = vmatpush1.bf16.msra.mxu0 0
    %1064 = vmatprep.subr.bf16.mxu0 0
    %1065 = vmatpush1.bf16.msra.mxu0 0
    %1066 = vmatprep.subr.bf16.mxu0 0
    %1067 = vmatpush1.bf16.msra.mxu0 0
    %1068 = vmatprep.subr.bf16.mxu0 0
    %1069 = vmatpush1.bf16.msra.mxu0 0
    %1070 = vmatprep.mubr.bf16.mxu0 0
    %1071 = vmatmul.mubr.bf16.gmra.mrb[0].mxu0 %v1033
    %v1072 = vpop.f32.mrb[0].mxu0
    %v1073 = vadd.f32 0.0, %v1072
    %v1074 = vpop.f32.mrb[0].mxu0
    %v1075 = vadd.f32 0.0, %v1074
    %v1076 = vpop.f32.mrb[0].mxu0
    %v1077 = vadd.f32 0.0, %v1076
    %v1078 = vpop.f32.mrb[0].mxu0
    %v1079 = vadd.f32 0.0, %v1078
    %1080 = vmatprep.mubr.bf16.mxu0 0
    %1081 = vmatmul.mubr.bf16.gmra.mrb[0].mxu0 %v1036
    %v1082 = vpop.f32.mrb[0].mxu0
    %v1083 = vadd.f32 0.0, %v1082
    %v1084 = vpop.f32.mrb[0].mxu0
    %v1085 = vadd.f32 0.0, %v1084
    %v1086 = vpop.f32.mrb[0].mxu0
    %v1087 = vpop.f32.mrb[0].mxu0
    %1088 = vdwg.mxu0
    %v1089 = vmax.f32 %v1008, %v1073
    %v1090 = vmax.f32 %v1010, %v1075
    %v1091 = vmax.f32 %v1012, %v1077
    %v1092 = vmax.f32 %v1014, %v1079
    %v1093 = vmax.f32 %v1018, %v1083
    %v1094 = vmax.f32 %v1020, %v1085
    %v1097 = vrot.slane %v1089, 2
    %v1098 = vrot.slane %v1090, 2
    %1099 = vrot.lane.b32.xlu0 %v1097, 32
    %v1100 = vpop.permute.xlu0 %1099
    %1101 = vrot.lane.b32.xlu0 %v1098, 32
    %v1102 = vpop.permute.xlu0 %1101
    %vm1103 = vcmask 261120
    %v1104 = vsel %vm1103, %v1100, %v1102
    %v1107 = vrot.slane %v1089, 4
    %v1108 = vrot.slane %v1090, 4
    %1109 = vrot.lane.b32.xlu0 %v1107, 64
    %v1110 = vpop.permute.xlu0 %1109
    %1111 = vrot.lane.b32.xlu0 %v1108, 64
    %v1112 = vpop.permute.xlu0 %1111
    %vm1113 = vcmask 523264
    %v1114 = vsel %vm1113, %v1110, %v1112
    %v1117 = vrot.slane %v1089, 6
    %v1118 = vrot.slane %v1090, 6
    %1119 = vrot.lane.b32.xlu0 %v1117, 96
    %v1120 = vpop.permute.xlu0 %1119
    %1121 = vrot.lane.b32.xlu0 %v1118, 96
    %v1122 = vpop.permute.xlu0 %1121
    %vm1123 = vcmask 785408
    %v1124 = vsel %vm1123, %v1120, %v1122
    %v1129 = vrot.slane %v1091, 2
    %v1130 = vrot.slane %v1092, 2
    %1131 = vrot.lane.b32.xlu0 %v1129, 32
    %v1132 = vpop.permute.xlu0 %1131
    %1133 = vrot.lane.b32.xlu0 %v1130, 32
    %v1134 = vpop.permute.xlu0 %1133
    %v1135 = vsel %vm1103, %v1132, %v1134
    %v1138 = vrot.slane %v1091, 4
    %v1139 = vrot.slane %v1092, 4
    %1140 = vrot.lane.b32.xlu0 %v1138, 64
    %v1141 = vpop.permute.xlu0 %1140
    %1142 = vrot.lane.b32.xlu0 %v1139, 64
    %v1143 = vpop.permute.xlu0 %1142
    %v1144 = vsel %vm1113, %v1141, %v1143
    %v1147 = vrot.slane %v1091, 6
    %v1148 = vrot.slane %v1092, 6
    %1149 = vrot.lane.b32.xlu0 %v1147, 96
    %v1150 = vpop.permute.xlu0 %1149
    %1151 = vrot.lane.b32.xlu0 %v1148, 96
    %v1152 = vpop.permute.xlu0 %1151
    %v1153 = vsel %vm1123, %v1150, %v1152
    %v1156 = vsel %vm1103, %v1090, %v1100
    %v1157 = vsel %vm1113, %v1104, %v1110
    %v1158 = vsel %vm1123, %v1114, %v1120
    %v1159 = vsel %vm1103, %v1092, %v1132
    %v1160 = vsel %vm1113, %v1135, %v1141
    %v1161 = vsel %vm1123, %v1144, %v1150
    %v1162 = vsel %vm1103, %v1094, 1.0
    %v1163 = vld [vmem:[%s1] sm:$0xff]
    %v1164 = vld [vmem:[%s1 + $0x8] sm:$0xff]
    %v1165 = vld [vmem:[%s1 + $0x10] sm:$0xf]
    %v1166 = vld [vmem:[%s1 + $0x14] sm:$0xff]
    %v1167 = vld [vmem:[%s1 + $0x1c] sm:$0xff]
    %v1168 = vld [vmem:[%s1 + $0x24] sm:$0xf]
    %v1169 = vld [vmem:[%s1 + $0x28] sm:$0xff]
    %v1170 = vld [vmem:[%s1 + $0x30] sm:$0xff]
    %v1171 = vld [vmem:[%s1 + $0x38] sm:$0xf]
    %v1172 = vld [vmem:[%s1 + $0x3c] sm:$0xff]
    %v1173 = vld [vmem:[%s1 + $0x44] sm:$0xff]
    %v1174 = vld [vmem:[%s1 + $0x4c] sm:$0xf]
    %v1175 = vld [vmem:[%s1 + $0x50] sm:$0xff]
    %v1176 = vld [vmem:[%s1 + $0x58] sm:$0xff]
    %v1177 = vld [vmem:[%s1 + $0x60] sm:$0xf]
    %v1178 = vld [vmem:[%s1 + $0x64] sm:$0xff]
    %v1179 = vld [vmem:[%s1 + $0x6c] sm:$0xff]
    %v1180 = vld [vmem:[%s1 + $0x74] sm:$0xf]
    %v1181 = vld [vmem:[%s1 + $0x78] sm:$0xff]
    %v1182 = vld [vmem:[%s1 + $0x80] sm:$0xff]
    %v1183 = vld [vmem:[%s1 + $0x88] sm:$0xf]
    %v1184 = vld [vmem:[%s1 + $0x8c] sm:$0xff]
    %v1185 = vld [vmem:[%s1 + $0x94] sm:$0xff]
    %v1186 = vld [vmem:[%s1 + $0x9c] sm:$0xf]
    %v1187 = vld [vmem:[%s1 + $0xa0] sm:$0xff]
    %v1188 = vld [vmem:[%s1 + $0xa8] sm:$0xff]
    %v1189 = vld [vmem:[%s1 + $0xb0] sm:$0xf]
    %v1190 = vld [vmem:[%s1 + $0xb4] sm:$0xff]
    %v1191 = vld [vmem:[%s1 + $0xbc] sm:$0xff]
    %v1192 = vld [vmem:[%s1 + $0xc4] sm:$0xf]
    %v1193 = vld [vmem:[%s1 + $0xc8] sm:$0xff]
    %v1194 = vld [vmem:[%s1 + $0xd0] sm:$0xff]
    %v1195 = vld [vmem:[%s1 + $0xd8] sm:$0xf]
    %v1196 = vld [vmem:[%s1 + $0xdc] sm:$0xff]
    %v1197 = vld [vmem:[%s1 + $0xe4] sm:$0xff]
    %v1198 = vld [vmem:[%s1 + $0xec] sm:$0xf]
    %v1199 = vld [vmem:[%s1 + $0xf0] sm:$0xff]
    %v1200 = vld [vmem:[%s1 + $0xf8] sm:$0xff]
    %v1201 = vld [vmem:[%s1 + $0x100] sm:$0xf]
    %v1202 = vld [vmem:[%s1 + $0x104] sm:$0xff]
    %v1203 = vld [vmem:[%s1 + $0x10c] sm:$0xff]
    %v1204 = vld [vmem:[%s1 + $0x114] sm:$0xf]
    %v1205 = vld [vmem:[%s1 + $0x118] sm:$0xff]
    %v1206 = vld [vmem:[%s1 + $0x120] sm:$0xff]
    %v1207 = vld [vmem:[%s1 + $0x128] sm:$0xf]
    %v1208 = vld [vmem:[%s1 + $0x12c] sm:$0xff]
    %v1209 = vld [vmem:[%s1 + $0x134] sm:$0xff]
    %v1210 = vld [vmem:[%s1 + $0x13c] sm:$0xf]
    %v1211 = vld [vmem:[%s1 + $0x140] sm:$0xff]
    %v1212 = vld [vmem:[%s1 + $0x148] sm:$0xff]
    %v1213 = vld [vmem:[%s1 + $0x150] sm:$0xf]
    %v1214 = vld [vmem:[%s1 + $0x154] sm:$0xff]
    %v1215 = vld [vmem:[%s1 + $0x15c] sm:$0xff]
    %v1216 = vld [vmem:[%s1 + $0x164] sm:$0xf]
    %v1217 = vld [vmem:[%s1 + $0x168] sm:$0xff]
    %v1218 = vld [vmem:[%s1 + $0x170] sm:$0xff]
    %v1219 = vld [vmem:[%s1 + $0x178] sm:$0xf]
    %v1220 = vld [vmem:[%s1 + $0x17c] sm:$0xff]
    %v1221 = vld [vmem:[%s1 + $0x184] sm:$0xff]
    %v1222 = vld [vmem:[%s1 + $0x18c] sm:$0xf]
    %v1223 = vld [vmem:[%s1 + $0x190] sm:$0xff]
    %v1224 = vld [vmem:[%s1 + $0x198] sm:$0xff]
    %v1225 = vld [vmem:[%s1 + $0x1a0] sm:$0xf]
    %v1226 = vld [vmem:[%s1 + $0x1a4] sm:$0xff]
    %v1227 = vld [vmem:[%s1 + $0x1ac] sm:$0xff]
    %v1228 = vld [vmem:[%s1 + $0x1b4] sm:$0xf]
    %v1229 = vld [vmem:[%s1 + $0x1b8] sm:$0xff]
    %v1230 = vld [vmem:[%s1 + $0x1c0] sm:$0xff]
    %v1231 = vld [vmem:[%s1 + $0x1c8] sm:$0xf]
    %v1232 = vld [vmem:[%s1 + $0x1cc] sm:$0xff]
    %v1233 = vld [vmem:[%s1 + $0x1d4] sm:$0xff]
    %v1234 = vld [vmem:[%s1 + $0x1dc] sm:$0xf]
    %v1235 = vld [vmem:[%s1 + $0x1e0] sm:$0xff]
    %v1236 = vld [vmem:[%s1 + $0x1e8] sm:$0xff]
    %v1237 = vld [vmem:[%s1 + $0x1f0] sm:$0xf]
    %v1238 = vld [vmem:[%s1 + $0x1f4] sm:$0xff]
    %v1239 = vld [vmem:[%s1 + $0x1fc] sm:$0xff]
    %v1240 = vld [vmem:[%s1 + $0x204] sm:$0xf]
    %v1241 = vld [vmem:[%s1 + $0x208] sm:$0xff]
    %v1242 = vld [vmem:[%s1 + $0x210] sm:$0xff]
    %v1243 = vld [vmem:[%s1 + $0x218] sm:$0xf]
    %v1244 = vld [vmem:[%s1 + $0x21c] sm:$0xff]
    %v1245 = vld [vmem:[%s1 + $0x224] sm:$0xff]
    %v1246 = vld [vmem:[%s1 + $0x22c] sm:$0xf]
    %v1247 = vld [vmem:[%s1 + $0x230] sm:$0xff]
    %v1248 = vld [vmem:[%s1 + $0x238] sm:$0xff]
    %v1249 = vld [vmem:[%s1 + $0x240] sm:$0xf]
    %v1250 = vld [vmem:[%s1 + $0x244] sm:$0xff]
    %v1251 = vld [vmem:[%s1 + $0x24c] sm:$0xff]
    %v1252 = vld [vmem:[%s1 + $0x254] sm:$0xf]
    %v1253 = vld [vmem:[%s1 + $0x258] sm:$0xff]
    %v1254 = vld [vmem:[%s1 + $0x260] sm:$0xff]
    %v1255 = vld [vmem:[%s1 + $0x268] sm:$0xf]
    %v1256 = vld [vmem:[%s1 + $0x26c] sm:$0xff]
    %v1257 = vld [vmem:[%s1 + $0x274] sm:$0xff]
    %v1258 = vld [vmem:[%s1 + $0x27c] sm:$0xf]
    %v1259 = vld [vmem:[%s1 + $0x280] sm:$0xff]
    %v1260 = vld [vmem:[%s1 + $0x288] sm:$0xff]
    %v1261 = vld [vmem:[%s1 + $0x290] sm:$0xf]
    %v1262 = vld [vmem:[%s1 + $0x294] sm:$0xff]
    %v1263 = vld [vmem:[%s1 + $0x29c] sm:$0xff]
    %v1264 = vld [vmem:[%s1 + $0x2a4] sm:$0xf]
    %v1265 = vld [vmem:[%s1 + $0x2a8] sm:$0xff]
    %v1266 = vld [vmem:[%s1 + $0x2b0] sm:$0xff]
    %v1267 = vld [vmem:[%s1 + $0x2b8] sm:$0xf]
    %v1268 = vld [vmem:[%s1 + $0x2bc] sm:$0xff]
    %v1269 = vld [vmem:[%s1 + $0x2c4] sm:$0xff]
    %v1270 = vld [vmem:[%s1 + $0x2cc] sm:$0xf]
    %v1271 = vld [vmem:[%s1 + $0x2d0] sm:$0xff]
    %v1272 = vld [vmem:[%s1 + $0x2d8] sm:$0xff]
    %v1273 = vld [vmem:[%s1 + $0x2e0] sm:$0xf]
    %v1274 = vld [vmem:[%s1 + $0x2e4] sm:$0xff]
    %v1275 = vld [vmem:[%s1 + $0x2ec] sm:$0xff]
    %v1276 = vld [vmem:[%s1 + $0x2f4] sm:$0xf]
    %v1277 = vld [vmem:[%s1 + $0x2f8] sm:$0xff]
    %v1278 = vld [vmem:[%s1 + $0x300] sm:$0xff]
    %v1279 = vld [vmem:[%s1 + $0x308] sm:$0xf]
    %v1280 = vld [vmem:[%s1 + $0x30c] sm:$0xff]
    %v1281 = vld [vmem:[%s1 + $0x314] sm:$0xff]
    %v1282 = vld [vmem:[%s1 + $0x31c] sm:$0xf]
    %v1283 = vld [vmem:[%s1 + $0x320] sm:$0xff]
    %v1284 = vld [vmem:[%s1 + $0x328] sm:$0xff]
    %v1285 = vld [vmem:[%s1 + $0x330] sm:$0xf]
    %v1286 = vld [vmem:[%s1 + $0x334] sm:$0xff]
    %v1287 = vld [vmem:[%s1 + $0x33c] sm:$0xff]
    %v1288 = vld [vmem:[%s1 + $0x344] sm:$0xf]
    %v1289 = vld [vmem:[%s1 + $0x348] sm:$0xff]
    %v1290 = vld [vmem:[%s1 + $0x350] sm:$0xff]
    %v1291 = vld [vmem:[%s1 + $0x358] sm:$0xf]
    %v1292 = vld [vmem:[%s1 + $0x35c] sm:$0xff]
    %v1293 = vld [vmem:[%s1 + $0x364] sm:$0xff]
    %v1294 = vld [vmem:[%s1 + $0x36c] sm:$0xf]
    %v1295 = vld [vmem:[%s1 + $0x370] sm:$0xff]
    %v1296 = vld [vmem:[%s1 + $0x378] sm:$0xff]
    %v1297 = vld [vmem:[%s1 + $0x380] sm:$0xf]
    %v1298 = vld [vmem:[%s1 + $0x384] sm:$0xff]
    %v1299 = vld [vmem:[%s1 + $0x38c] sm:$0xff]
    %v1300 = vld [vmem:[%s1 + $0x394] sm:$0xf]
    %v1301 = vld [vmem:[%s1 + $0x398] sm:$0xff]
    %v1302 = vld [vmem:[%s1 + $0x3a0] sm:$0xff]
    %v1303 = vld [vmem:[%s1 + $0x3a8] sm:$0xf]
    %v1304 = vld [vmem:[%s1 + $0x3ac] sm:$0xff]
    %v1305 = vld [vmem:[%s1 + $0x3b4] sm:$0xff]
    %v1306 = vld [vmem:[%s1 + $0x3bc] sm:$0xf]
    %v1307 = vld [vmem:[%s1 + $0x3c0] sm:$0xff]
    %v1308 = vld [vmem:[%s1 + $0x3c8] sm:$0xff]
    %v1309 = vld [vmem:[%s1 + $0x3d0] sm:$0xf]
    %v1310 = vld [vmem:[%s1 + $0x3d4] sm:$0xff]
    %v1311 = vld [vmem:[%s1 + $0x3dc] sm:$0xff]
    %v1312 = vld [vmem:[%s1 + $0x3e4] sm:$0xf]
    %v1313 = vld [vmem:[%s1 + $0x3e8] sm:$0xff]
    %v1314 = vld [vmem:[%s1 + $0x3f0] sm:$0xff]
    %v1315 = vld [vmem:[%s1 + $0x3f8] sm:$0xf]
    %v1316 = vld [vmem:[%s1 + $0x3fc] sm:$0xff]
    %v1317 = vld [vmem:[%s1 + $0x404] sm:$0xff]
    %v1318 = vld [vmem:[%s1 + $0x40c] sm:$0xf]
    %v1319 = vld [vmem:[%s1 + $0x410] sm:$0xff]
    %v1320 = vld [vmem:[%s1 + $0x418] sm:$0xff]
    %v1321 = vld [vmem:[%s1 + $0x420] sm:$0xf]
    %v1322 = vld [vmem:[%s1 + $0x424] sm:$0xff]
    %v1323 = vld [vmem:[%s1 + $0x42c] sm:$0xff]
    %v1324 = vld [vmem:[%s1 + $0x434] sm:$0xf]
    %v1325 = vld [vmem:[%s1 + $0x438] sm:$0xff]
    %v1326 = vld [vmem:[%s1 + $0x440] sm:$0xff]
    %v1327 = vld [vmem:[%s1 + $0x448] sm:$0xf]
    %v1328 = vld [vmem:[%s1 + $0x44c] sm:$0xff]
    %v1329 = vld [vmem:[%s1 + $0x454] sm:$0xff]
    %v1330 = vld [vmem:[%s1 + $0x45c] sm:$0xf]
    %v1331 = vld [vmem:[%s1 + $0x460] sm:$0xff]
    %v1332 = vld [vmem:[%s1 + $0x468] sm:$0xff]
    %v1333 = vld [vmem:[%s1 + $0x470] sm:$0xf]
    %v1334 = vld [vmem:[%s1 + $0x474] sm:$0xff]
    %v1335 = vld [vmem:[%s1 + $0x47c] sm:$0xff]
    %v1336 = vld [vmem:[%s1 + $0x484] sm:$0xf]
    %v1337 = vld [vmem:[%s1 + $0x488] sm:$0xff]
    %v1338 = vld [vmem:[%s1 + $0x490] sm:$0xff]
    %v1339 = vld [vmem:[%s1 + $0x498] sm:$0xf]
    %v1340 = vld [vmem:[%s1 + $0x49c] sm:$0xff]
    %v1341 = vld [vmem:[%s1 + $0x4a4] sm:$0xff]
    %v1342 = vld [vmem:[%s1 + $0x4ac] sm:$0xf]
    %v1343 = vld [vmem:[%s1 + $0x4b0] sm:$0xff]
    %v1344 = vld [vmem:[%s1 + $0x4b8] sm:$0xff]
    %v1345 = vld [vmem:[%s1 + $0x4c0] sm:$0xf]
    %v1346 = vld [vmem:[%s1 + $0x4c4] sm:$0xff]
    %v1347 = vld [vmem:[%s1 + $0x4cc] sm:$0xff]
    %v1348 = vld [vmem:[%s1 + $0x4d4] sm:$0xf]
    %v1349 = vld [vmem:[%s1 + $0x4d8] sm:$0xff]
    %v1350 = vld [vmem:[%s1 + $0x4e0] sm:$0xff]
    %v1351 = vld [vmem:[%s1 + $0x4e8] sm:$0xf]
    %v1352 = vld [vmem:[%s1 + $0x4ec] sm:$0xff]
    %v1353 = vld [vmem:[%s1 + $0x4f4] sm:$0xff]
    %v1354 = vld [vmem:[%s1 + $0x4fc] sm:$0xf]
    %v1355 = vld [vmem:[%s1 + $0x500] sm:$0xff]
    %v1356 = vld [vmem:[%s1 + $0x508] sm:$0xff]
    %v1357 = vld [vmem:[%s1 + $0x510] sm:$0xf]
    %v1358 = vld [vmem:[%s1 + $0x514] sm:$0xff]
    %v1359 = vld [vmem:[%s1 + $0x51c] sm:$0xff]
    %v1360 = vld [vmem:[%s1 + $0x524] sm:$0xf]
    %v1361 = vld [vmem:[%s1 + $0x528] sm:$0xff]
    %v1362 = vld [vmem:[%s1 + $0x530] sm:$0xff]
    %v1363 = vld [vmem:[%s1 + $0x538] sm:$0xf]
    %v1364 = vld [vmem:[%s1 + $0x53c] sm:$0xff]
    %v1365 = vld [vmem:[%s1 + $0x544] sm:$0xff]
    %v1366 = vld [vmem:[%s1 + $0x54c] sm:$0xf]
    %v1367 = vld [vmem:[%s1 + $0x550] sm:$0xff]
    %v1368 = vld [vmem:[%s1 + $0x558] sm:$0xff]
    %v1369 = vld [vmem:[%s1 + $0x560] sm:$0xf]
    %v1370 = vld [vmem:[%s1 + $0x564] sm:$0xff]
    %v1371 = vld [vmem:[%s1 + $0x56c] sm:$0xff]
    %v1372 = vld [vmem:[%s1 + $0x574] sm:$0xf]
    %v1373 = vld [vmem:[%s1 + $0x578] sm:$0xff]
    %v1374 = vld [vmem:[%s1 + $0x580] sm:$0xff]
    %v1375 = vld [vmem:[%s1 + $0x588] sm:$0xf]
    %v1376 = vld [vmem:[%s1 + $0x58c] sm:$0xff]
    %v1377 = vld [vmem:[%s1 + $0x594] sm:$0xff]
    %v1378 = vld [vmem:[%s1 + $0x59c] sm:$0xf]
    %v1379 = vld [vmem:[%s1 + $0x5a0] sm:$0xff]
    %v1380 = vld [vmem:[%s1 + $0x5a8] sm:$0xff]
    %v1381 = vld [vmem:[%s1 + $0x5b0] sm:$0xf]
    %v1382 = vld [vmem:[%s1 + $0x5b4] sm:$0xff]
    %v1383 = vld [vmem:[%s1 + $0x5bc] sm:$0xff]
    %v1384 = vld [vmem:[%s1 + $0x5c4] sm:$0xf]
    %v1385 = vld [vmem:[%s1 + $0x5c8] sm:$0xff]
    %v1386 = vld [vmem:[%s1 + $0x5d0] sm:$0xff]
    %v1387 = vld [vmem:[%s1 + $0x5d8] sm:$0xf]
    %v1388 = vld [vmem:[%s1 + $0x5dc] sm:$0xff]
    %v1389 = vld [vmem:[%s1 + $0x5e4] sm:$0xff]
    %v1390 = vld [vmem:[%s1 + $0x5ec] sm:$0xf]
    %v1391 = vld [vmem:[%s1 + $0x5f0] sm:$0xff]
    %v1392 = vld [vmem:[%s1 + $0x5f8] sm:$0xff]
    %v1393 = vld [vmem:[%s1 + $0x600] sm:$0xf]
    %v1394 = vld [vmem:[%s1 + $0x604] sm:$0xff]
    %v1395 = vld [vmem:[%s1 + $0x60c] sm:$0xff]
    %v1396 = vld [vmem:[%s1 + $0x614] sm:$0xf]
    %v1397 = vld [vmem:[%s1 + $0x618] sm:$0xff]
    %v1398 = vld [vmem:[%s1 + $0x620] sm:$0xff]
    %v1399 = vld [vmem:[%s1 + $0x628] sm:$0xf]
    %v1400 = vld [vmem:[%s1 + $0x62c] sm:$0xff]
    %v1401 = vld [vmem:[%s1 + $0x634] sm:$0xff]
    %v1402 = vld [vmem:[%s1 + $0x63c] sm:$0xf]
    %v1403 = vld [vmem:[%s1 + $0x640] sm:$0xff]
    %v1404 = vld [vmem:[%s1 + $0x648] sm:$0xff]
    %v1405 = vld [vmem:[%s1 + $0x650] sm:$0xf]
    %v1406 = vld [vmem:[%s1 + $0x654] sm:$0xff]
    %v1407 = vld [vmem:[%s1 + $0x65c] sm:$0xff]
    %v1408 = vld [vmem:[%s1 + $0x664] sm:$0xf]
    %v1409 = vld [vmem:[%s1 + $0x668] sm:$0xff]
    %v1410 = vld [vmem:[%s1 + $0x670] sm:$0xff]
    %v1411 = vld [vmem:[%s1 + $0x678] sm:$0xf]
    %v1412 = vld [vmem:[%s1 + $0x67c] sm:$0xff]
    %v1413 = vld [vmem:[%s1 + $0x684] sm:$0xff]
    %v1414 = vld [vmem:[%s1 + $0x68c] sm:$0xf]
    %v1415 = vld [vmem:[%s1 + $0x690] sm:$0xff]
    %v1416 = vld [vmem:[%s1 + $0x698] sm:$0xff]
    %v1417 = vld [vmem:[%s1 + $0x6a0] sm:$0xf]
    %v1418 = vld [vmem:[%s1 + $0x6a4] sm:$0xff]
    %v1419 = vld [vmem:[%s1 + $0x6ac] sm:$0xff]
    %v1420 = vld [vmem:[%s1 + $0x6b4] sm:$0xf]
    %v1421 = vld [vmem:[%s1 + $0x6b8] sm:$0xff]
    %v1422 = vld [vmem:[%s1 + $0x6c0] sm:$0xff]
    %v1423 = vld [vmem:[%s1 + $0x6c8] sm:$0xf]
    %v1424 = vld [vmem:[%s1 + $0x6cc] sm:$0xff]
    %v1425 = vld [vmem:[%s1 + $0x6d4] sm:$0xff]
    %v1426 = vld [vmem:[%s1 + $0x6dc] sm:$0xf]
    %v1427 = vld [vmem:[%s1 + $0x6e0] sm:$0xff]
    %v1428 = vld [vmem:[%s1 + $0x6e8] sm:$0xff]
    %v1429 = vld [vmem:[%s1 + $0x6f0] sm:$0xf]
    %v1430 = vld [vmem:[%s1 + $0x6f4] sm:$0xff]
    %v1431 = vld [vmem:[%s1 + $0x6fc] sm:$0xff]
    %v1432 = vld [vmem:[%s1 + $0x704] sm:$0xf]
    %v1433 = vld [vmem:[%s1 + $0x708] sm:$0xff]
    %v1434 = vld [vmem:[%s1 + $0x710] sm:$0xff]
    %v1435 = vld [vmem:[%s1 + $0x718] sm:$0xf]
    %v1436 = vld [vmem:[%s1 + $0x71c] sm:$0xff]
    %v1437 = vld [vmem:[%s1 + $0x724] sm:$0xff]
    %v1438 = vld [vmem:[%s1 + $0x72c] sm:$0xf]
    %v1439 = vld [vmem:[%s1 + $0x730] sm:$0xff]
    %v1440 = vld [vmem:[%s1 + $0x738] sm:$0xff]
    %v1441 = vld [vmem:[%s1 + $0x740] sm:$0xf]
    %v1442 = vld [vmem:[%s1 + $0x744] sm:$0xff]
    %v1443 = vld [vmem:[%s1 + $0x74c] sm:$0xff]
    %v1444 = vld [vmem:[%s1 + $0x754] sm:$0xf]
    %v1445 = vld [vmem:[%s1 + $0x758] sm:$0xff]
    %v1446 = vld [vmem:[%s1 + $0x760] sm:$0xff]
    %v1447 = vld [vmem:[%s1 + $0x768] sm:$0xf]
    %v1448 = vld [vmem:[%s1 + $0x76c] sm:$0xff]
    %v1449 = vld [vmem:[%s1 + $0x774] sm:$0xff]
    %v1450 = vld [vmem:[%s1 + $0x77c] sm:$0xf]
    %v1451 = vld [vmem:[%s1 + $0x780] sm:$0xff]
    %v1452 = vld [vmem:[%s1 + $0x788] sm:$0xff]
    %v1453 = vld [vmem:[%s1 + $0x790] sm:$0xf]
    %v1454 = vld [vmem:[%s1 + $0x794] sm:$0xff]
    %v1455 = vld [vmem:[%s1 + $0x79c] sm:$0xff]
    %v1456 = vld [vmem:[%s1 + $0x7a4] sm:$0xf]
    %v1457 = vld [vmem:[%s1 + $0x7a8] sm:$0xff]
    %v1458 = vld [vmem:[%s1 + $0x7b0] sm:$0xff]
    %v1459 = vld [vmem:[%s1 + $0x7b8] sm:$0xf]
    %v1460 = vld [vmem:[%s1 + $0x7bc] sm:$0xff]
    %v1461 = vld [vmem:[%s1 + $0x7c4] sm:$0xff]
    %v1462 = vld [vmem:[%s1 + $0x7cc] sm:$0xf]
    %v1463 = vld [vmem:[%s1 + $0x7d0] sm:$0xff]
    %v1464 = vld [vmem:[%s1 + $0x7d8] sm:$0xff]
    %v1465 = vld [vmem:[%s1 + $0x7e0] sm:$0xf]
    %v1466 = vld [vmem:[%s1 + $0x7e4] sm:$0xff]
    %v1467 = vld [vmem:[%s1 + $0x7ec] sm:$0xff]
    %v1468 = vld [vmem:[%s1 + $0x7f4] sm:$0xf]
    %v1469 = vld [vmem:[%s1 + $0x7f8] sm:$0xff]
    %v1470 = vld [vmem:[%s1 + $0x800] sm:$0xff]
    %v1471 = vld [vmem:[%s1 + $0x808] sm:$0xf]
    %v1472 = vld [vmem:[%s1 + $0x80c] sm:$0xff]
    %v1473 = vld [vmem:[%s1 + $0x814] sm:$0xff]
    %v1474 = vld [vmem:[%s1 + $0x81c] sm:$0xf]
    %v1475 = vld [vmem:[%s1 + $0x820] sm:$0xff]
    %v1476 = vld [vmem:[%s1 + $0x828] sm:$0xff]
    %v1477 = vld [vmem:[%s1 + $0x830] sm:$0xf]
    %v1478 = vld [vmem:[%s1 + $0x834] sm:$0xff]
    %v1479 = vld [vmem:[%s1 + $0x83c] sm:$0xff]
    %v1480 = vld [vmem:[%s1 + $0x844] sm:$0xf]
    %v1481 = vld [vmem:[%s1 + $0x848] sm:$0xff]
    %v1482 = vld [vmem:[%s1 + $0x850] sm:$0xff]
    %v1483 = vld [vmem:[%s1 + $0x858] sm:$0xf]
    %v1484 = vld [vmem:[%s1 + $0x85c] sm:$0xff]
    %v1485 = vld [vmem:[%s1 + $0x864] sm:$0xff]
    %v1486 = vld [vmem:[%s1 + $0x86c] sm:$0xf]
    %v1487 = vld [vmem:[%s1 + $0x870] sm:$0xff]
    %v1488 = vld [vmem:[%s1 + $0x878] sm:$0xff]
    %v1489 = vld [vmem:[%s1 + $0x880] sm:$0xf]
    %v1490 = vld [vmem:[%s1 + $0x884] sm:$0xff]
    %v1491 = vld [vmem:[%s1 + $0x88c] sm:$0xff]
    %v1492 = vld [vmem:[%s1 + $0x894] sm:$0xf]
    %v1493 = vld [vmem:[%s1 + $0x898] sm:$0xff]
    %v1494 = vld [vmem:[%s1 + $0x8a0] sm:$0xff]
    %v1495 = vld [vmem:[%s1 + $0x8a8] sm:$0xf]
    %v1496 = vld [vmem:[%s1 + $0x8ac] sm:$0xff]
    %v1497 = vld [vmem:[%s1 + $0x8b4] sm:$0xff]
    %v1498 = vld [vmem:[%s1 + $0x8bc] sm:$0xf]
    %v1499 = vld [vmem:[%s1 + $0x8c0] sm:$0xff]
    %v1500 = vld [vmem:[%s1 + $0x8c8] sm:$0xff]
    %v1501 = vld [vmem:[%s1 + $0x8d0] sm:$0xf]
    %v1502 = vld [vmem:[%s1 + $0x8d4] sm:$0xff]
    %v1503 = vld [vmem:[%s1 + $0x8dc] sm:$0xff]
    %v1504 = vld [vmem:[%s1 + $0x8e4] sm:$0xf]
    %v1505 = vld [vmem:[%s1 + $0x8e8] sm:$0xff]
    %v1506 = vld [vmem:[%s1 + $0x8f0] sm:$0xff]
    %v1507 = vld [vmem:[%s1 + $0x8f8] sm:$0xf]
    %v1508 = vld [vmem:[%s1 + $0x8fc] sm:$0xff]
    %v1509 = vld [vmem:[%s1 + $0x904] sm:$0xff]
    %v1510 = vld [vmem:[%s1 + $0x90c] sm:$0xf]
    %v1511 = vld [vmem:[%s1 + $0x910] sm:$0xff]
    %v1512 = vld [vmem:[%s1 + $0x918] sm:$0xff]
    %v1513 = vld [vmem:[%s1 + $0x920] sm:$0xf]
    %v1514 = vld [vmem:[%s1 + $0x924] sm:$0xff]
    %v1515 = vld [vmem:[%s1 + $0x92c] sm:$0xff]
    %v1516 = vld [vmem:[%s1 + $0x934] sm:$0xf]
    %v1517 = vld [vmem:[%s1 + $0x938] sm:$0xff]
    %v1518 = vld [vmem:[%s1 + $0x940] sm:$0xff]
    %v1519 = vld [vmem:[%s1 + $0x948] sm:$0xf]
    %v1520 = vld [vmem:[%s1 + $0x94c] sm:$0xff]
    %v1521 = vld [vmem:[%s1 + $0x954] sm:$0xff]
    %v1522 = vld [vmem:[%s1 + $0x95c] sm:$0xf]
    %v1523 = vld [vmem:[%s1 + $0x960] sm:$0xff]
    %v1524 = vld [vmem:[%s1 + $0x968] sm:$0xff]
    %v1525 = vld [vmem:[%s1 + $0x970] sm:$0xf]
    %v1526 = vld [vmem:[%s1 + $0x974] sm:$0xff]
    %v1527 = vld [vmem:[%s1 + $0x97c] sm:$0xff]
    %v1528 = vld [vmem:[%s1 + $0x984] sm:$0xf]
    %v1529 = vld [vmem:[%s1 + $0x988] sm:$0xff]
    %v1530 = vld [vmem:[%s1 + $0x990] sm:$0xff]
    %v1531 = vld [vmem:[%s1 + $0x998] sm:$0xf]
    %v1532 = vld [vmem:[%s1 + $0x99c] sm:$0xff]
    %v1533 = vld [vmem:[%s1 + $0x9a4] sm:$0xff]
    %v1534 = vld [vmem:[%s1 + $0x9ac] sm:$0xf]
    %v1535 = vld [vmem:[%s1 + $0x9b0] sm:$0xff]
    %v1536 = vld [vmem:[%s1 + $0x9b8] sm:$0xff]
    %v1537 = vld [vmem:[%s1 + $0x9c0] sm:$0xf]
    %v1538 = vld [vmem:[%s1 + $0x9c4] sm:$0xff]
    %v1539 = vld [vmem:[%s1 + $0x9cc] sm:$0xff]
    %v1540 = vld [vmem:[%s1 + $0x9d4] sm:$0xf]
    %v1541 = vld [vmem:[%s1 + $0x9d8] sm:$0xff]
    %v1542 = vld [vmem:[%s1 + $0x9e0] sm:$0xff]
    %v1543 = vld [vmem:[%s1 + $0x9e8] sm:$0xf]
    %v1544 = vld [vmem:[%s1 + $0x9ec] sm:$0xff]
    %v1545 = vld [vmem:[%s1 + $0x9f4] sm:$0xff]
    %v1546 = vld [vmem:[%s1 + $0x9fc] sm:$0xf]
    %v1547 = vld [vmem:[%s1 + $0xa00] sm:$0xff]
    %v1548 = vld [vmem:[%s1 + $0xa08] sm:$0xff]
    %v1549 = vld [vmem:[%s1 + $0xa10] sm:$0xf]
    %v1550 = vld [vmem:[%s1 + $0xa14] sm:$0xff]
    %v1551 = vld [vmem:[%s1 + $0xa1c] sm:$0xff]
    %v1552 = vld [vmem:[%s1 + $0xa24] sm:$0xf]
    %v1553 = vld [vmem:[%s1 + $0xa28] sm:$0xff]
    %v1554 = vld [vmem:[%s1 + $0xa30] sm:$0xff]
    %v1555 = vld [vmem:[%s1 + $0xa38] sm:$0xf]
    %v1556 = vld [vmem:[%s1 + $0xa3c] sm:$0xff]
    %v1557 = vld [vmem:[%s1 + $0xa44] sm:$0xff]
    %v1558 = vld [vmem:[%s1 + $0xa4c] sm:$0xf]
    %v1559 = vld [vmem:[%s1 + $0xa50] sm:$0xff]
    %v1560 = vld [vmem:[%s1 + $0xa58] sm:$0xff]
    %v1561 = vld [vmem:[%s1 + $0xa60] sm:$0xf]
    %v1562 = vld [vmem:[%s1 + $0xa64] sm:$0xff]
    %v1563 = vld [vmem:[%s1 + $0xa6c] sm:$0xff]
    %v1564 = vld [vmem:[%s1 + $0xa74] sm:$0xf]
    %v1565 = vld [vmem:[%s1 + $0xa78] sm:$0xff]
    %v1566 = vld [vmem:[%s1 + $0xa80] sm:$0xff]
    %v1567 = vld [vmem:[%s1 + $0xa88] sm:$0xf]
    %v1568 = vld [vmem:[%s1 + $0xa8c] sm:$0xff]
    %v1569 = vld [vmem:[%s1 + $0xa94] sm:$0xff]
    %v1570 = vld [vmem:[%s1 + $0xa9c] sm:$0xf]
    %v1571 = vld [vmem:[%s1 + $0xaa0] sm:$0xff]
    %v1572 = vld [vmem:[%s1 + $0xaa8] sm:$0xff]
    %v1573 = vld [vmem:[%s1 + $0xab0] sm:$0xf]
    %v1574 = vld [vmem:[%s1 + $0xab4] sm:$0xff]
    %v1575 = vld [vmem:[%s1 + $0xabc] sm:$0xff]
    %v1576 = vld [vmem:[%s1 + $0xac4] sm:$0xf]
    %v1577 = vld [vmem:[%s1 + $0xac8] sm:$0xff]
    %v1578 = vld [vmem:[%s1 + $0xad0] sm:$0xff]
    %v1579 = vld [vmem:[%s1 + $0xad8] sm:$0xf]
    %v1580 = vld [vmem:[%s1 + $0xadc] sm:$0xff]
    %v1581 = vld [vmem:[%s1 + $0xae4] sm:$0xff]
    %v1582 = vld [vmem:[%s1 + $0xaec] sm:$0xf]
    %v1583 = vld [vmem:[%s1 + $0xaf0] sm:$0xff]
    %v1584 = vld [vmem:[%s1 + $0xaf8] sm:$0xff]
    %v1585 = vld [vmem:[%s1 + $0xb00] sm:$0xf]
    %v1586 = vld [vmem:[%s1 + $0xb04] sm:$0xff]
    %v1587 = vld [vmem:[%s1 + $0xb0c] sm:$0xff]
    %v1588 = vld [vmem:[%s1 + $0xb14] sm:$0xf]
    %v1589 = vld [vmem:[%s1 + $0xb18] sm:$0xff]
    %v1590 = vld [vmem:[%s1 + $0xb20] sm:$0xff]
    %v1591 = vld [vmem:[%s1 + $0xb28] sm:$0xf]
    %v1592 = vld [vmem:[%s1 + $0xb2c] sm:$0xff]
    %v1593 = vld [vmem:[%s1 + $0xb34] sm:$0xff]
    %v1594 = vld [vmem:[%s1 + $0xb3c] sm:$0xf]
    %v1595 = vld [vmem:[%s1 + $0xb40] sm:$0xff]
    %v1596 = vld [vmem:[%s1 + $0xb48] sm:$0xff]
    %v1597 = vld [vmem:[%s1 + $0xb50] sm:$0xf]
    %v1598 = vld [vmem:[%s1 + $0xb54] sm:$0xff]
    %v1599 = vld [vmem:[%s1 + $0xb5c] sm:$0xff]
    %v1600 = vld [vmem:[%s1 + $0xb64] sm:$0xf]
    %v1601 = vld [vmem:[%s1 + $0xb68] sm:$0xff]
    %v1602 = vld [vmem:[%s1 + $0xb70] sm:$0xff]
    %v1603 = vld [vmem:[%s1 + $0xb78] sm:$0xf]
    %v1604 = vld [vmem:[%s1 + $0xb7c] sm:$0xff]
    %v1605 = vld [vmem:[%s1 + $0xb84] sm:$0xff]
    %v1606 = vld [vmem:[%s1 + $0xb8c] sm:$0xf]
    %v1607 = vld [vmem:[%s1 + $0xb90] sm:$0xff]
    %v1608 = vld [vmem:[%s1 + $0xb98] sm:$0xff]
    %v1609 = vld [vmem:[%s1 + $0xba0] sm:$0xf]
    %v1610 = vld [vmem:[%s1 + $0xba4] sm:$0xff]
    %v1611 = vld [vmem:[%s1 + $0xbac] sm:$0xff]
    %v1612 = vld [vmem:[%s1 + $0xbb4] sm:$0xf]
    %v1613 = vld [vmem:[%s1 + $0xbb8] sm:$0xff]
    %v1614 = vld [vmem:[%s1 + $0xbc0] sm:$0xff]
    %v1615 = vld [vmem:[%s1 + $0xbc8] sm:$0xf]
    %v1616 = vld [vmem:[%s1 + $0xbcc] sm:$0xff]
    %v1617 = vld [vmem:[%s1 + $0xbd4] sm:$0xff]
    %v1618 = vld [vmem:[%s1 + $0xbdc] sm:$0xf]
    %v1619 = vld [vmem:[%s1 + $0xbe0] sm:$0xff]
    %v1620 = vld [vmem:[%s1 + $0xbe8] sm:$0xff]
    %v1621 = vld [vmem:[%s1 + $0xbf0] sm:$0xf]
    %v1622 = vld [vmem:[%s1 + $0xbf4] sm:$0xff]
    %v1623 = vld [vmem:[%s1 + $0xbfc] sm:$0xff]
    %v1624 = vld [vmem:[%s1 + $0xc04] sm:$0xf]
    %v1625 = vld [vmem:[%s1 + $0xc08] sm:$0xff]
    %v1626 = vld [vmem:[%s1 + $0xc10] sm:$0xff]
    %v1627 = vld [vmem:[%s1 + $0xc18] sm:$0xf]
    %v1628 = vld [vmem:[%s1 + $0xc1c] sm:$0xff]
    %v1629 = vld [vmem:[%s1 + $0xc24] sm:$0xff]
    %v1630 = vld [vmem:[%s1 + $0xc2c] sm:$0xf]
    %v1631 = vld [vmem:[%s1 + $0xc30] sm:$0xff]
    %v1632 = vld [vmem:[%s1 + $0xc38] sm:$0xff]
    %v1633 = vld [vmem:[%s1 + $0xc40] sm:$0xf]
    %v1634 = vld [vmem:[%s1 + $0xc44] sm:$0xff]
    %v1635 = vld [vmem:[%s1 + $0xc4c] sm:$0xff]
    %v1636 = vld [vmem:[%s1 + $0xc54] sm:$0xf]
    %v1637 = vld [vmem:[%s1 + $0xc58] sm:$0xff]
    %v1638 = vld [vmem:[%s1 + $0xc60] sm:$0xff]
    %v1639 = vld [vmem:[%s1 + $0xc68] sm:$0xf]
    %v1640 = vld [vmem:[%s1 + $0xc6c] sm:$0xff]
    %v1641 = vld [vmem:[%s1 + $0xc74] sm:$0xff]
    %v1642 = vld [vmem:[%s1 + $0xc7c] sm:$0xf]
    %v1643 = vld [vmem:[%s1 + $0xc80] sm:$0xff]
    %v1644 = vld [vmem:[%s1 + $0xc88] sm:$0xff]
    %v1645 = vld [vmem:[%s1 + $0xc90] sm:$0xf]
    %v1646 = vld [vmem:[%s1 + $0xc94] sm:$0xff]
    %v1647 = vld [vmem:[%s1 + $0xc9c] sm:$0xff]
    %v1648 = vld [vmem:[%s1 + $0xca4] sm:$0xf]
    %v1649 = vld [vmem:[%s1 + $0xca8] sm:$0xff]
    %v1650 = vld [vmem:[%s1 + $0xcb0] sm:$0xff]
    %v1651 = vld [vmem:[%s1 + $0xcb8] sm:$0xf]
    %v1652 = vld [vmem:[%s1 + $0xcbc] sm:$0xff]
    %v1653 = vld [vmem:[%s1 + $0xcc4] sm:$0xff]
    %v1654 = vld [vmem:[%s1 + $0xccc] sm:$0xf]
    %v1655 = vld [vmem:[%s1 + $0xcd0] sm:$0xff]
    %v1656 = vld [vmem:[%s1 + $0xcd8] sm:$0xff]
    %v1657 = vld [vmem:[%s1 + $0xce0] sm:$0xf]
    %v1658 = vld [vmem:[%s1 + $0xce4] sm:$0xff]
    %v1659 = vld [vmem:[%s1 + $0xcec] sm:$0xff]
    %v1660 = vld [vmem:[%s1 + $0xcf4] sm:$0xf]
    %v1661 = vld [vmem:[%s1 + $0xcf8] sm:$0xff]
    %v1662 = vld [vmem:[%s1 + $0xd00] sm:$0xff]
    %v1663 = vld [vmem:[%s1 + $0xd08] sm:$0xf]
    %v1664 = vld [vmem:[%s1 + $0xd0c] sm:$0xff]
    %v1665 = vld [vmem:[%s1 + $0xd14] sm:$0xff]
    %v1666 = vld [vmem:[%s1 + $0xd1c] sm:$0xf]
    %v1667 = vld [vmem:[%s1 + $0xd20] sm:$0xff]
    %v1668 = vld [vmem:[%s1 + $0xd28] sm:$0xff]
    %v1669 = vld [vmem:[%s1 + $0xd30] sm:$0xf]
    %v1670 = vld [vmem:[%s1 + $0xd34] sm:$0xff]
    %v1671 = vld [vmem:[%s1 + $0xd3c] sm:$0xff]
    %v1672 = vld [vmem:[%s1 + $0xd44] sm:$0xf]
    %v1673 = vld [vmem:[%s1 + $0xd48] sm:$0xff]
    %v1674 = vld [vmem:[%s1 + $0xd50] sm:$0xff]
    %v1675 = vld [vmem:[%s1 + $0xd58] sm:$0xf]
    %v1676 = vld [vmem:[%s1 + $0xd5c] sm:$0xff]
    %v1677 = vld [vmem:[%s1 + $0xd64] sm:$0xff]
    %v1678 = vld [vmem:[%s1 + $0xd6c] sm:$0xf]
    %v1679 = vld [vmem:[%s1 + $0xd70] sm:$0xff]
    %v1680 = vld [vmem:[%s1 + $0xd78] sm:$0xff]
    %v1681 = vld [vmem:[%s1 + $0xd80] sm:$0xf]
    %v1682 = vld [vmem:[%s1 + $0xd84] sm:$0xff]
    %v1683 = vld [vmem:[%s1 + $0xd8c] sm:$0xff]
    %v1684 = vld [vmem:[%s1 + $0xd94] sm:$0xf]
    %v1685 = vld [vmem:[%s1 + $0xd98] sm:$0xff]
    %v1686 = vld [vmem:[%s1 + $0xda0] sm:$0xff]
    %v1687 = vld [vmem:[%s1 + $0xda8] sm:$0xf]
    %v1688 = vld [vmem:[%s1 + $0xdac] sm:$0xff]
    %v1689 = vld [vmem:[%s1 + $0xdb4] sm:$0xff]
    %v1690 = vld [vmem:[%s1 + $0xdbc] sm:$0xf]
    %v1691 = vld [vmem:[%s1 + $0xdc0] sm:$0xff]
    %v1692 = vld [vmem:[%s1 + $0xdc8] sm:$0xff]
    %v1693 = vld [vmem:[%s1 + $0xdd0] sm:$0xf]
    %v1694 = vld [vmem:[%s1 + $0xdd4] sm:$0xff]
    %v1695 = vld [vmem:[%s1 + $0xddc] sm:$0xff]
    %v1696 = vld [vmem:[%s1 + $0xde4] sm:$0xf]
    %v1697 = vld [vmem:[%s1 + $0xde8] sm:$0xff]
    %v1698 = vld [vmem:[%s1 + $0xdf0] sm:$0xff]
    %v1699 = vld [vmem:[%s1 + $0xdf8] sm:$0xf]
    %v1700 = vld [vmem:[%s1 + $0xdfc] sm:$0xff]
    %v1701 = vld [vmem:[%s1 + $0xe04] sm:$0xff]
    %v1702 = vld [vmem:[%s1 + $0xe0c] sm:$0xf]
    %v1703 = vld [vmem:[%s1 + $0xe10] sm:$0xff]
    %v1704 = vld [vmem:[%s1 + $0xe18] sm:$0xff]
    %v1705 = vld [vmem:[%s1 + $0xe20] sm:$0xf]
    %v1706 = vpack.c.bf16 %v1089, %v1089
    %v1707 = vpack.c.bf16 %v1156, %v1156
    %v1708 = vpack.c.bf16 %v1157, %v1157
    %v1709 = vpack.c.bf16 %v1158, %v1158
    %v1710 = vpack.c.bf16 %v1124, %v1124
    %v1711 = vpack.c.bf16 %v1091, %v1091
    %v1712 = vpack.c.bf16 %v1159, %v1159
    %v1713 = vpack.c.bf16 %v1160, %v1160
    %v1714 = vpack.c.bf16 %v1161, %v1161
    %v1715 = vpack.c.bf16 %v1153, %v1153
    %v1716 = vpack.c.bf16 %v1093, %v1093
    %v1717 = vpack.c.bf16 %v1162, %v1162
    %v2261 = vunpack.c.l.b16 %v1163
    %v2262 = vunpack.c.h.b16 %v1163
    %v2263 = vunpack.c.l.b16 %v1164
    %v2264 = vunpack.c.h.b16 %v1164
    %v2265 = vunpack.c.l.b16 %v1165
    %v2266 = vunpack.c.l.b16 %v1166
    %v2267 = vunpack.c.h.b16 %v1166
    %v2268 = vunpack.c.l.b16 %v1167
    %v2269 = vunpack.c.h.b16 %v1167
    %v2270 = vunpack.c.l.b16 %v1168
    %v2271 = vunpack.c.l.b16 %v1169
    %v2272 = vunpack.c.h.b16 %v1169
    %v2273 = vunpack.c.l.b16 %v1170
    %v2274 = vunpack.c.h.b16 %v1170
    %v2275 = vunpack.c.l.b16 %v1171
    %v2276 = vunpack.c.l.b16 %v1172
    %v2277 = vunpack.c.h.b16 %v1172
    %v2278 = vunpack.c.l.b16 %v1173
    %v2279 = vunpack.c.h.b16 %v1173
    %v2280 = vunpack.c.l.b16 %v1174
    %v2281 = vunpack.c.l.b16 %v1175
    %v2282 = vunpack.c.h.b16 %v1175
    %v2283 = vunpack.c.l.b16 %v1176
    %v2284 = vunpack.c.h.b16 %v1176
    %v2285 = vunpack.c.l.b16 %v1177
    %v2286 = vunpack.c.l.b16 %v1178
    %v2287 = vunpack.c.h.b16 %v1178
    %v2288 = vunpack.c.l.b16 %v1179
    %v2289 = vunpack.c.h.b16 %v1179
    %v2290 = vunpack.c.l.b16 %v1180
    %v2291 = vunpack.c.l.b16 %v1181
    %v2292 = vunpack.c.h.b16 %v1181
    %v2293 = vunpack.c.l.b16 %v1182
    %v2294 = vunpack.c.h.b16 %v1182
    %v2295 = vunpack.c.l.b16 %v1183
    %v2296 = vunpack.c.l.b16 %v1184
    %v2297 = vunpack.c.h.b16 %v1184
    %v2298 = vunpack.c.l.b16 %v1185
    %v2299 = vunpack.c.h.b16 %v1185
    %v2300 = vunpack.c.l.b16 %v1186
    %v2301 = vunpack.c.l.b16 %v1187
    %v2302 = vunpack.c.h.b16 %v1187
    %v2303 = vunpack.c.l.b16 %v1188
    %v2304 = vunpack.c.h.b16 %v1188
    %v2305 = vunpack.c.l.b16 %v1189
    %v2306 = vunpack.c.l.b16 %v1190
    %v2307 = vunpack.c.h.b16 %v1190
    %v2308 = vunpack.c.l.b16 %v1191
    %v2309 = vunpack.c.h.b16 %v1191
    %v2310 = vunpack.c.l.b16 %v1192
    %v2311 = vunpack.c.l.b16 %v1193
    %v2312 = vunpack.c.h.b16 %v1193
    %v2313 = vunpack.c.l.b16 %v1194
    %v2314 = vunpack.c.h.b16 %v1194
    %v2315 = vunpack.c.l.b16 %v1195
    %v2316 = vunpack.c.l.b16 %v1196
    %v2317 = vunpack.c.h.b16 %v1196
    %v2318 = vunpack.c.l.b16 %v1197
    %v2319 = vunpack.c.h.b16 %v1197
    %v2320 = vunpack.c.l.b16 %v1198
    %v2321 = vunpack.c.l.b16 %v1199
    %v2322 = vunpack.c.h.b16 %v1199
    %v2323 = vunpack.c.l.b16 %v1200
    %v2324 = vunpack.c.h.b16 %v1200
    %v2325 = vunpack.c.l.b16 %v1201
    %v2326 = vunpack.c.l.b16 %v1202
    %v2327 = vunpack.c.h.b16 %v1202
    %v2328 = vunpack.c.l.b16 %v1203
    %v2329 = vunpack.c.h.b16 %v1203
    %v2330 = vunpack.c.l.b16 %v1204
    %v2331 = vunpack.c.l.b16 %v1205
    %v2332 = vunpack.c.h.b16 %v1205
    %v2333 = vunpack.c.l.b16 %v1206
    %v2334 = vunpack.c.h.b16 %v1206
    %v2335 = vunpack.c.l.b16 %v1207
    %v2336 = vunpack.c.l.b16 %v1208
    %v2337 = vunpack.c.h.b16 %v1208
    %v2338 = vunpack.c.l.b16 %v1209
    %v2339 = vunpack.c.h.b16 %v1209
    %v2340 = vunpack.c.l.b16 %v1210
    %v2341 = vunpack.c.l.b16 %v1211
    %v2342 = vunpack.c.h.b16 %v1211
    %v2343 = vunpack.c.l.b16 %v1212
    %v2344 = vunpack.c.h.b16 %v1212
    %v2345 = vunpack.c.l.b16 %v1213
    %v2346 = vunpack.c.l.b16 %v1214
    %v2347 = vunpack.c.h.b16 %v1214
    %v2348 = vunpack.c.l.b16 %v1215
    %v2349 = vunpack.c.h.b16 %v1215
    %v2350 = vunpack.c.l.b16 %v1216
    %v2351 = vunpack.c.l.b16 %v1217
    %v2352 = vunpack.c.h.b16 %v1217
    %v2353 = vunpack.c.l.b16 %v1218
    %v2354 = vunpack.c.h.b16 %v1218
    %v2355 = vunpack.c.l.b16 %v1219
    %v2356 = vunpack.c.l.b16 %v1220
    %v2357 = vunpack.c.h.b16 %v1220
    %v2358 = vunpack.c.l.b16 %v1221
    %v2359 = vunpack.c.h.b16 %v1221
    %v2360 = vunpack.c.l.b16 %v1222
    %v2361 = vunpack.c.l.b16 %v1223
    %v2362 = vunpack.c.h.b16 %v1223
    %v2363 = vunpack.c.l.b16 %v1224
    %v2364 = vunpack.c.h.b16 %v1224
    %v2365 = vunpack.c.l.b16 %v1225
    %v2366 = vunpack.c.l.b16 %v1226
    %v2367 = vunpack.c.h.b16 %v1226
    %v2368 = vunpack.c.l.b16 %v1227
    %v2369 = vunpack.c.h.b16 %v1227
    %v2370 = vunpack.c.l.b16 %v1228
    %v2371 = vunpack.c.l.b16 %v1229
    %v2372 = vunpack.c.h.b16 %v1229
    %v2373 = vunpack.c.l.b16 %v1230
    %v2374 = vunpack.c.h.b16 %v1230
    %v2375 = vunpack.c.l.b16 %v1231
    %v2376 = vunpack.c.l.b16 %v1232
    %v2377 = vunpack.c.h.b16 %v1232
    %v2378 = vunpack.c.l.b16 %v1233
    %v2379 = vunpack.c.h.b16 %v1233
    %v2380 = vunpack.c.l.b16 %v1234
    %v2381 = vunpack.c.l.b16 %v1235
    %v2382 = vunpack.c.h.b16 %v1235
    %v2383 = vunpack.c.l.b16 %v1236
    %v2384 = vunpack.c.h.b16 %v1236
    %v2385 = vunpack.c.l.b16 %v1237
    %v2386 = vunpack.c.l.b16 %v1238
    %v2387 = vunpack.c.h.b16 %v1238
    %v2388 = vunpack.c.l.b16 %v1239
    %v2389 = vunpack.c.h.b16 %v1239
    %v2390 = vunpack.c.l.b16 %v1240
    %v2391 = vunpack.c.l.b16 %v1241
    %v2392 = vunpack.c.h.b16 %v1241
    %v2393 = vunpack.c.l.b16 %v1242
    %v2394 = vunpack.c.h.b16 %v1242
    %v2395 = vunpack.c.l.b16 %v1243
    %v2396 = vunpack.c.l.b16 %v1244
    %v2397 = vunpack.c.h.b16 %v1244
    %v2398 = vunpack.c.l.b16 %v1245
    %v2399 = vunpack.c.h.b16 %v1245
    %v2400 = vunpack.c.l.b16 %v1246
    %v2401 = vunpack.c.l.b16 %v1247
    %v2402 = vunpack.c.h.b16 %v1247
    %v2403 = vunpack.c.l.b16 %v1248
    %v2404 = vunpack.c.h.b16 %v1248
    %v2405 = vunpack.c.l.b16 %v1249
    %v2406 = vunpack.c.l.b16 %v1250
    %v2407 = vunpack.c.h.b16 %v1250
    %v2408 = vunpack.c.l.b16 %v1251
    %v2409 = vunpack.c.h.b16 %v1251
    %v2410 = vunpack.c.l.b16 %v1252
    %v2411 = vunpack.c.l.b16 %v1253
    %v2412 = vunpack.c.h.b16 %v1253
    %v2413 = vunpack.c.l.b16 %v1254
    %v2414 = vunpack.c.h.b16 %v1254
    %v2415 = vunpack.c.l.b16 %v1255
    %v2416 = vunpack.c.l.b16 %v1256
    %v2417 = vunpack.c.h.b16 %v1256
    %v2418 = vunpack.c.l.b16 %v1257
    %v2419 = vunpack.c.h.b16 %v1257
    %v2420 = vunpack.c.l.b16 %v1258
    %v2421 = vunpack.c.l.b16 %v1259
    %v2422 = vunpack.c.h.b16 %v1259
    %v2423 = vunpack.c.l.b16 %v1260
    %v2424 = vunpack.c.h.b16 %v1260
    %v2425 = vunpack.c.l.b16 %v1261
    %v2426 = vunpack.c.l.b16 %v1262
    %v2427 = vunpack.c.h.b16 %v1262
    %v2428 = vunpack.c.l.b16 %v1263
    %v2429 = vunpack.c.h.b16 %v1263
    %v2430 = vunpack.c.l.b16 %v1264
    %v2431 = vunpack.c.l.b16 %v1265
    %v2432 = vunpack.c.h.b16 %v1265
    %v2433 = vunpack.c.l.b16 %v1266
    %v2434 = vunpack.c.h.b16 %v1266
    %v2435 = vunpack.c.l.b16 %v1267
    %v2436 = vunpack.c.l.b16 %v1268
    %v2437 = vunpack.c.h.b16 %v1268
    %v2438 = vunpack.c.l.b16 %v1269
    %v2439 = vunpack.c.h.b16 %v1269
    %v2440 = vunpack.c.l.b16 %v1270
    %v2441 = vunpack.c.l.b16 %v1271
    %v2442 = vunpack.c.h.b16 %v1271
    %v2443 = vunpack.c.l.b16 %v1272
    %v2444 = vunpack.c.h.b16 %v1272
    %v2445 = vunpack.c.l.b16 %v1273
    %v2446 = vunpack.c.l.b16 %v1274
    %v2447 = vunpack.c.h.b16 %v1274
    %v2448 = vunpack.c.l.b16 %v1275
    %v2449 = vunpack.c.h.b16 %v1275
    %v2450 = vunpack.c.l.b16 %v1276
    %v2451 = vunpack.c.l.b16 %v1277
    %v2452 = vunpack.c.h.b16 %v1277
    %v2453 = vunpack.c.l.b16 %v1278
    %v2454 = vunpack.c.h.b16 %v1278
    %v2455 = vunpack.c.l.b16 %v1279
    %v2456 = vunpack.c.l.b16 %v1280
    %v2457 = vunpack.c.h.b16 %v1280
    %v2458 = vunpack.c.l.b16 %v1281
    %v2459 = vunpack.c.h.b16 %v1281
    %v2460 = vunpack.c.l.b16 %v1282
    %v2461 = vunpack.c.l.b16 %v1283
    %v2462 = vunpack.c.h.b16 %v1283
    %v2463 = vunpack.c.l.b16 %v1284
    %v2464 = vunpack.c.h.b16 %v1284
    %v2465 = vunpack.c.l.b16 %v1285
    %v2466 = vunpack.c.l.b16 %v1286
    %v2467 = vunpack.c.h.b16 %v1286
    %v2468 = vunpack.c.l.b16 %v1287
    %v2469 = vunpack.c.h.b16 %v1287
    %v2470 = vunpack.c.l.b16 %v1288
    %v2471 = vunpack.c.l.b16 %v1289
    %v2472 = vunpack.c.h.b16 %v1289
    %v2473 = vunpack.c.l.b16 %v1290
    %v2474 = vunpack.c.h.b16 %v1290
    %v2475 = vunpack.c.l.b16 %v1291
    %v2476 = vunpack.c.l.b16 %v1292
    %v2477 = vunpack.c.h.b16 %v1292
    %v2478 = vunpack.c.l.b16 %v1293
    %v2479 = vunpack.c.h.b16 %v1293
    %v2480 = vunpack.c.l.b16 %v1294
    %v2481 = vunpack.c.l.b16 %v1295
    %v2482 = vunpack.c.h.b16 %v1295
    %v2483 = vunpack.c.l.b16 %v1296
    %v2484 = vunpack.c.h.b16 %v1296
    %v2485 = vunpack.c.l.b16 %v1297
    %v2486 = vunpack.c.l.b16 %v1298
    %v2487 = vunpack.c.h.b16 %v1298
    %v2488 = vunpack.c.l.b16 %v1299
    %v2489 = vunpack.c.h.b16 %v1299
    %v2490 = vunpack.c.l.b16 %v1300
    %v2491 = vunpack.c.l.b16 %v1301
    %v2492 = vunpack.c.h.b16 %v1301
    %v2493 = vunpack.c.l.b16 %v1302
    %v2494 = vunpack.c.h.b16 %v1302
    %v2495 = vunpack.c.l.b16 %v1303
    %v2496 = vunpack.c.l.b16 %v1304
    %v2497 = vunpack.c.h.b16 %v1304
    %v2498 = vunpack.c.l.b16 %v1305
    %v2499 = vunpack.c.h.b16 %v1305
    %v2500 = vunpack.c.l.b16 %v1306
    %v2501 = vunpack.c.l.b16 %v1307
    %v2502 = vunpack.c.h.b16 %v1307
    %v2503 = vunpack.c.l.b16 %v1308
    %v2504 = vunpack.c.h.b16 %v1308
    %v2505 = vunpack.c.l.b16 %v1309
    %v2506 = vunpack.c.l.b16 %v1310
    %v2507 = vunpack.c.h.b16 %v1310
    %v2508 = vunpack.c.l.b16 %v1311
    %v2509 = vunpack.c.h.b16 %v1311
    %v2510 = vunpack.c.l.b16 %v1312
    %v2511 = vunpack.c.l.b16 %v1313
    %v2512 = vunpack.c.h.b16 %v1313
    %v2513 = vunpack.c.l.b16 %v1314
    %v2514 = vunpack.c.h.b16 %v1314
    %v2515 = vunpack.c.l.b16 %v1315
    %v2516 = vunpack.c.l.b16 %v1316
    %v2517 = vunpack.c.h.b16 %v1316
    %v2518 = vunpack.c.l.b16 %v1317
    %v2519 = vunpack.c.h.b16 %v1317
    %v2520 = vunpack.c.l.b16 %v1318
    %v2521 = vunpack.c.l.b16 %v1319
    %v2522 = vunpack.c.h.b16 %v1319
    %v2523 = vunpack.c.l.b16 %v1320
    %v2524 = vunpack.c.h.b16 %v1320
    %v2525 = vunpack.c.l.b16 %v1321
    %v2526 = vunpack.c.l.b16 %v1322
    %v2527 = vunpack.c.h.b16 %v1322
    %v2528 = vunpack.c.l.b16 %v1323
    %v2529 = vunpack.c.h.b16 %v1323
    %v2530 = vunpack.c.l.b16 %v1324
    %v2531 = vunpack.c.l.b16 %v1325
    %v2532 = vunpack.c.h.b16 %v1325
    %v2533 = vunpack.c.l.b16 %v1326
    %v2534 = vunpack.c.h.b16 %v1326
    %v2535 = vunpack.c.l.b16 %v1327
    %v2536 = vunpack.c.l.b16 %v1328
    %v2537 = vunpack.c.h.b16 %v1328
    %v2538 = vunpack.c.l.b16 %v1329
    %v2539 = vunpack.c.h.b16 %v1329
    %v2540 = vunpack.c.l.b16 %v1330
    %v2541 = vunpack.c.l.b16 %v1331
    %v2542 = vunpack.c.h.b16 %v1331
    %v2543 = vunpack.c.l.b16 %v1332
    %v2544 = vunpack.c.h.b16 %v1332
    %v2545 = vunpack.c.l.b16 %v1333
    %v2546 = vunpack.c.l.b16 %v1334
    %v2547 = vunpack.c.h.b16 %v1334
    %v2548 = vunpack.c.l.b16 %v1335
    %v2549 = vunpack.c.h.b16 %v1335
    %v2550 = vunpack.c.l.b16 %v1336
    %v2551 = vunpack.c.l.b16 %v1337
    %v2552 = vunpack.c.h.b16 %v1337
    %v2553 = vunpack.c.l.b16 %v1338
    %v2554 = vunpack.c.h.b16 %v1338
    %v2555 = vunpack.c.l.b16 %v1339
    %v2556 = vunpack.c.l.b16 %v1340
    %v2557 = vunpack.c.h.b16 %v1340
    %v2558 = vunpack.c.l.b16 %v1341
    %v2559 = vunpack.c.h.b16 %v1341
    %v2560 = vunpack.c.l.b16 %v1342
    %v2561 = vunpack.c.l.b16 %v1343
    %v2562 = vunpack.c.h.b16 %v1343
    %v2563 = vunpack.c.l.b16 %v1344
    %v2564 = vunpack.c.h.b16 %v1344
    %v2565 = vunpack.c.l.b16 %v1345
    %v2566 = vunpack.c.l.b16 %v1346
    %v2567 = vunpack.c.h.b16 %v1346
    %v2568 = vunpack.c.l.b16 %v1347
    %v2569 = vunpack.c.h.b16 %v1347
    %v2570 = vunpack.c.l.b16 %v1348
    %v2571 = vunpack.c.l.b16 %v1349
    %v2572 = vunpack.c.h.b16 %v1349
    %v2573 = vunpack.c.l.b16 %v1350
    %v2574 = vunpack.c.h.b16 %v1350
    %v2575 = vunpack.c.l.b16 %v1351
    %v2576 = vunpack.c.l.b16 %v1352
    %v2577 = vunpack.c.h.b16 %v1352
    %v2578 = vunpack.c.l.b16 %v1353
    %v2579 = vunpack.c.h.b16 %v1353
    %v2580 = vunpack.c.l.b16 %v1354
    %v2581 = vunpack.c.l.b16 %v1355
    %v2582 = vunpack.c.h.b16 %v1355
    %v2583 = vunpack.c.l.b16 %v1356
    %v2584 = vunpack.c.h.b16 %v1356
    %v2585 = vunpack.c.l.b16 %v1357
    %v2586 = vunpack.c.l.b16 %v1358
    %v2587 = vunpack.c.h.b16 %v1358
    %v2588 = vunpack.c.l.b16 %v1359
    %v2589 = vunpack.c.h.b16 %v1359
    %v2590 = vunpack.c.l.b16 %v1360
    %v2591 = vunpack.c.l.b16 %v1361
    %v2592 = vunpack.c.h.b16 %v1361
    %v2593 = vunpack.c.l.b16 %v1362
    %v2594 = vunpack.c.h.b16 %v1362
    %v2595 = vunpack.c.l.b16 %v1363
    %v2596 = vunpack.c.l.b16 %v1364
    %v2597 = vunpack.c.h.b16 %v1364
    %v2598 = vunpack.c.l.b16 %v1365
    %v2599 = vunpack.c.h.b16 %v1365
    %v2600 = vunpack.c.l.b16 %v1366
    %v2601 = vunpack.c.l.b16 %v1367
    %v2602 = vunpack.c.h.b16 %v1367
    %v2603 = vunpack.c.l.b16 %v1368
    %v2604 = vunpack.c.h.b16 %v1368
    %v2605 = vunpack.c.l.b16 %v1369
    %v2606 = vunpack.c.l.b16 %v1370
    %v2607 = vunpack.c.h.b16 %v1370
    %v2608 = vunpack.c.l.b16 %v1371
    %v2609 = vunpack.c.h.b16 %v1371
    %v2610 = vunpack.c.l.b16 %v1372
    %v2611 = vunpack.c.l.b16 %v1373
    %v2612 = vunpack.c.h.b16 %v1373
    %v2613 = vunpack.c.l.b16 %v1374
    %v2614 = vunpack.c.h.b16 %v1374
    %v2615 = vunpack.c.l.b16 %v1375
    %v2616 = vunpack.c.l.b16 %v1376
    %v2617 = vunpack.c.h.b16 %v1376
    %v2618 = vunpack.c.l.b16 %v1377
    %v2619 = vunpack.c.h.b16 %v1377
    %v2620 = vunpack.c.l.b16 %v1378
    %v2621 = vunpack.c.l.b16 %v1379
    %v2622 = vunpack.c.h.b16 %v1379
    %v2623 = vunpack.c.l.b16 %v1380
    %v2624 = vunpack.c.h.b16 %v1380
    %v2625 = vunpack.c.l.b16 %v1381
    %v2626 = vunpack.c.l.b16 %v1382
    %v2627 = vunpack.c.h.b16 %v1382
    %v2628 = vunpack.c.l.b16 %v1383
    %v2629 = vunpack.c.h.b16 %v1383
    %v2630 = vunpack.c.l.b16 %v1384
    %v2631 = vunpack.c.l.b16 %v1385
    %v2632 = vunpack.c.h.b16 %v1385
    %v2633 = vunpack.c.l.b16 %v1386
    %v2634 = vunpack.c.h.b16 %v1386
    %v2635 = vunpack.c.l.b16 %v1387
    %v2636 = vunpack.c.l.b16 %v1388
    %v2637 = vunpack.c.h.b16 %v1388
    %v2638 = vunpack.c.l.b16 %v1389
    %v2639 = vunpack.c.h.b16 %v1389
    %v2640 = vunpack.c.l.b16 %v1390
    %v2641 = vunpack.c.l.b16 %v1391
    %v2642 = vunpack.c.h.b16 %v1391
    %v2643 = vunpack.c.l.b16 %v1392
    %v2644 = vunpack.c.h.b16 %v1392
    %v2645 = vunpack.c.l.b16 %v1393
    %v2646 = vunpack.c.l.b16 %v1394
    %v2647 = vunpack.c.h.b16 %v1394
    %v2648 = vunpack.c.l.b16 %v1395
    %v2649 = vunpack.c.h.b16 %v1395
    %v2650 = vunpack.c.l.b16 %v1396
    %v2651 = vunpack.c.l.b16 %v1397
    %v2652 = vunpack.c.h.b16 %v1397
    %v2653 = vunpack.c.l.b16 %v1398
    %v2654 = vunpack.c.h.b16 %v1398
    %v2655 = vunpack.c.l.b16 %v1399
    %v2656 = vunpack.c.l.b16 %v1400
    %v2657 = vunpack.c.h.b16 %v1400
    %v2658 = vunpack.c.l.b16 %v1401
    %v2659 = vunpack.c.h.b16 %v1401
    %v2660 = vunpack.c.l.b16 %v1402
    %v2661 = vunpack.c.l.b16 %v1403
    %v2662 = vunpack.c.h.b16 %v1403
    %v2663 = vunpack.c.l.b16 %v1404
    %v2664 = vunpack.c.h.b16 %v1404
    %v2665 = vunpack.c.l.b16 %v1405
    %v2666 = vunpack.c.l.b16 %v1406
    %v2667 = vunpack.c.h.b16 %v1406
    %v2668 = vunpack.c.l.b16 %v1407
    %v2669 = vunpack.c.h.b16 %v1407
    %v2670 = vunpack.c.l.b16 %v1408
    %v2671 = vunpack.c.l.b16 %v1409
    %v2672 = vunpack.c.h.b16 %v1409
    %v2673 = vunpack.c.l.b16 %v1410
    %v2674 = vunpack.c.h.b16 %v1410
    %v2675 = vunpack.c.l.b16 %v1411
    %v2676 = vunpack.c.l.b16 %v1412
    %v2677 = vunpack.c.h.b16 %v1412
    %v2678 = vunpack.c.l.b16 %v1413
    %v2679 = vunpack.c.h.b16 %v1413
    %v2680 = vunpack.c.l.b16 %v1414
    %v2681 = vunpack.c.l.b16 %v1415
    %v2682 = vunpack.c.h.b16 %v1415
    %v2683 = vunpack.c.l.b16 %v1416
    %v2684 = vunpack.c.h.b16 %v1416
    %v2685 = vunpack.c.l.b16 %v1417
    %v2686 = vunpack.c.l.b16 %v1418
    %v2687 = vunpack.c.h.b16 %v1418
    %v2688 = vunpack.c.l.b16 %v1419
    %v2689 = vunpack.c.h.b16 %v1419
    %v2690 = vunpack.c.l.b16 %v1420
    %v2691 = vunpack.c.l.b16 %v1421
    %v2692 = vunpack.c.h.b16 %v1421
    %v2693 = vunpack.c.l.b16 %v1422
    %v2694 = vunpack.c.h.b16 %v1422
    %v2695 = vunpack.c.l.b16 %v1423
    %v2696 = vunpack.c.l.b16 %v1424
    %v2697 = vunpack.c.h.b16 %v1424
    %v2698 = vunpack.c.l.b16 %v1425
    %v2699 = vunpack.c.h.b16 %v1425
    %v2700 = vunpack.c.l.b16 %v1426
    %v2701 = vunpack.c.l.b16 %v1427
    %v2702 = vunpack.c.h.b16 %v1427
    %v2703 = vunpack.c.l.b16 %v1428
    %v2704 = vunpack.c.h.b16 %v1428
    %v2705 = vunpack.c.l.b16 %v1429
    %v2706 = vunpack.c.l.b16 %v1430
    %v2707 = vunpack.c.h.b16 %v1430
    %v2708 = vunpack.c.l.b16 %v1431
    %v2709 = vunpack.c.h.b16 %v1431
    %v2710 = vunpack.c.l.b16 %v1432
    %v2711 = vunpack.c.l.b16 %v1433
    %v2712 = vunpack.c.h.b16 %v1433
    %v2713 = vunpack.c.l.b16 %v1434
    %v2714 = vunpack.c.h.b16 %v1434
    %v2715 = vunpack.c.l.b16 %v1435
    %v2716 = vunpack.c.l.b16 %v1436
    %v2717 = vunpack.c.h.b16 %v1436
    %v2718 = vunpack.c.l.b16 %v1437
    %v2719 = vunpack.c.h.b16 %v1437
    %v2720 = vunpack.c.l.b16 %v1438
    %v2721 = vunpack.c.l.b16 %v1439
    %v2722 = vunpack.c.h.b16 %v1439
    %v2723 = vunpack.c.l.b16 %v1440
    %v2724 = vunpack.c.h.b16 %v1440
    %v2725 = vunpack.c.l.b16 %v1441
    %v2726 = vunpack.c.l.b16 %v1442
    %v2727 = vunpack.c.h.b16 %v1442
    %v2728 = vunpack.c.l.b16 %v1443
    %v2729 = vunpack.c.h.b16 %v1443
    %v2730 = vunpack.c.l.b16 %v1444
    %v2731 = vunpack.c.l.b16 %v1445
    %v2732 = vunpack.c.h.b16 %v1445
    %v2733 = vunpack.c.l.b16 %v1446
    %v2734 = vunpack.c.h.b16 %v1446
    %v2735 = vunpack.c.l.b16 %v1447
    %v2736 = vunpack.c.l.b16 %v1448
    %v2737 = vunpack.c.h.b16 %v1448
    %v2738 = vunpack.c.l.b16 %v1449
    %v2739 = vunpack.c.h.b16 %v1449
    %v2740 = vunpack.c.l.b16 %v1450
    %v2741 = vunpack.c.l.b16 %v1451
    %v2742 = vunpack.c.h.b16 %v1451
    %v2743 = vunpack.c.l.b16 %v1452
    %v2744 = vunpack.c.h.b16 %v1452
    %v2745 = vunpack.c.l.b16 %v1453
    %v2746 = vunpack.c.l.b16 %v1454
    %v2747 = vunpack.c.h.b16 %v1454
    %v2748 = vunpack.c.l.b16 %v1455
    %v2749 = vunpack.c.h.b16 %v1455
    %v2750 = vunpack.c.l.b16 %v1456
    %v2751 = vunpack.c.l.b16 %v1457
    %v2752 = vunpack.c.h.b16 %v1457
    %v2753 = vunpack.c.l.b16 %v1458
    %v2754 = vunpack.c.h.b16 %v1458
    %v2755 = vunpack.c.l.b16 %v1459
    %v2756 = vunpack.c.l.b16 %v1460
    %v2757 = vunpack.c.h.b16 %v1460
    %v2758 = vunpack.c.l.b16 %v1461
    %v2759 = vunpack.c.h.b16 %v1461
    %v2760 = vunpack.c.l.b16 %v1462
    %v2761 = vunpack.c.l.b16 %v1463
    %v2762 = vunpack.c.h.b16 %v1463
    %v2763 = vunpack.c.l.b16 %v1464
    %v2764 = vunpack.c.h.b16 %v1464
    %v2765 = vunpack.c.l.b16 %v1465
    %v2766 = vunpack.c.l.b16 %v1466
    %v2767 = vunpack.c.h.b16 %v1466
    %v2768 = vunpack.c.l.b16 %v1467
    %v2769 = vunpack.c.h.b16 %v1467
    %v2770 = vunpack.c.l.b16 %v1468
    %v2771 = vunpack.c.l.b16 %v1469
    %v2772 = vunpack.c.h.b16 %v1469
    %v2773 = vunpack.c.l.b16 %v1470
    %v2774 = vunpack.c.h.b16 %v1470
    %v2775 = vunpack.c.l.b16 %v1471
    %v2776 = vunpack.c.l.b16 %v1472
    %v2777 = vunpack.c.h.b16 %v1472
    %v2778 = vunpack.c.l.b16 %v1473
    %v2779 = vunpack.c.h.b16 %v1473
    %v2780 = vunpack.c.l.b16 %v1474
    %v2781 = vunpack.c.l.b16 %v1475
    %v2782 = vunpack.c.h.b16 %v1475
    %v2783 = vunpack.c.l.b16 %v1476
    %v2784 = vunpack.c.h.b16 %v1476
    %v2785 = vunpack.c.l.b16 %v1477
    %v2786 = vunpack.c.l.b16 %v1478
    %v2787 = vunpack.c.h.b16 %v1478
    %v2788 = vunpack.c.l.b16 %v1479
    %v2789 = vunpack.c.h.b16 %v1479
    %v2790 = vunpack.c.l.b16 %v1480
    %v2791 = vunpack.c.l.b16 %v1481
    %v2792 = vunpack.c.h.b16 %v1481
    %v2793 = vunpack.c.l.b16 %v1482
    %v2794 = vunpack.c.h.b16 %v1482
    %v2795 = vunpack.c.l.b16 %v1483
    %v2796 = vunpack.c.l.b16 %v1484
    %v2797 = vunpack.c.h.b16 %v1484
    %v2798 = vunpack.c.l.b16 %v1485
    %v2799 = vunpack.c.h.b16 %v1485
    %v2800 = vunpack.c.l.b16 %v1486
    %v2801 = vunpack.c.l.b16 %v1487
    %v2802 = vunpack.c.h.b16 %v1487
    %v2803 = vunpack.c.l.b16 %v1488
    %v2804 = vunpack.c.h.b16 %v1488
    %v2805 = vunpack.c.l.b16 %v1489
    %v2806 = vunpack.c.l.b16 %v1490
    %v2807 = vunpack.c.h.b16 %v1490
    %v2808 = vunpack.c.l.b16 %v1491
    %v2809 = vunpack.c.h.b16 %v1491
    %v2810 = vunpack.c.l.b16 %v1492
    %v2811 = vunpack.c.l.b16 %v1493
    %v2812 = vunpack.c.h.b16 %v1493
    %v2813 = vunpack.c.l.b16 %v1494
    %v2814 = vunpack.c.h.b16 %v1494
    %v2815 = vunpack.c.l.b16 %v1495
    %v2816 = vunpack.c.l.b16 %v1496
    %v2817 = vunpack.c.h.b16 %v1496
    %v2818 = vunpack.c.l.b16 %v1497
    %v2819 = vunpack.c.h.b16 %v1497
    %v2820 = vunpack.c.l.b16 %v1498
    %v2821 = vunpack.c.l.b16 %v1499
    %v2822 = vunpack.c.h.b16 %v1499
    %v2823 = vunpack.c.l.b16 %v1500
    %v2824 = vunpack.c.h.b16 %v1500
    %v2825 = vunpack.c.l.b16 %v1501
    %v2826 = vunpack.c.l.b16 %v1502
    %v2827 = vunpack.c.h.b16 %v1502
    %v2828 = vunpack.c.l.b16 %v1503
    %v2829 = vunpack.c.h.b16 %v1503
    %v2830 = vunpack.c.l.b16 %v1504
    %v2831 = vunpack.c.l.b16 %v1505
    %v2832 = vunpack.c.h.b16 %v1505
    %v2833 = vunpack.c.l.b16 %v1506
    %v2834 = vunpack.c.h.b16 %v1506
    %v2835 = vunpack.c.l.b16 %v1507
    %v2836 = vunpack.c.l.b16 %v1508
    %v2837 = vunpack.c.h.b16 %v1508
    %v2838 = vunpack.c.l.b16 %v1509
    %v2839 = vunpack.c.h.b16 %v1509
    %v2840 = vunpack.c.l.b16 %v1510
    %v2841 = vunpack.c.l.b16 %v1511
    %v2842 = vunpack.c.h.b16 %v1511
    %v2843 = vunpack.c.l.b16 %v1512
    %v2844 = vunpack.c.h.b16 %v1512
    %v2845 = vunpack.c.l.b16 %v1513
    %v2846 = vunpack.c.l.b16 %v1514
    %v2847 = vunpack.c.h.b16 %v1514
    %v2848 = vunpack.c.l.b16 %v1515
    %v2849 = vunpack.c.h.b16 %v1515
    %v2850 = vunpack.c.l.b16 %v1516
    %v2851 = vunpack.c.l.b16 %v1517
    %v2852 = vunpack.c.h.b16 %v1517
    %v2853 = vunpack.c.l.b16 %v1518
    %v2854 = vunpack.c.h.b16 %v1518
    %v2855 = vunpack.c.l.b16 %v1519
    %v2856 = vunpack.c.l.b16 %v1520
    %v2857 = vunpack.c.h.b16 %v1520
    %v2858 = vunpack.c.l.b16 %v1521
    %v2859 = vunpack.c.h.b16 %v1521
    %v2860 = vunpack.c.l.b16 %v1522
    %v2861 = vunpack.c.l.b16 %v1523
    %v2862 = vunpack.c.h.b16 %v1523
    %v2863 = vunpack.c.l.b16 %v1524
    %v2864 = vunpack.c.h.b16 %v1524
    %v2865 = vunpack.c.l.b16 %v1525
    %v2866 = vunpack.c.l.b16 %v1526
    %v2867 = vunpack.c.h.b16 %v1526
    %v2868 = vunpack.c.l.b16 %v1527
    %v2869 = vunpack.c.h.b16 %v1527
    %v2870 = vunpack.c.l.b16 %v1528
    %v2871 = vunpack.c.l.b16 %v1529
    %v2872 = vunpack.c.h.b16 %v1529
    %v2873 = vunpack.c.l.b16 %v1530
    %v2874 = vunpack.c.h.b16 %v1530
    %v2875 = vunpack.c.l.b16 %v1531
    %v2876 = vunpack.c.l.b16 %v1532
    %v2877 = vunpack.c.h.b16 %v1532
    %v2878 = vunpack.c.l.b16 %v1533
    %v2879 = vunpack.c.h.b16 %v1533
    %v2880 = vunpack.c.l.b16 %v1534
    %v2881 = vunpack.c.l.b16 %v1535
    %v2882 = vunpack.c.h.b16 %v1535
    %v2883 = vunpack.c.l.b16 %v1536
    %v2884 = vunpack.c.h.b16 %v1536
    %v2885 = vunpack.c.l.b16 %v1537
    %v2886 = vunpack.c.l.b16 %v1538
    %v2887 = vunpack.c.h.b16 %v1538
    %v2888 = vunpack.c.l.b16 %v1539
    %v2889 = vunpack.c.h.b16 %v1539
    %v2890 = vunpack.c.l.b16 %v1540
    %v2891 = vunpack.c.l.b16 %v1541
    %v2892 = vunpack.c.h.b16 %v1541
    %v2893 = vunpack.c.l.b16 %v1542
    %v2894 = vunpack.c.h.b16 %v1542
    %v2895 = vunpack.c.l.b16 %v1543
    %v2896 = vunpack.c.l.b16 %v1544
    %v2897 = vunpack.c.h.b16 %v1544
    %v2898 = vunpack.c.l.b16 %v1545
    %v2899 = vunpack.c.h.b16 %v1545
    %v2900 = vunpack.c.l.b16 %v1546
    %v2901 = vunpack.c.l.b16 %v1547
    %v2902 = vunpack.c.h.b16 %v1547
    %v2903 = vunpack.c.l.b16 %v1548
    %v2904 = vunpack.c.h.b16 %v1548
    %v2905 = vunpack.c.l.b16 %v1549
    %v2906 = vunpack.c.l.b16 %v1550
    %v2907 = vunpack.c.h.b16 %v1550
    %v2908 = vunpack.c.l.b16 %v1551
    %v2909 = vunpack.c.h.b16 %v1551
    %v2910 = vunpack.c.l.b16 %v1552
    %v2911 = vunpack.c.l.b16 %v1553
    %v2912 = vunpack.c.h.b16 %v1553
    %v2913 = vunpack.c.l.b16 %v1554
    %v2914 = vunpack.c.h.b16 %v1554
    %v2915 = vunpack.c.l.b16 %v1555
    %v2916 = vunpack.c.l.b16 %v1556
    %v2917 = vunpack.c.h.b16 %v1556
    %v2918 = vunpack.c.l.b16 %v1557
    %v2919 = vunpack.c.h.b16 %v1557
    %v2920 = vunpack.c.l.b16 %v1558
    %v2921 = vunpack.c.l.b16 %v1559
    %v2922 = vunpack.c.h.b16 %v1559
    %v2923 = vunpack.c.l.b16 %v1560
    %v2924 = vunpack.c.h.b16 %v1560
    %v2925 = vunpack.c.l.b16 %v1561
    %v2926 = vunpack.c.l.b16 %v1562
    %v2927 = vunpack.c.h.b16 %v1562
    %v2928 = vunpack.c.l.b16 %v1563
    %v2929 = vunpack.c.h.b16 %v1563
    %v2930 = vunpack.c.l.b16 %v1564
    %v2931 = vunpack.c.l.b16 %v1565
    %v2932 = vunpack.c.h.b16 %v1565
    %v2933 = vunpack.c.l.b16 %v1566
    %v2934 = vunpack.c.h.b16 %v1566
    %v2935 = vunpack.c.l.b16 %v1567
    %v2936 = vunpack.c.l.b16 %v1568
    %v2937 = vunpack.c.h.b16 %v1568
    %v2938 = vunpack.c.l.b16 %v1569
    %v2939 = vunpack.c.h.b16 %v1569
    %v2940 = vunpack.c.l.b16 %v1570
    %v2941 = vunpack.c.l.b16 %v1571
    %v2942 = vunpack.c.h.b16 %v1571
    %v2943 = vunpack.c.l.b16 %v1572
    %v2944 = vunpack.c.h.b16 %v1572
    %v2945 = vunpack.c.l.b16 %v1573
    %v2946 = vunpack.c.l.b16 %v1574
    %v2947 = vunpack.c.h.b16 %v1574
    %v2948 = vunpack.c.l.b16 %v1575
    %v2949 = vunpack.c.h.b16 %v1575
    %v2950 = vunpack.c.l.b16 %v1576
    %v2951 = vunpack.c.l.b16 %v1577
    %v2952 = vunpack.c.h.b16 %v1577
    %v2953 = vunpack.c.l.b16 %v1578
    %v2954 = vunpack.c.h.b16 %v1578
    %v2955 = vunpack.c.l.b16 %v1579
    %v2956 = vunpack.c.l.b16 %v1580
    %v2957 = vunpack.c.h.b16 %v1580
    %v2958 = vunpack.c.l.b16 %v1581
    %v2959 = vunpack.c.h.b16 %v1581
    %v2960 = vunpack.c.l.b16 %v1582
    %v2961 = vunpack.c.l.b16 %v1583
    %v2962 = vunpack.c.h.b16 %v1583
    %v2963 = vunpack.c.l.b16 %v1584
    %v2964 = vunpack.c.h.b16 %v1584
    %v2965 = vunpack.c.l.b16 %v1585
    %v2966 = vunpack.c.l.b16 %v1586
    %v2967 = vunpack.c.h.b16 %v1586
    %v2968 = vunpack.c.l.b16 %v1587
    %v2969 = vunpack.c.h.b16 %v1587
    %v2970 = vunpack.c.l.b16 %v1588
    %v2971 = vunpack.c.l.b16 %v1589
    %v2972 = vunpack.c.h.b16 %v1589
    %v2973 = vunpack.c.l.b16 %v1590
    %v2974 = vunpack.c.h.b16 %v1590
    %v2975 = vunpack.c.l.b16 %v1591
    %v2976 = vunpack.c.l.b16 %v1592
    %v2977 = vunpack.c.h.b16 %v1592
    %v2978 = vunpack.c.l.b16 %v1593
    %v2979 = vunpack.c.h.b16 %v1593
    %v2980 = vunpack.c.l.b16 %v1594
    %v2981 = vunpack.c.l.b16 %v1595
    %v2982 = vunpack.c.h.b16 %v1595
    %v2983 = vunpack.c.l.b16 %v1596
    %v2984 = vunpack.c.h.b16 %v1596
    %v2985 = vunpack.c.l.b16 %v1597
    %v2986 = vunpack.c.l.b16 %v1598
    %v2987 = vunpack.c.h.b16 %v1598
    %v2988 = vunpack.c.l.b16 %v1599
    %v2989 = vunpack.c.h.b16 %v1599
    %v2990 = vunpack.c.l.b16 %v1600
    %v2991 = vunpack.c.l.b16 %v1601
    %v2992 = vunpack.c.h.b16 %v1601
    %v2993 = vunpack.c.l.b16 %v1602
    %v2994 = vunpack.c.h.b16 %v1602
    %v2995 = vunpack.c.l.b16 %v1603
    %v2996 = vunpack.c.l.b16 %v1604
    %v2997 = vunpack.c.h.b16 %v1604
    %v2998 = vunpack.c.l.b16 %v1605
    %v2999 = vunpack.c.h.b16 %v1605
    %v3000 = vunpack.c.l.b16 %v1606
    %v3001 = vunpack.c.l.b16 %v1607
    %v3002 = vunpack.c.h.b16 %v1607
    %v3003 = vunpack.c.l.b16 %v1608
    %v3004 = vunpack.c.h.b16 %v1608
    %v3005 = vunpack.c.l.b16 %v1609
    %v3006 = vunpack.c.l.b16 %v1610
    %v3007 = vunpack.c.h.b16 %v1610
    %v3008 = vunpack.c.l.b16 %v1611
    %v3009 = vunpack.c.h.b16 %v1611
    %v3010 = vunpack.c.l.b16 %v1612
    %v3011 = vunpack.c.l.b16 %v1613
    %v3012 = vunpack.c.h.b16 %v1613
    %v3013 = vunpack.c.l.b16 %v1614
    %v3014 = vunpack.c.h.b16 %v1614
    %v3015 = vunpack.c.l.b16 %v1615
    %v3016 = vunpack.c.l.b16 %v1616
    %v3017 = vunpack.c.h.b16 %v1616
    %v3018 = vunpack.c.l.b16 %v1617
    %v3019 = vunpack.c.h.b16 %v1617
    %v3020 = vunpack.c.l.b16 %v1618
    %v3021 = vunpack.c.l.b16 %v1619
    %v3022 = vunpack.c.h.b16 %v1619
    %v3023 = vunpack.c.l.b16 %v1620
    %v3024 = vunpack.c.h.b16 %v1620
    %v3025 = vunpack.c.l.b16 %v1621
    %v3026 = vunpack.c.l.b16 %v1622
    %v3027 = vunpack.c.h.b16 %v1622
    %v3028 = vunpack.c.l.b16 %v1623
    %v3029 = vunpack.c.h.b16 %v1623
    %v3030 = vunpack.c.l.b16 %v1624
    %v3031 = vunpack.c.l.b16 %v1625
    %v3032 = vunpack.c.h.b16 %v1625
    %v3033 = vunpack.c.l.b16 %v1626
    %v3034 = vunpack.c.h.b16 %v1626
    %v3035 = vunpack.c.l.b16 %v1627
    %v3036 = vunpack.c.l.b16 %v1628
    %v3037 = vunpack.c.h.b16 %v1628
    %v3038 = vunpack.c.l.b16 %v1629
    %v3039 = vunpack.c.h.b16 %v1629
    %v3040 = vunpack.c.l.b16 %v1630
    %v3041 = vunpack.c.l.b16 %v1631
    %v3042 = vunpack.c.h.b16 %v1631
    %v3043 = vunpack.c.l.b16 %v1632
    %v3044 = vunpack.c.h.b16 %v1632
    %v3045 = vunpack.c.l.b16 %v1633
    %v3046 = vunpack.c.l.b16 %v1634
    %v3047 = vunpack.c.h.b16 %v1634
    %v3048 = vunpack.c.l.b16 %v1635
    %v3049 = vunpack.c.h.b16 %v1635
    %v3050 = vunpack.c.l.b16 %v1636
    %v3051 = vunpack.c.l.b16 %v1637
    %v3052 = vunpack.c.h.b16 %v1637
    %v3053 = vunpack.c.l.b16 %v1638
    %v3054 = vunpack.c.h.b16 %v1638
    %v3055 = vunpack.c.l.b16 %v1639
    %v3056 = vunpack.c.l.b16 %v1640
    %v3057 = vunpack.c.h.b16 %v1640
    %v3058 = vunpack.c.l.b16 %v1641
    %v3059 = vunpack.c.h.b16 %v1641
    %v3060 = vunpack.c.l.b16 %v1642
    %v3061 = vunpack.c.l.b16 %v1643
    %v3062 = vunpack.c.h.b16 %v1643
    %v3063 = vunpack.c.l.b16 %v1644
    %v3064 = vunpack.c.h.b16 %v1644
    %v3065 = vunpack.c.l.b16 %v1645
    %v3066 = vunpack.c.l.b16 %v1646
    %v3067 = vunpack.c.h.b16 %v1646
    %v3068 = vunpack.c.l.b16 %v1647
    %v3069 = vunpack.c.h.b16 %v1647
    %v3070 = vunpack.c.l.b16 %v1648
    %v3071 = vunpack.c.l.b16 %v1649
    %v3072 = vunpack.c.h.b16 %v1649
    %v3073 = vunpack.c.l.b16 %v1650
    %v3074 = vunpack.c.h.b16 %v1650
    %v3075 = vunpack.c.l.b16 %v1651
    %v3076 = vunpack.c.l.b16 %v1652
    %v3077 = vunpack.c.h.b16 %v1652
    %v3078 = vunpack.c.l.b16 %v1653
    %v3079 = vunpack.c.h.b16 %v1653
    %v3080 = vunpack.c.l.b16 %v1654
    %v3081 = vunpack.c.l.b16 %v1655
    %v3082 = vunpack.c.h.b16 %v1655
    %v3083 = vunpack.c.l.b16 %v1656
    %v3084 = vunpack.c.h.b16 %v1656
    %v3085 = vunpack.c.l.b16 %v1657
    %v3086 = vunpack.c.l.b16 %v1658
    %v3087 = vunpack.c.h.b16 %v1658
    %v3088 = vunpack.c.l.b16 %v1659
    %v3089 = vunpack.c.h.b16 %v1659
    %v3090 = vunpack.c.l.b16 %v1660
    %v3091 = vunpack.c.l.b16 %v1661
    %v3092 = vunpack.c.h.b16 %v1661
    %v3093 = vunpack.c.l.b16 %v1662
    %v3094 = vunpack.c.h.b16 %v1662
    %v3095 = vunpack.c.l.b16 %v1663
    %v3096 = vunpack.c.l.b16 %v1664
    %v3097 = vunpack.c.h.b16 %v1664
    %v3098 = vunpack.c.l.b16 %v1665
    %v3099 = vunpack.c.h.b16 %v1665
    %v3100 = vunpack.c.l.b16 %v1666
    %v3101 = vunpack.c.l.b16 %v1667
    %v3102 = vunpack.c.h.b16 %v1667
    %v3103 = vunpack.c.l.b16 %v1668
    %v3104 = vunpack.c.h.b16 %v1668
    %v3105 = vunpack.c.l.b16 %v1669
    %v3106 = vunpack.c.l.b16 %v1670
    %v3107 = vunpack.c.h.b16 %v1670
    %v3108 = vunpack.c.l.b16 %v1671
    %v3109 = vunpack.c.h.b16 %v1671
    %v3110 = vunpack.c.l.b16 %v1672
    %v3111 = vunpack.c.l.b16 %v1673
    %v3112 = vunpack.c.h.b16 %v1673
    %v3113 = vunpack.c.l.b16 %v1674
    %v3114 = vunpack.c.h.b16 %v1674
    %v3115 = vunpack.c.l.b16 %v1675
    %v3116 = vunpack.c.l.b16 %v1676
    %v3117 = vunpack.c.h.b16 %v1676
    %v3118 = vunpack.c.l.b16 %v1677
    %v3119 = vunpack.c.h.b16 %v1677
    %v3120 = vunpack.c.l.b16 %v1678
    %v3121 = vunpack.c.l.b16 %v1679
    %v3122 = vunpack.c.h.b16 %v1679
    %v3123 = vunpack.c.l.b16 %v1680
    %v3124 = vunpack.c.h.b16 %v1680
    %v3125 = vunpack.c.l.b16 %v1681
    %v3126 = vunpack.c.l.b16 %v1682
    %v3127 = vunpack.c.h.b16 %v1682
    %v3128 = vunpack.c.l.b16 %v1683
    %v3129 = vunpack.c.h.b16 %v1683
    %v3130 = vunpack.c.l.b16 %v1684
    %v3131 = vunpack.c.l.b16 %v1685
    %v3132 = vunpack.c.h.b16 %v1685
    %v3133 = vunpack.c.l.b16 %v1686
    %v3134 = vunpack.c.h.b16 %v1686
    %v3135 = vunpack.c.l.b16 %v1687
    %v3136 = vunpack.c.l.b16 %v1688
    %v3137 = vunpack.c.h.b16 %v1688
    %v3138 = vunpack.c.l.b16 %v1689
    %v3139 = vunpack.c.h.b16 %v1689
    %v3140 = vunpack.c.l.b16 %v1690
    %v3141 = vunpack.c.l.b16 %v1691
    %v3142 = vunpack.c.h.b16 %v1691
    %v3143 = vunpack.c.l.b16 %v1692
    %v3144 = vunpack.c.h.b16 %v1692
    %v3145 = vunpack.c.l.b16 %v1693
    %v3146 = vunpack.c.l.b16 %v1694
    %v3147 = vunpack.c.h.b16 %v1694
    %v3148 = vunpack.c.l.b16 %v1695
    %v3149 = vunpack.c.h.b16 %v1695
    %v3150 = vunpack.c.l.b16 %v1696
    %v3151 = vunpack.c.l.b16 %v1697
    %v3152 = vunpack.c.h.b16 %v1697
    %v3153 = vunpack.c.l.b16 %v1698
    %v3154 = vunpack.c.h.b16 %v1698
    %v3155 = vunpack.c.l.b16 %v1699
    %v3156 = vunpack.c.l.b16 %v1700
    %v3157 = vunpack.c.h.b16 %v1700
    %v3158 = vunpack.c.l.b16 %v1701
    %v3159 = vunpack.c.h.b16 %v1701
    %v3160 = vunpack.c.l.b16 %v1702
    %v3161 = vunpack.c.l.b16 %v1703
    %v3162 = vunpack.c.h.b16 %v1703
    %v3163 = vunpack.c.l.b16 %v1704
    %v3164 = vunpack.c.h.b16 %v1704
    %v3165 = vunpack.c.l.b16 %v1705
    %v3166 = vpack.c.b16 %v2266, %v2261
    %v3167 = vpack.c.b16 %v2267, %v2262
    %v3168 = vpack.c.b16 %v2268, %v2263
    %v3169 = vpack.c.b16 %v2269, %v2264
    %v3170 = vpack.c.b16 %v2270, %v2265
    %v3171 = vpack.c.b16 %v2276, %v2271
    %v3172 = vpack.c.b16 %v2277, %v2272
    %v3173 = vpack.c.b16 %v2278, %v2273
    %v3174 = vpack.c.b16 %v2279, %v2274
    %v3175 = vpack.c.b16 %v2280, %v2275
    %v3176 = vpack.c.b16 %v2286, %v2281
    %v3177 = vpack.c.b16 %v2287, %v2282
    %v3178 = vpack.c.b16 %v2288, %v2283
    %v3179 = vpack.c.b16 %v2289, %v2284
    %v3180 = vpack.c.b16 %v2290, %v2285
    %v3181 = vpack.c.b16 %v2296, %v2291
    %v3182 = vpack.c.b16 %v2297, %v2292
    %v3183 = vpack.c.b16 %v2298, %v2293
    %v3184 = vpack.c.b16 %v2299, %v2294
    %v3185 = vpack.c.b16 %v2300, %v2295
    %v3186 = vpack.c.b16 %v2306, %v2301
    %v3187 = vpack.c.b16 %v2307, %v2302
    %v3188 = vpack.c.b16 %v2308, %v2303
    %v3189 = vpack.c.b16 %v2309, %v2304
    %v3190 = vpack.c.b16 %v2310, %v2305
    %v3191 = vpack.c.b16 %v2316, %v2311
    %v3192 = vpack.c.b16 %v2317, %v2312
    %v3193 = vpack.c.b16 %v2318, %v2313
    %v3194 = vpack.c.b16 %v2319, %v2314
    %v3195 = vpack.c.b16 %v2320, %v2315
    %v3196 = vpack.c.b16 %v2326, %v2321
    %v3197 = vpack.c.b16 %v2327, %v2322
    %v3198 = vpack.c.b16 %v2328, %v2323
    %v3199 = vpack.c.b16 %v2329, %v2324
    %v3200 = vpack.c.b16 %v2330, %v2325
    %v3201 = vpack.c.b16 %v2336, %v2331
    %v3202 = vpack.c.b16 %v2337, %v2332
    %v3203 = vpack.c.b16 %v2338, %v2333
    %v3204 = vpack.c.b16 %v2339, %v2334
    %v3205 = vpack.c.b16 %v2340, %v2335
    %v3206 = vpack.c.b16 %v2346, %v2341
    %v3207 = vpack.c.b16 %v2347, %v2342
    %v3208 = vpack.c.b16 %v2348, %v2343
    %v3209 = vpack.c.b16 %v2349, %v2344
    %v3210 = vpack.c.b16 %v2350, %v2345
    %v3211 = vpack.c.b16 %v2356, %v2351
    %v3212 = vpack.c.b16 %v2357, %v2352
    %v3213 = vpack.c.b16 %v2358, %v2353
    %v3214 = vpack.c.b16 %v2359, %v2354
    %v3215 = vpack.c.b16 %v2360, %v2355
    %v3216 = vpack.c.b16 %v2366, %v2361
    %v3217 = vpack.c.b16 %v2367, %v2362
    %v3218 = vpack.c.b16 %v2368, %v2363
    %v3219 = vpack.c.b16 %v2369, %v2364
    %v3220 = vpack.c.b16 %v2370, %v2365
    %v3221 = vpack.c.b16 %v2376, %v2371
    %v3222 = vpack.c.b16 %v2377, %v2372
    %v3223 = vpack.c.b16 %v2378, %v2373
    %v3224 = vpack.c.b16 %v2379, %v2374
    %v3225 = vpack.c.b16 %v2380, %v2375
    %v3226 = vpack.c.b16 %v2386, %v2381
    %v3227 = vpack.c.b16 %v2387, %v2382
    %v3228 = vpack.c.b16 %v2388, %v2383
    %v3229 = vpack.c.b16 %v2389, %v2384
    %v3230 = vpack.c.b16 %v2390, %v2385
    %v3231 = vpack.c.b16 %v2396, %v2391
    %v3232 = vpack.c.b16 %v2397, %v2392
    %v3233 = vpack.c.b16 %v2398, %v2393
    %v3234 = vpack.c.b16 %v2399, %v2394
    %v3235 = vpack.c.b16 %v2400, %v2395
    %v3236 = vpack.c.b16 %v2406, %v2401
    %v3237 = vpack.c.b16 %v2407, %v2402
    %v3238 = vpack.c.b16 %v2408, %v2403
    %v3239 = vpack.c.b16 %v2409, %v2404
    %v3240 = vpack.c.b16 %v2410, %v2405
    %v3241 = vpack.c.b16 %v2416, %v2411
    %v3242 = vpack.c.b16 %v2417, %v2412
    %v3243 = vpack.c.b16 %v2418, %v2413
    %v3244 = vpack.c.b16 %v2419, %v2414
    %v3245 = vpack.c.b16 %v2420, %v2415
    %v3246 = vpack.c.b16 %v2426, %v2421
    %v3247 = vpack.c.b16 %v2427, %v2422
    %v3248 = vpack.c.b16 %v2428, %v2423
    %v3249 = vpack.c.b16 %v2429, %v2424
    %v3250 = vpack.c.b16 %v2430, %v2425
    %v3251 = vpack.c.b16 %v2436, %v2431
    %v3252 = vpack.c.b16 %v2437, %v2432
    %v3253 = vpack.c.b16 %v2438, %v2433
    %v3254 = vpack.c.b16 %v2439, %v2434
    %v3255 = vpack.c.b16 %v2440, %v2435
    %v3256 = vpack.c.b16 %v2446, %v2441
    %v3257 = vpack.c.b16 %v2447, %v2442
    %v3258 = vpack.c.b16 %v2448, %v2443
    %v3259 = vpack.c.b16 %v2449, %v2444
    %v3260 = vpack.c.b16 %v2450, %v2445
    %v3261 = vpack.c.b16 %v2456, %v2451
    %v3262 = vpack.c.b16 %v2457, %v2452
    %v3263 = vpack.c.b16 %v2458, %v2453
    %v3264 = vpack.c.b16 %v2459, %v2454
    %v3265 = vpack.c.b16 %v2460, %v2455
    %v3266 = vpack.c.b16 %v2466, %v2461
    %v3267 = vpack.c.b16 %v2467, %v2462
    %v3268 = vpack.c.b16 %v2468, %v2463
    %v3269 = vpack.c.b16 %v2469, %v2464
    %v3270 = vpack.c.b16 %v2470, %v2465
    %v3271 = vpack.c.b16 %v2476, %v2471
    %v3272 = vpack.c.b16 %v2477, %v2472
    %v3273 = vpack.c.b16 %v2478, %v2473
    %v3274 = vpack.c.b16 %v2479, %v2474
    %v3275 = vpack.c.b16 %v2480, %v2475
    %v3276 = vpack.c.b16 %v2486, %v2481
    %v3277 = vpack.c.b16 %v2487, %v2482
    %v3278 = vpack.c.b16 %v2488, %v2483
    %v3279 = vpack.c.b16 %v2489, %v2484
    %v3280 = vpack.c.b16 %v2490, %v2485
    %v3281 = vpack.c.b16 %v2496, %v2491
    %v3282 = vpack.c.b16 %v2497, %v2492
    %v3283 = vpack.c.b16 %v2498, %v2493
    %v3284 = vpack.c.b16 %v2499, %v2494
    %v3285 = vpack.c.b16 %v2500, %v2495
    %v3286 = vpack.c.b16 %v2506, %v2501
    %v3287 = vpack.c.b16 %v2507, %v2502
    %v3288 = vpack.c.b16 %v2508, %v2503
    %v3289 = vpack.c.b16 %v2509, %v2504
    %v3290 = vpack.c.b16 %v2510, %v2505
    %v3291 = vpack.c.b16 %v2516, %v2511
    %v3292 = vpack.c.b16 %v2517, %v2512
    %v3293 = vpack.c.b16 %v2518, %v2513
    %v3294 = vpack.c.b16 %v2519, %v2514
    %v3295 = vpack.c.b16 %v2520, %v2515
    %v3296 = vpack.c.b16 %v2526, %v2521
    %v3297 = vpack.c.b16 %v2527, %v2522
    %v3298 = vpack.c.b16 %v2528, %v2523
    %v3299 = vpack.c.b16 %v2529, %v2524
    %v3300 = vpack.c.b16 %v2530, %v2525
    %v3301 = vpack.c.b16 %v2536, %v2531
    %v3302 = vpack.c.b16 %v2537, %v2532
    %v3303 = vpack.c.b16 %v2538, %v2533
    %v3304 = vpack.c.b16 %v2539, %v2534
    %v3305 = vpack.c.b16 %v2540, %v2535
    %v3306 = vpack.c.b16 %v2546, %v2541
    %v3307 = vpack.c.b16 %v2547, %v2542
    %v3308 = vpack.c.b16 %v2548, %v2543
    %v3309 = vpack.c.b16 %v2549, %v2544
    %v3310 = vpack.c.b16 %v2550, %v2545
    %v3311 = vpack.c.b16 %v2556, %v2551
    %v3312 = vpack.c.b16 %v2557, %v2552
    %v3313 = vpack.c.b16 %v2558, %v2553
    %v3314 = vpack.c.b16 %v2559, %v2554
    %v3315 = vpack.c.b16 %v2560, %v2555
    %v3316 = vpack.c.b16 %v2566, %v2561
    %v3317 = vpack.c.b16 %v2567, %v2562
    %v3318 = vpack.c.b16 %v2568, %v2563
    %v3319 = vpack.c.b16 %v2569, %v2564
    %v3320 = vpack.c.b16 %v2570, %v2565
    %v3321 = vpack.c.b16 %v2576, %v2571
    %v3322 = vpack.c.b16 %v2577, %v2572
    %v3323 = vpack.c.b16 %v2578, %v2573
    %v3324 = vpack.c.b16 %v2579, %v2574
    %v3325 = vpack.c.b16 %v2580, %v2575
    %v3326 = vpack.c.b16 %v2586, %v2581
    %v3327 = vpack.c.b16 %v2587, %v2582
    %v3328 = vpack.c.b16 %v2588, %v2583
    %v3329 = vpack.c.b16 %v2589, %v2584
    %v3330 = vpack.c.b16 %v2590, %v2585
    %v3331 = vpack.c.b16 %v2596, %v2591
    %v3332 = vpack.c.b16 %v2597, %v2592
    %v3333 = vpack.c.b16 %v2598, %v2593
    %v3334 = vpack.c.b16 %v2599, %v2594
    %v3335 = vpack.c.b16 %v2600, %v2595
    %v3336 = vpack.c.b16 %v2606, %v2601
    %v3337 = vpack.c.b16 %v2607, %v2602
    %v3338 = vpack.c.b16 %v2608, %v2603
    %v3339 = vpack.c.b16 %v2609, %v2604
    %v3340 = vpack.c.b16 %v2610, %v2605
    %v3341 = vpack.c.b16 %v2616, %v2611
    %v3342 = vpack.c.b16 %v2617, %v2612
    %v3343 = vpack.c.b16 %v2618, %v2613
    %v3344 = vpack.c.b16 %v2619, %v2614
    %v3345 = vpack.c.b16 %v2620, %v2615
    %v3346 = vpack.c.b16 %v2626, %v2621
    %v3347 = vpack.c.b16 %v2627, %v2622
    %v3348 = vpack.c.b16 %v2628, %v2623
    %v3349 = vpack.c.b16 %v2629, %v2624
    %v3350 = vpack.c.b16 %v2630, %v2625
    %v3351 = vpack.c.b16 %v2636, %v2631
    %v3352 = vpack.c.b16 %v2637, %v2632
    %v3353 = vpack.c.b16 %v2638, %v2633
    %v3354 = vpack.c.b16 %v2639, %v2634
    %v3355 = vpack.c.b16 %v2640, %v2635
    %v3356 = vpack.c.b16 %v2646, %v2641
    %v3357 = vpack.c.b16 %v2647, %v2642
    %v3358 = vpack.c.b16 %v2648, %v2643
    %v3359 = vpack.c.b16 %v2649, %v2644
    %v3360 = vpack.c.b16 %v2650, %v2645
    %v3361 = vpack.c.b16 %v2656, %v2651
    %v3362 = vpack.c.b16 %v2657, %v2652
    %v3363 = vpack.c.b16 %v2658, %v2653
    %v3364 = vpack.c.b16 %v2659, %v2654
    %v3365 = vpack.c.b16 %v2660, %v2655
    %v3366 = vpack.c.b16 %v2666, %v2661
    %v3367 = vpack.c.b16 %v2667, %v2662
    %v3368 = vpack.c.b16 %v2668, %v2663
    %v3369 = vpack.c.b16 %v2669, %v2664
    %v3370 = vpack.c.b16 %v2670, %v2665
    %v3371 = vpack.c.b16 %v2676, %v2671
    %v3372 = vpack.c.b16 %v2677, %v2672
    %v3373 = vpack.c.b16 %v2678, %v2673
    %v3374 = vpack.c.b16 %v2679, %v2674
    %v3375 = vpack.c.b16 %v2680, %v2675
    %v3376 = vpack.c.b16 %v2686, %v2681
    %v3377 = vpack.c.b16 %v2687, %v2682
    %v3378 = vpack.c.b16 %v2688, %v2683
    %v3379 = vpack.c.b16 %v2689, %v2684
    %v3380 = vpack.c.b16 %v2690, %v2685
    %v3381 = vpack.c.b16 %v2696, %v2691
    %v3382 = vpack.c.b16 %v2697, %v2692
    %v3383 = vpack.c.b16 %v2698, %v2693
    %v3384 = vpack.c.b16 %v2699, %v2694
    %v3385 = vpack.c.b16 %v2700, %v2695
    %v3386 = vpack.c.b16 %v2706, %v2701
    %v3387 = vpack.c.b16 %v2707, %v2702
    %v3388 = vpack.c.b16 %v2708, %v2703
    %v3389 = vpack.c.b16 %v2709, %v2704
    %v3390 = vpack.c.b16 %v2710, %v2705
    %v3391 = vpack.c.b16 %v2716, %v2711
    %v3392 = vpack.c.b16 %v2717, %v2712
    %v3393 = vpack.c.b16 %v2718, %v2713
    %v3394 = vpack.c.b16 %v2719, %v2714
    %v3395 = vpack.c.b16 %v2720, %v2715
    %v3396 = vpack.c.b16 %v2726, %v2721
    %v3397 = vpack.c.b16 %v2727, %v2722
    %v3398 = vpack.c.b16 %v2728, %v2723
    %v3399 = vpack.c.b16 %v2729, %v2724
    %v3400 = vpack.c.b16 %v2730, %v2725
    %v3401 = vpack.c.b16 %v2736, %v2731
    %v3402 = vpack.c.b16 %v2737, %v2732
    %v3403 = vpack.c.b16 %v2738, %v2733
    %v3404 = vpack.c.b16 %v2739, %v2734
    %v3405 = vpack.c.b16 %v2740, %v2735
    %v3406 = vpack.c.b16 %v2746, %v2741
    %v3407 = vpack.c.b16 %v2747, %v2742
    %v3408 = vpack.c.b16 %v2748, %v2743
    %v3409 = vpack.c.b16 %v2749, %v2744
    %v3410 = vpack.c.b16 %v2750, %v2745
    %v3411 = vpack.c.b16 %v2756, %v2751
    %v3412 = vpack.c.b16 %v2757, %v2752
    %v3413 = vpack.c.b16 %v2758, %v2753
    %v3414 = vpack.c.b16 %v2759, %v2754
    %v3415 = vpack.c.b16 %v2760, %v2755
    %v3416 = vpack.c.b16 %v2766, %v2761
    %v3417 = vpack.c.b16 %v2767, %v2762
    %v3418 = vpack.c.b16 %v2768, %v2763
    %v3419 = vpack.c.b16 %v2769, %v2764
    %v3420 = vpack.c.b16 %v2770, %v2765
    %v3421 = vpack.c.b16 %v2776, %v2771
    %v3422 = vpack.c.b16 %v2777, %v2772
    %v3423 = vpack.c.b16 %v2778, %v2773
    %v3424 = vpack.c.b16 %v2779, %v2774
    %v3425 = vpack.c.b16 %v2780, %v2775
    %v3426 = vpack.c.b16 %v2786, %v2781
    %v3427 = vpack.c.b16 %v2787, %v2782
    %v3428 = vpack.c.b16 %v2788, %v2783
    %v3429 = vpack.c.b16 %v2789, %v2784
    %v3430 = vpack.c.b16 %v2790, %v2785
    %v3431 = vpack.c.b16 %v2796, %v2791
    %v3432 = vpack.c.b16 %v2797, %v2792
    %v3433 = vpack.c.b16 %v2798, %v2793
    %v3434 = vpack.c.b16 %v2799, %v2794
    %v3435 = vpack.c.b16 %v2800, %v2795
    %v3436 = vpack.c.b16 %v2806, %v2801
    %v3437 = vpack.c.b16 %v2807, %v2802
    %v3438 = vpack.c.b16 %v2808, %v2803
    %v3439 = vpack.c.b16 %v2809, %v2804
    %v3440 = vpack.c.b16 %v2810, %v2805
    %v3441 = vpack.c.b16 %v2816, %v2811
    %v3442 = vpack.c.b16 %v2817, %v2812
    %v3443 = vpack.c.b16 %v2818, %v2813
    %v3444 = vpack.c.b16 %v2819, %v2814
    %v3445 = vpack.c.b16 %v2820, %v2815
    %v3446 = vpack.c.b16 %v2826, %v2821
    %v3447 = vpack.c.b16 %v2827, %v2822
    %v3448 = vpack.c.b16 %v2828, %v2823
    %v3449 = vpack.c.b16 %v2829, %v2824
    %v3450 = vpack.c.b16 %v2830, %v2825
    %v3451 = vpack.c.b16 %v2836, %v2831
    %v3452 = vpack.c.b16 %v2837, %v2832
    %v3453 = vpack.c.b16 %v2838, %v2833
    %v3454 = vpack.c.b16 %v2839, %v2834
    %v3455 = vpack.c.b16 %v2840, %v2835
    %v3456 = vpack.c.b16 %v2846, %v2841
    %v3457 = vpack.c.b16 %v2847, %v2842
    %v3458 = vpack.c.b16 %v2848, %v2843
    %v3459 = vpack.c.b16 %v2849, %v2844
    %v3460 = vpack.c.b16 %v2850, %v2845
    %v3461 = vpack.c.b16 %v2856, %v2851
    %v3462 = vpack.c.b16 %v2857, %v2852
    %v3463 = vpack.c.b16 %v2858, %v2853
    %v3464 = vpack.c.b16 %v2859, %v2854
    %v3465 = vpack.c.b16 %v2860, %v2855
    %v3466 = vpack.c.b16 %v2866, %v2861
    %v3467 = vpack.c.b16 %v2867, %v2862
    %v3468 = vpack.c.b16 %v2868, %v2863
    %v3469 = vpack.c.b16 %v2869, %v2864
    %v3470 = vpack.c.b16 %v2870, %v2865
    %v3471 = vpack.c.b16 %v2876, %v2871
    %v3472 = vpack.c.b16 %v2877, %v2872
    %v3473 = vpack.c.b16 %v2878, %v2873
    %v3474 = vpack.c.b16 %v2879, %v2874
    %v3475 = vpack.c.b16 %v2880, %v2875
    %v3476 = vpack.c.b16 %v2886, %v2881
    %v3477 = vpack.c.b16 %v2887, %v2882
    %v3478 = vpack.c.b16 %v2888, %v2883
    %v3479 = vpack.c.b16 %v2889, %v2884
    %v3480 = vpack.c.b16 %v2890, %v2885
    %v3481 = vpack.c.b16 %v2896, %v2891
    %v3482 = vpack.c.b16 %v2897, %v2892
    %v3483 = vpack.c.b16 %v2898, %v2893
    %v3484 = vpack.c.b16 %v2899, %v2894
    %v3485 = vpack.c.b16 %v2900, %v2895
    %v3486 = vpack.c.b16 %v2906, %v2901
    %v3487 = vpack.c.b16 %v2907, %v2902
    %v3488 = vpack.c.b16 %v2908, %v2903
    %v3489 = vpack.c.b16 %v2909, %v2904
    %v3490 = vpack.c.b16 %v2910, %v2905
    %v3491 = vpack.c.b16 %v2916, %v2911
    %v3492 = vpack.c.b16 %v2917, %v2912
    %v3493 = vpack.c.b16 %v2918, %v2913
    %v3494 = vpack.c.b16 %v2919, %v2914
    %v3495 = vpack.c.b16 %v2920, %v2915
    %v3496 = vpack.c.b16 %v2926, %v2921
    %v3497 = vpack.c.b16 %v2927, %v2922
    %v3498 = vpack.c.b16 %v2928, %v2923
    %v3499 = vpack.c.b16 %v2929, %v2924
    %v3500 = vpack.c.b16 %v2930, %v2925
    %v3501 = vpack.c.b16 %v2936, %v2931
    %v3502 = vpack.c.b16 %v2937, %v2932
    %v3503 = vpack.c.b16 %v2938, %v2933
    %v3504 = vpack.c.b16 %v2939, %v2934
    %v3505 = vpack.c.b16 %v2940, %v2935
    %v3506 = vpack.c.b16 %v2946, %v2941
    %v3507 = vpack.c.b16 %v2947, %v2942
    %v3508 = vpack.c.b16 %v2948, %v2943
    %v3509 = vpack.c.b16 %v2949, %v2944
    %v3510 = vpack.c.b16 %v2950, %v2945
    %v3511 = vpack.c.b16 %v2956, %v2951
    %v3512 = vpack.c.b16 %v2957, %v2952
    %v3513 = vpack.c.b16 %v2958, %v2953
    %v3514 = vpack.c.b16 %v2959, %v2954
    %v3515 = vpack.c.b16 %v2960, %v2955
    %v3516 = vpack.c.b16 %v2966, %v2961
    %v3517 = vpack.c.b16 %v2967, %v2962
    %v3518 = vpack.c.b16 %v2968, %v2963
    %v3519 = vpack.c.b16 %v2969, %v2964
    %v3520 = vpack.c.b16 %v2970, %v2965
    %v3521 = vpack.c.b16 %v2976, %v2971
    %v3522 = vpack.c.b16 %v2977, %v2972
    %v3523 = vpack.c.b16 %v2978, %v2973
    %v3524 = vpack.c.b16 %v2979, %v2974
    %v3525 = vpack.c.b16 %v2980, %v2975
    %v3526 = vpack.c.b16 %v2986, %v2981
    %v3527 = vpack.c.b16 %v2987, %v2982
    %v3528 = vpack.c.b16 %v2988, %v2983
    %v3529 = vpack.c.b16 %v2989, %v2984
    %v3530 = vpack.c.b16 %v2990, %v2985
    %v3531 = vpack.c.b16 %v2996, %v2991
    %v3532 = vpack.c.b16 %v2997, %v2992
    %v3533 = vpack.c.b16 %v2998, %v2993
    %v3534 = vpack.c.b16 %v2999, %v2994
    %v3535 = vpack.c.b16 %v3000, %v2995
    %v3536 = vpack.c.b16 %v3006, %v3001
    %v3537 = vpack.c.b16 %v3007, %v3002
    %v3538 = vpack.c.b16 %v3008, %v3003
    %v3539 = vpack.c.b16 %v3009, %v3004
    %v3540 = vpack.c.b16 %v3010, %v3005
    %v3541 = vpack.c.b16 %v3016, %v3011
    %v3542 = vpack.c.b16 %v3017, %v3012
    %v3543 = vpack.c.b16 %v3018, %v3013
    %v3544 = vpack.c.b16 %v3019, %v3014
    %v3545 = vpack.c.b16 %v3020, %v3015
    %v3546 = vpack.c.b16 %v3026, %v3021
    %v3547 = vpack.c.b16 %v3027, %v3022
    %v3548 = vpack.c.b16 %v3028, %v3023
    %v3549 = vpack.c.b16 %v3029, %v3024
    %v3550 = vpack.c.b16 %v3030, %v3025
    %v3551 = vpack.c.b16 %v3036, %v3031
    %v3552 = vpack.c.b16 %v3037, %v3032
    %v3553 = vpack.c.b16 %v3038, %v3033
    %v3554 = vpack.c.b16 %v3039, %v3034
    %v3555 = vpack.c.b16 %v3040, %v3035
    %v3556 = vpack.c.b16 %v3046, %v3041
    %v3557 = vpack.c.b16 %v3047, %v3042
    %v3558 = vpack.c.b16 %v3048, %v3043
    %v3559 = vpack.c.b16 %v3049, %v3044
    %v3560 = vpack.c.b16 %v3050, %v3045
    %v3561 = vpack.c.b16 %v3056, %v3051
    %v3562 = vpack.c.b16 %v3057, %v3052
    %v3563 = vpack.c.b16 %v3058, %v3053
    %v3564 = vpack.c.b16 %v3059, %v3054
    %v3565 = vpack.c.b16 %v3060, %v3055
    %v3566 = vpack.c.b16 %v3066, %v3061
    %v3567 = vpack.c.b16 %v3067, %v3062
    %v3568 = vpack.c.b16 %v3068, %v3063
    %v3569 = vpack.c.b16 %v3069, %v3064
    %v3570 = vpack.c.b16 %v3070, %v3065
    %v3571 = vpack.c.b16 %v3076, %v3071
    %v3572 = vpack.c.b16 %v3077, %v3072
    %v3573 = vpack.c.b16 %v3078, %v3073
    %v3574 = vpack.c.b16 %v3079, %v3074
    %v3575 = vpack.c.b16 %v3080, %v3075
    %v3576 = vpack.c.b16 %v3086, %v3081
    %v3577 = vpack.c.b16 %v3087, %v3082
    %v3578 = vpack.c.b16 %v3088, %v3083
    %v3579 = vpack.c.b16 %v3089, %v3084
    %v3580 = vpack.c.b16 %v3090, %v3085
    %v3581 = vpack.c.b16 %v3096, %v3091
    %v3582 = vpack.c.b16 %v3097, %v3092
    %v3583 = vpack.c.b16 %v3098, %v3093
    %v3584 = vpack.c.b16 %v3099, %v3094
    %v3585 = vpack.c.b16 %v3100, %v3095
    %v3586 = vpack.c.b16 %v3106, %v3101
    %v3587 = vpack.c.b16 %v3107, %v3102
    %v3588 = vpack.c.b16 %v3108, %v3103
    %v3589 = vpack.c.b16 %v3109, %v3104
    %v3590 = vpack.c.b16 %v3110, %v3105
    %v3591 = vpack.c.b16 %v3116, %v3111
    %v3592 = vpack.c.b16 %v3117, %v3112
    %v3593 = vpack.c.b16 %v3118, %v3113
    %v3594 = vpack.c.b16 %v3119, %v3114
    %v3595 = vpack.c.b16 %v3120, %v3115
    %v3596 = vpack.c.b16 %v3126, %v3121
    %v3597 = vpack.c.b16 %v3127, %v3122
    %v3598 = vpack.c.b16 %v3128, %v3123
    %v3599 = vpack.c.b16 %v3129, %v3124
    %v3600 = vpack.c.b16 %v3130, %v3125
    %v3601 = vpack.c.b16 %v3136, %v3131
    %v3602 = vpack.c.b16 %v3137, %v3132
    %v3603 = vpack.c.b16 %v3138, %v3133
    %v3604 = vpack.c.b16 %v3139, %v3134
    %v3605 = vpack.c.b16 %v3140, %v3135
    %v3606 = vpack.c.b16 %v3146, %v3141
    %v3607 = vpack.c.b16 %v3147, %v3142
    %v3608 = vpack.c.b16 %v3148, %v3143
    %v3609 = vpack.c.b16 %v3149, %v3144
    %v3610 = vpack.c.b16 %v3150, %v3145
    %v3611 = vpack.c.b16 %v3156, %v3151
    %v3612 = vpack.c.b16 %v3157, %v3152
    %v3613 = vpack.c.b16 %v3158, %v3153
    %v3614 = vpack.c.b16 %v3159, %v3154
    %v3615 = vpack.c.b16 %v3160, %v3155
    %v3616 = vpack.c.b16 %v3161, %v3161
    %v3617 = vpack.c.b16 %v3162, %v3162
    %v3618 = vpack.c.b16 %v3163, %v3163
    %v3619 = vpack.c.b16 %v3164, %v3164
    %v3620 = vpack.c.b16 %v3165, %v3165
    %vm4071 = vcmask 326656
    %v4073 = vsel %vm4071, %v1717, 0
    %v4076 = vsel %vm361, %v3616, 0
    %v4079 = vsel %vm361, %v3617, 0
    %v4082 = vsel %vm361, %v3618, 0
    %v4085 = vsel %vm361, %v3619, 0
    %v4088 = vsel %vm361, %v3620, 0
    %4090 = vmatprep.subr.bf16.mxu0 %v3167
    %4091 = vmatpush1.bf16.msra.mxu0 %v3166
    %4092 = vmatprep.subr.bf16.mxu0 %v3172
    %4093 = vmatpush1.bf16.msra.mxu0 %v3171
    %4094 = vmatprep.subr.bf16.mxu0 %v3177
    %4095 = vmatpush1.bf16.msra.mxu0 %v3176
    %4096 = vmatprep.subr.bf16.mxu0 %v3182
    %4097 = vmatpush1.bf16.msra.mxu0 %v3181
    %4098 = vmatprep.subr.bf16.mxu0 %v3187
    %4099 = vmatpush1.bf16.msra.mxu0 %v3186
    %4100 = vmatprep.subr.bf16.mxu0 %v3192
    %4101 = vmatpush1.bf16.msra.mxu0 %v3191
    %4102 = vmatprep.subr.bf16.mxu0 %v3197
    %4103 = vmatpush1.bf16.msra.mxu0 %v3196
    %4104 = vmatprep.subr.bf16.mxu0 %v3202
    %4105 = vmatpush1.bf16.msra.mxu0 %v3201
    %4106 = vmatprep.subr.bf16.mxu0 %v3207
    %4107 = vmatpush1.bf16.msra.mxu0 %v3206
    %4108 = vmatprep.subr.bf16.mxu0 %v3212
    %4109 = vmatpush1.bf16.msra.mxu0 %v3211
    %4110 = vmatprep.subr.bf16.mxu0 %v3217
    %4111 = vmatpush1.bf16.msra.mxu0 %v3216
    %4112 = vmatprep.subr.bf16.mxu0 %v3222
    %4113 = vmatpush1.bf16.msra.mxu0 %v3221
    %4114 = vmatprep.subr.bf16.mxu0 %v3227
    %4115 = vmatpush1.bf16.msra.mxu0 %v3226
    %4116 = vmatprep.subr.bf16.mxu0 %v3232
    %4117 = vmatpush1.bf16.msra.mxu0 %v3231
    %4118 = vmatprep.subr.bf16.mxu0 %v3237
    %4119 = vmatpush1.bf16.msra.mxu0 %v3236
    %4120 = vmatprep.subr.bf16.mxu0 %v3242
    %4121 = vmatpush1.bf16.msra.mxu0 %v3241
    %4122 = vmatprep.mubr.bf16.mxu0 %v1707
    %4123 = vmatmul.mubr.bf16.gmra.mrb[0].mxu0 %v1706
    %v4124 = vpop.f32.mrb[0].mxu0
    %v4125 = vadd.f32 0.0, %v4124
    %v4126 = vpop.f32.mrb[0].mxu0
    %v4127 = vadd.f32 0.0, %v4126
    %v4128 = vpop.f32.mrb[0].mxu0
    %v4129 = vpop.f32.mrb[0].mxu0
    %4130 = vdwg.mxu0
    %4131 = vmatprep.subr.bf16.mxu0 %v3247
    %4132 = vmatpush1.bf16.msra.mxu0 %v3246
    %4133 = vmatprep.subr.bf16.mxu0 %v3252
    %4134 = vmatpush1.bf16.msra.mxu0 %v3251
    %4135 = vmatprep.subr.bf16.mxu0 %v3257
    %4136 = vmatpush1.bf16.msra.mxu0 %v3256
    %4137 = vmatprep.subr.bf16.mxu0 %v3262
    %4138 = vmatpush1.bf16.msra.mxu0 %v3261
    %4139 = vmatprep.subr.bf16.mxu0 %v3267
    %4140 = vmatpush1.bf16.msra.mxu0 %v3266
    %4141 = vmatprep.subr.bf16.mxu0 %v3272
    %4142 = vmatpush1.bf16.msra.mxu0 %v3271
    %4143 = vmatprep.subr.bf16.mxu0 %v3277
    %4144 = vmatpush1.bf16.msra.mxu0 %v3276
    %4145 = vmatprep.subr.bf16.mxu0 %v3282
    %4146 = vmatpush1.bf16.msra.mxu0 %v3281
    %4147 = vmatprep.subr.bf16.mxu0 %v3287
    %4148 = vmatpush1.bf16.msra.mxu0 %v3286
    %4149 = vmatprep.subr.bf16.mxu0 %v3292
    %4150 = vmatpush1.bf16.msra.mxu0 %v3291
    %4151 = vmatprep.subr.bf16.mxu0 %v3297
    %4152 = vmatpush1.bf16.msra.mxu0 %v3296
    %4153 = vmatprep.subr.bf16.mxu0 %v3302
    %4154 = vmatpush1.bf16.msra.mxu0 %v3301
    %4155 = vmatprep.subr.bf16.mxu0 %v3307
    %4156 = vmatpush1.bf16.msra.mxu0 %v3306
    %4157 = vmatprep.subr.bf16.mxu0 %v3312
    %4158 = vmatpush1.bf16.msra.mxu0 %v3311
    %4159 = vmatprep.subr.bf16.mxu0 %v3317
    %4160 = vmatpush1.bf16.msra.mxu0 %v3316
    %4161 = vmatprep.subr.bf16.mxu0 %v3322
    %4162 = vmatpush1.bf16.msra.mxu0 %v3321
    %4163 = vmatprep.mubr.bf16.mxu0 %v1709
    %4164 = vmatmul.mubr.bf16.gmra.mrb[0].mxu0 %v1708
    %v4165 = vpop.f32.mrb[0].mxu0
    %v4166 = vadd.f32 %v4125, %v4165
    %v4167 = vpop.f32.mrb[0].mxu0
    %v4168 = vadd.f32 %v4127, %v4167
    %v4169 = vpop.f32.mrb[0].mxu0
    %v4170 = vpop.f32.mrb[0].mxu0
    %4171 = vdwg.mxu0
    %4172 = vmatprep.subr.bf16.mxu0 %v3327
    %4173 = vmatpush1.bf16.msra.mxu0 %v3326
    %4174 = vmatprep.subr.bf16.mxu0 %v3332
    %4175 = vmatpush1.bf16.msra.mxu0 %v3331
    %4176 = vmatprep.subr.bf16.mxu0 %v3337
    %4177 = vmatpush1.bf16.msra.mxu0 %v3336
    %4178 = vmatprep.subr.bf16.mxu0 %v3342
    %4179 = vmatpush1.bf16.msra.mxu0 %v3341
    %4180 = vmatprep.subr.bf16.mxu0 %v3347
    %4181 = vmatpush1.bf16.msra.mxu0 %v3346
    %4182 = vmatprep.subr.bf16.mxu0 %v3352
    %4183 = vmatpush1.bf16.msra.mxu0 %v3351
    %4184 = vmatprep.subr.bf16.mxu0 %v3357
    %4185 = vmatpush1.bf16.msra.mxu0 %v3356
    %4186 = vmatprep.subr.bf16.mxu0 %v3362
    %4187 = vmatpush1.bf16.msra.mxu0 %v3361
    %4188 = vmatprep.subr.bf16.mxu0 %v3367
    %4189 = vmatpush1.bf16.msra.mxu0 %v3366
    %4190 = vmatprep.subr.bf16.mxu0 %v3372
    %4191 = vmatpush1.bf16.msra.mxu0 %v3371
    %4192 = vmatprep.subr.bf16.mxu0 %v3377
    %4193 = vmatpush1.bf16.msra.mxu0 %v3376
    %4194 = vmatprep.subr.bf16.mxu0 %v3382
    %4195 = vmatpush1.bf16.msra.mxu0 %v3381
    %4196 = vmatprep.subr.bf16.mxu0 %v3387
    %4197 = vmatpush1.bf16.msra.mxu0 %v3386
    %4198 = vmatprep.subr.bf16.mxu0 %v3392
    %4199 = vmatpush1.bf16.msra.mxu0 %v3391
    %4200 = vmatprep.subr.bf16.mxu0 %v3397
    %4201 = vmatpush1.bf16.msra.mxu0 %v3396
    %4202 = vmatprep.subr.bf16.mxu0 %v3402
    %4203 = vmatpush1.bf16.msra.mxu0 %v3401
    %4204 = vmatprep.mubr.bf16.mxu0 %v1711
    %4205 = vmatmul.mubr.bf16.gmra.mrb[0].mxu0 %v1710
    %v4206 = vpop.f32.mrb[0].mxu0
    %v4207 = vadd.f32 %v4166, %v4206
    %v4208 = vpop.f32.mrb[0].mxu0
    %v4209 = vadd.f32 %v4168, %v4208
    %v4210 = vpop.f32.mrb[0].mxu0
    %v4211 = vpop.f32.mrb[0].mxu0
    %4212 = vdwg.mxu0
    %4213 = vmatprep.subr.bf16.mxu0 %v3407
    %4214 = vmatpush1.bf16.msra.mxu0 %v3406
    %4215 = vmatprep.subr.bf16.mxu0 %v3412
    %4216 = vmatpush1.bf16.msra.mxu0 %v3411
    %4217 = vmatprep.subr.bf16.mxu0 %v3417
    %4218 = vmatpush1.bf16.msra.mxu0 %v3416
    %4219 = vmatprep.subr.bf16.mxu0 %v3422
    %4220 = vmatpush1.bf16.msra.mxu0 %v3421
    %4221 = vmatprep.subr.bf16.mxu0 %v3427
    %4222 = vmatpush1.bf16.msra.mxu0 %v3426
    %4223 = vmatprep.subr.bf16.mxu0 %v3432
    %4224 = vmatpush1.bf16.msra.mxu0 %v3431
    %4225 = vmatprep.subr.bf16.mxu0 %v3437
    %4226 = vmatpush1.bf16.msra.mxu0 %v3436
    %4227 = vmatprep.subr.bf16.mxu0 %v3442
    %4228 = vmatpush1.bf16.msra.mxu0 %v3441
    %4229 = vmatprep.subr.bf16.mxu0 %v3447
    %4230 = vmatpush1.bf16.msra.mxu0 %v3446
    %4231 = vmatprep.subr.bf16.mxu0 %v3452
    %4232 = vmatpush1.bf16.msra.mxu0 %v3451
    %4233 = vmatprep.subr.bf16.mxu0 %v3457
    %4234 = vmatpush1.bf16.msra.mxu0 %v3456
    %4235 = vmatprep.subr.bf16.mxu0 %v3462
    %4236 = vmatpush1.bf16.msra.mxu0 %v3461
    %4237 = vmatprep.subr.bf16.mxu0 %v3467
    %4238 = vmatpush1.bf16.msra.mxu0 %v3466
    %4239 = vmatprep.subr.bf16.mxu0 %v3472
    %4240 = vmatpush1.bf16.msra.mxu0 %v3471
    %4241 = vmatprep.subr.bf16.mxu0 %v3477
    %4242 = vmatpush1.bf16.msra.mxu0 %v3476
    %4243 = vmatprep.subr.bf16.mxu0 %v3482
    %4244 = vmatpush1.bf16.msra.mxu0 %v3481
    %4245 = vmatprep.mubr.bf16.mxu0 %v1713
    %4246 = vmatmul.mubr.bf16.gmra.mrb[0].mxu0 %v1712
    %v4247 = vpop.f32.mrb[0].mxu0
    %v4248 = vadd.f32 %v4207, %v4247
    %v4249 = vpop.f32.mrb[0].mxu0
    %v4250 = vadd.f32 %v4209, %v4249
    %v4251 = vpop.f32.mrb[0].mxu0
    %v4252 = vpop.f32.mrb[0].mxu0
    %4253 = vdwg.mxu0
    %4254 = vmatprep.subr.bf16.mxu0 %v3487
    %4255 = vmatpush1.bf16.msra.mxu0 %v3486
    %4256 = vmatprep.subr.bf16.mxu0 %v3492
    %4257 = vmatpush1.bf16.msra.mxu0 %v3491
    %4258 = vmatprep.subr.bf16.mxu0 %v3497
    %4259 = vmatpush1.bf16.msra.mxu0 %v3496
    %4260 = vmatprep.subr.bf16.mxu0 %v3502
    %4261 = vmatpush1.bf16.msra.mxu0 %v3501
    %4262 = vmatprep.subr.bf16.mxu0 %v3507
    %4263 = vmatpush1.bf16.msra.mxu0 %v3506
    %4264 = vmatprep.subr.bf16.mxu0 %v3512
    %4265 = vmatpush1.bf16.msra.mxu0 %v3511
    %4266 = vmatprep.subr.bf16.mxu0 %v3517
    %4267 = vmatpush1.bf16.msra.mxu0 %v3516
    %4268 = vmatprep.subr.bf16.mxu0 %v3522
    %4269 = vmatpush1.bf16.msra.mxu0 %v3521
    %4270 = vmatprep.subr.bf16.mxu0 %v3527
    %4271 = vmatpush1.bf16.msra.mxu0 %v3526
    %4272 = vmatprep.subr.bf16.mxu0 %v3532
    %4273 = vmatpush1.bf16.msra.mxu0 %v3531
    %4274 = vmatprep.subr.bf16.mxu0 %v3537
    %4275 = vmatpush1.bf16.msra.mxu0 %v3536
    %4276 = vmatprep.subr.bf16.mxu0 %v3542
    %4277 = vmatpush1.bf16.msra.mxu0 %v3541
    %4278 = vmatprep.subr.bf16.mxu0 %v3547
    %4279 = vmatpush1.bf16.msra.mxu0 %v3546
    %4280 = vmatprep.subr.bf16.mxu0 %v3552
    %4281 = vmatpush1.bf16.msra.mxu0 %v3551
    %4282 = vmatprep.subr.bf16.mxu0 %v3557
    %4283 = vmatpush1.bf16.msra.mxu0 %v3556
    %4284 = vmatprep.subr.bf16.mxu0 %v3562
    %4285 = vmatpush1.bf16.msra.mxu0 %v3561
    %4286 = vmatprep.mubr.bf16.mxu0 %v1715
    %4287 = vmatmul.mubr.bf16.gmra.mrb[0].mxu0 %v1714
    %v4288 = vpop.f32.mrb[0].mxu0
    %v4289 = vadd.f32 %v4248, %v4288
    %v4290 = vpop.f32.mrb[0].mxu0
    %v4291 = vadd.f32 %v4250, %v4290
    %v4292 = vpop.f32.mrb[0].mxu0
    %v4293 = vpop.f32.mrb[0].mxu0
    %4294 = vdwg.mxu0
    %4295 = vmatprep.subr.bf16.mxu0 %v3567
    %4296 = vmatpush1.bf16.msra.mxu0 %v3566
    %4297 = vmatprep.subr.bf16.mxu0 %v3572
    %4298 = vmatpush1.bf16.msra.mxu0 %v3571
    %4299 = vmatprep.subr.bf16.mxu0 %v3577
    %4300 = vmatpush1.bf16.msra.mxu0 %v3576
    %4301 = vmatprep.subr.bf16.mxu0 %v3582
    %4302 = vmatpush1.bf16.msra.mxu0 %v3581
    %4303 = vmatprep.subr.bf16.mxu0 %v3587
    %4304 = vmatpush1.bf16.msra.mxu0 %v3586
    %4305 = vmatprep.subr.bf16.mxu0 %v3592
    %4306 = vmatpush1.bf16.msra.mxu0 %v3591
    %4307 = vmatprep.subr.bf16.mxu0 %v3597
    %4308 = vmatpush1.bf16.msra.mxu0 %v3596
    %4309 = vmatprep.subr.bf16.mxu0 %v3602
    %4310 = vmatpush1.bf16.msra.mxu0 %v3601
    %4311 = vmatprep.subr.bf16.mxu0 %v3607
    %4312 = vmatpush1.bf16.msra.mxu0 %v3606
    %4313 = vmatprep.subr.bf16.mxu0 %v3612
    %4314 = vmatpush1.bf16.msra.mxu0 %v3611
    %4315 = vmatprep.subr.bf16.mxu0 %v4079
    %4316 = vmatpush1.bf16.msra.mxu0 %v4076
    %4317 = vmatprep.subr.bf16.mxu0 0
    %4318 = vmatpush1.bf16.msra.mxu0 0
    %4319 = vmatprep.subr.bf16.mxu0 0
    %4320 = vmatpush1.bf16.msra.mxu0 0
    %4321 = vmatprep.subr.bf16.mxu0 0
    %4322 = vmatpush1.bf16.msra.mxu0 0
    %4323 = vmatprep.subr.bf16.mxu0 0
    %4324 = vmatpush1.bf16.msra.mxu0 0
    %4325 = vmatprep.subr.bf16.mxu0 0
    %4326 = vmatpush1.bf16.msra.mxu0 0
    %4327 = vmatprep.mubr.bf16.mxu0 %v4073
    %4328 = vmatmul.mubr.bf16.gmra.mrb[0].mxu0 %v1716
    %v4329 = vpop.f32.mrb[0].mxu0
    %v4330 = vadd.f32 %v4289, %v4329
    %v4331 = vpop.f32.mrb[0].mxu0
    %v4332 = vadd.f32 %v4291, %v4331
    %v4333 = vpop.f32.mrb[0].mxu0
    %v4334 = vpop.f32.mrb[0].mxu0
    %4335 = vdwg.mxu0
    %4336 = vmatprep.subr.bf16.mxu0 %v3169
    %4337 = vmatpush1.bf16.msra.mxu0 %v3168
    %4338 = vmatprep.subr.bf16.mxu0 %v3174
    %4339 = vmatpush1.bf16.msra.mxu0 %v3173
    %4340 = vmatprep.subr.bf16.mxu0 %v3179
    %4341 = vmatpush1.bf16.msra.mxu0 %v3178
    %4342 = vmatprep.subr.bf16.mxu0 %v3184
    %4343 = vmatpush1.bf16.msra.mxu0 %v3183
    %4344 = vmatprep.subr.bf16.mxu0 %v3189
    %4345 = vmatpush1.bf16.msra.mxu0 %v3188
    %4346 = vmatprep.subr.bf16.mxu0 %v3194
    %4347 = vmatpush1.bf16.msra.mxu0 %v3193
    %4348 = vmatprep.subr.bf16.mxu0 %v3199
    %4349 = vmatpush1.bf16.msra.mxu0 %v3198
    %4350 = vmatprep.subr.bf16.mxu0 %v3204
    %4351 = vmatpush1.bf16.msra.mxu0 %v3203
    %4352 = vmatprep.subr.bf16.mxu0 %v3209
    %4353 = vmatpush1.bf16.msra.mxu0 %v3208
    %4354 = vmatprep.subr.bf16.mxu0 %v3214
    %4355 = vmatpush1.bf16.msra.mxu0 %v3213
    %4356 = vmatprep.subr.bf16.mxu0 %v3219
    %4357 = vmatpush1.bf16.msra.mxu0 %v3218
    %4358 = vmatprep.subr.bf16.mxu0 %v3224
    %4359 = vmatpush1.bf16.msra.mxu0 %v3223
    %4360 = vmatprep.subr.bf16.mxu0 %v3229
    %4361 = vmatpush1.bf16.msra.mxu0 %v3228
    %4362 = vmatprep.subr.bf16.mxu0 %v3234
    %4363 = vmatpush1.bf16.msra.mxu0 %v3233
    %4364 = vmatprep.subr.bf16.mxu0 %v3239
    %4365 = vmatpush1.bf16.msra.mxu0 %v3238
    %4366 = vmatprep.subr.bf16.mxu0 %v3244
    %4367 = vmatpush1.bf16.msra.mxu0 %v3243
    %4368 = vmatprep.mubr.bf16.mxu0 %v1707
    %4369 = vmatmul.mubr.bf16.gmra.mrb[0].mxu0 %v1706
    %v4370 = vpop.f32.mrb[0].mxu0
    %v4371 = vadd.f32 0.0, %v4370
    %v4372 = vpop.f32.mrb[0].mxu0
    %v4373 = vadd.f32 0.0, %v4372
    %v4374 = vpop.f32.mrb[0].mxu0
    %v4375 = vpop.f32.mrb[0].mxu0
    %4376 = vdwg.mxu0
    %4377 = vmatprep.subr.bf16.mxu0 %v3249
    %4378 = vmatpush1.bf16.msra.mxu0 %v3248
    %4379 = vmatprep.subr.bf16.mxu0 %v3254
    %4380 = vmatpush1.bf16.msra.mxu0 %v3253
    %4381 = vmatprep.subr.bf16.mxu0 %v3259
    %4382 = vmatpush1.bf16.msra.mxu0 %v3258
    %4383 = vmatprep.subr.bf16.mxu0 %v3264
    %4384 = vmatpush1.bf16.msra.mxu0 %v3263
    %4385 = vmatprep.subr.bf16.mxu0 %v3269
    %4386 = vmatpush1.bf16.msra.mxu0 %v3268
    %4387 = vmatprep.subr.bf16.mxu0 %v3274
    %4388 = vmatpush1.bf16.msra.mxu0 %v3273
    %4389 = vmatprep.subr.bf16.mxu0 %v3279
    %4390 = vmatpush1.bf16.msra.mxu0 %v3278
    %4391 = vmatprep.subr.bf16.mxu0 %v3284
    %4392 = vmatpush1.bf16.msra.mxu0 %v3283
    %4393 = vmatprep.subr.bf16.mxu0 %v3289
    %4394 = vmatpush1.bf16.msra.mxu0 %v3288
    %4395 = vmatprep.subr.bf16.mxu0 %v3294
    %4396 = vmatpush1.bf16.msra.mxu0 %v3293
    %4397 = vmatprep.subr.bf16.mxu0 %v3299
    %4398 = vmatpush1.bf16.msra.mxu0 %v3298
    %4399 = vmatprep.subr.bf16.mxu0 %v3304
    %4400 = vmatpush1.bf16.msra.mxu0 %v3303
    %4401 = vmatprep.subr.bf16.mxu0 %v3309
    %4402 = vmatpush1.bf16.msra.mxu0 %v3308
    %4403 = vmatprep.subr.bf16.mxu0 %v3314
    %4404 = vmatpush1.bf16.msra.mxu0 %v3313
    %4405 = vmatprep.subr.bf16.mxu0 %v3319
    %4406 = vmatpush1.bf16.msra.mxu0 %v3318
    %4407 = vmatprep.subr.bf16.mxu0 %v3324
    %4408 = vmatpush1.bf16.msra.mxu0 %v3323
    %4409 = vmatprep.mubr.bf16.mxu0 %v1709
    %4410 = vmatmul.mubr.bf16.gmra.mrb[0].mxu0 %v1708
    %v4411 = vpop.f32.mrb[0].mxu0
    %v4412 = vadd.f32 %v4371, %v4411
    %v4413 = vpop.f32.mrb[0].mxu0
    %v4414 = vadd.f32 %v4373, %v4413
    %v4415 = vpop.f32.mrb[0].mxu0
    %v4416 = vpop.f32.mrb[0].mxu0
    %4417 = vdwg.mxu0
    %4418 = vmatprep.subr.bf16.mxu0 %v3329
    %4419 = vmatpush1.bf16.msra.mxu0 %v3328
    %4420 = vmatprep.subr.bf16.mxu0 %v3334
    %4421 = vmatpush1.bf16.msra.mxu0 %v3333
    %4422 = vmatprep.subr.bf16.mxu0 %v3339
    %4423 = vmatpush1.bf16.msra.mxu0 %v3338
    %4424 = vmatprep.subr.bf16.mxu0 %v3344
    %4425 = vmatpush1.bf16.msra.mxu0 %v3343
    %4426 = vmatprep.subr.bf16.mxu0 %v3349
    %4427 = vmatpush1.bf16.msra.mxu0 %v3348
    %4428 = vmatprep.subr.bf16.mxu0 %v3354
    %4429 = vmatpush1.bf16.msra.mxu0 %v3353
    %4430 = vmatprep.subr.bf16.mxu0 %v3359
    %4431 = vmatpush1.bf16.msra.mxu0 %v3358
    %4432 = vmatprep.subr.bf16.mxu0 %v3364
    %4433 = vmatpush1.bf16.msra.mxu0 %v3363
    %4434 = vmatprep.subr.bf16.mxu0 %v3369
    %4435 = vmatpush1.bf16.msra.mxu0 %v3368
    %4436 = vmatprep.subr.bf16.mxu0 %v3374
    %4437 = vmatpush1.bf16.msra.mxu0 %v3373
    %4438 = vmatprep.subr.bf16.mxu0 %v3379
    %4439 = vmatpush1.bf16.msra.mxu0 %v3378
    %4440 = vmatprep.subr.bf16.mxu0 %v3384
    %4441 = vmatpush1.bf16.msra.mxu0 %v3383
    %4442 = vmatprep.subr.bf16.mxu0 %v3389
    %4443 = vmatpush1.bf16.msra.mxu0 %v3388
    %4444 = vmatprep.subr.bf16.mxu0 %v3394
    %4445 = vmatpush1.bf16.msra.mxu0 %v3393
    %4446 = vmatprep.subr.bf16.mxu0 %v3399
    %4447 = vmatpush1.bf16.msra.mxu0 %v3398
    %4448 = vmatprep.subr.bf16.mxu0 %v3404
    %4449 = vmatpush1.bf16.msra.mxu0 %v3403
    %4450 = vmatprep.mubr.bf16.mxu0 %v1711
    %4451 = vmatmul.mubr.bf16.gmra.mrb[0].mxu0 %v1710
    %v4452 = vpop.f32.mrb[0].mxu0
    %v4453 = vadd.f32 %v4412, %v4452
    %v4454 = vpop.f32.mrb[0].mxu0
    %v4455 = vadd.f32 %v4414, %v4454
    %v4456 = vpop.f32.mrb[0].mxu0
    %v4457 = vpop.f32.mrb[0].mxu0
    %4458 = vdwg.mxu0
    %4459 = vmatprep.subr.bf16.mxu0 %v3409
    %4460 = vmatpush1.bf16.msra.mxu0 %v3408
    %4461 = vmatprep.subr.bf16.mxu0 %v3414
    %4462 = vmatpush1.bf16.msra.mxu0 %v3413
    %4463 = vmatprep.subr.bf16.mxu0 %v3419
    %4464 = vmatpush1.bf16.msra.mxu0 %v3418
    %4465 = vmatprep.subr.bf16.mxu0 %v3424
    %4466 = vmatpush1.bf16.msra.mxu0 %v3423
    %4467 = vmatprep.subr.bf16.mxu0 %v3429
    %4468 = vmatpush1.bf16.msra.mxu0 %v3428
    %4469 = vmatprep.subr.bf16.mxu0 %v3434
    %4470 = vmatpush1.bf16.msra.mxu0 %v3433
    %4471 = vmatprep.subr.bf16.mxu0 %v3439
    %4472 = vmatpush1.bf16.msra.mxu0 %v3438
    %4473 = vmatprep.subr.bf16.mxu0 %v3444
    %4474 = vmatpush1.bf16.msra.mxu0 %v3443
    %4475 = vmatprep.subr.bf16.mxu0 %v3449
    %4476 = vmatpush1.bf16.msra.mxu0 %v3448
    %4477 = vmatprep.subr.bf16.mxu0 %v3454
    %4478 = vmatpush1.bf16.msra.mxu0 %v3453
    %4479 = vmatprep.subr.bf16.mxu0 %v3459
    %4480 = vmatpush1.bf16.msra.mxu0 %v3458
    %4481 = vmatprep.subr.bf16.mxu0 %v3464
    %4482 = vmatpush1.bf16.msra.mxu0 %v3463
    %4483 = vmatprep.subr.bf16.mxu0 %v3469
    %4484 = vmatpush1.bf16.msra.mxu0 %v3468
    %4485 = vmatprep.subr.bf16.mxu0 %v3474
    %4486 = vmatpush1.bf16.msra.mxu0 %v3473
    %4487 = vmatprep.subr.bf16.mxu0 %v3479
    %4488 = vmatpush1.bf16.msra.mxu0 %v3478
    %4489 = vmatprep.subr.bf16.mxu0 %v3484
    %4490 = vmatpush1.bf16.msra.mxu0 %v3483
    %4491 = vmatprep.mubr.bf16.mxu0 %v1713
    %4492 = vmatmul.mubr.bf16.gmra.mrb[0].mxu0 %v1712
    %v4493 = vpop.f32.mrb[0].mxu0
    %v4494 = vadd.f32 %v4453, %v4493
    %v4495 = vpop.f32.mrb[0].mxu0
    %v4496 = vadd.f32 %v4455, %v4495
    %v4497 = vpop.f32.mrb[0].mxu0
    %v4498 = vpop.f32.mrb[0].mxu0
    %4499 = vdwg.mxu0
    %4500 = vmatprep.subr.bf16.mxu0 %v3489
    %4501 = vmatpush1.bf16.msra.mxu0 %v3488
    %4502 = vmatprep.subr.bf16.mxu0 %v3494
    %4503 = vmatpush1.bf16.msra.mxu0 %v3493
    %4504 = vmatprep.subr.bf16.mxu0 %v3499
    %4505 = vmatpush1.bf16.msra.mxu0 %v3498
    %4506 = vmatprep.subr.bf16.mxu0 %v3504
    %4507 = vmatpush1.bf16.msra.mxu0 %v3503
    %4508 = vmatprep.subr.bf16.mxu0 %v3509
    %4509 = vmatpush1.bf16.msra.mxu0 %v3508
    %4510 = vmatprep.subr.bf16.mxu0 %v3514
    %4511 = vmatpush1.bf16.msra.mxu0 %v3513
    %4512 = vmatprep.subr.bf16.mxu0 %v3519
    %4513 = vmatpush1.bf16.msra.mxu0 %v3518
    %4514 = vmatprep.subr.bf16.mxu0 %v3524
    %4515 = vmatpush1.bf16.msra.mxu0 %v3523
    %4516 = vmatprep.subr.bf16.mxu0 %v3529
    %4517 = vmatpush1.bf16.msra.mxu0 %v3528
    %4518 = vmatprep.subr.bf16.mxu0 %v3534
    %4519 = vmatpush1.bf16.msra.mxu0 %v3533
    %4520 = vmatprep.subr.bf16.mxu0 %v3539
    %4521 = vmatpush1.bf16.msra.mxu0 %v3538
    %4522 = vmatprep.subr.bf16.mxu0 %v3544
    %4523 = vmatpush1.bf16.msra.mxu0 %v3543
    %4524 = vmatprep.subr.bf16.mxu0 %v3549
    %4525 = vmatpush1.bf16.msra.mxu0 %v3548
    %4526 = vmatprep.subr.bf16.mxu0 %v3554
    %4527 = vmatpush1.bf16.msra.mxu0 %v3553
    %4528 = vmatprep.subr.bf16.mxu0 %v3559
    %4529 = vmatpush1.bf16.msra.mxu0 %v3558
    %4530 = vmatprep.subr.bf16.mxu0 %v3564
    %4531 = vmatpush1.bf16.msra.mxu0 %v3563
    %4532 = vmatprep.mubr.bf16.mxu0 %v1715
    %4533 = vmatmul.mubr.bf16.gmra.mrb[0].mxu0 %v1714
    %v4534 = vpop.f32.mrb[0].mxu0
    %v4535 = vadd.f32 %v4494, %v4534
    %v4536 = vpop.f32.mrb[0].mxu0
    %v4537 = vadd.f32 %v4496, %v4536
    %v4538 = vpop.f32.mrb[0].mxu0
    %v4539 = vpop.f32.mrb[0].mxu0
    %4540 = vdwg.mxu0
    %4541 = vmatprep.subr.bf16.mxu0 %v3569
    %4542 = vmatpush1.bf16.msra.mxu0 %v3568
    %4543 = vmatprep.subr.bf16.mxu0 %v3574
    %4544 = vmatpush1.bf16.msra.mxu0 %v3573
    %4545 = vmatprep.subr.bf16.mxu0 %v3579
    %4546 = vmatpush1.bf16.msra.mxu0 %v3578
    %4547 = vmatprep.subr.bf16.mxu0 %v3584
    %4548 = vmatpush1.bf16.msra.mxu0 %v3583
    %4549 = vmatprep.subr.bf16.mxu0 %v3589
    %4550 = vmatpush1.bf16.msra.mxu0 %v3588
    %4551 = vmatprep.subr.bf16.mxu0 %v3594
    %4552 = vmatpush1.bf16.msra.mxu0 %v3593
    %4553 = vmatprep.subr.bf16.mxu0 %v3599
    %4554 = vmatpush1.bf16.msra.mxu0 %v3598
    %4555 = vmatprep.subr.bf16.mxu0 %v3604
    %4556 = vmatpush1.bf16.msra.mxu0 %v3603
    %4557 = vmatprep.subr.bf16.mxu0 %v3609
    %4558 = vmatpush1.bf16.msra.mxu0 %v3608
    %4559 = vmatprep.subr.bf16.mxu0 %v3614
    %4560 = vmatpush1.bf16.msra.mxu0 %v3613
    %4561 = vmatprep.subr.bf16.mxu0 %v4085
    %4562 = vmatpush1.bf16.msra.mxu0 %v4082
    %4563 = vmatprep.subr.bf16.mxu0 0
    %4564 = vmatpush1.bf16.msra.mxu0 0
    %4565 = vmatprep.subr.bf16.mxu0 0
    %4566 = vmatpush1.bf16.msra.mxu0 0
    %4567 = vmatprep.subr.bf16.mxu0 0
    %4568 = vmatpush1.bf16.msra.mxu0 0
    %4569 = vmatprep.subr.bf16.mxu0 0
    %4570 = vmatpush1.bf16.msra.mxu0 0
    %4571 = vmatprep.subr.bf16.mxu0 0
    %4572 = vmatpush1.bf16.msra.mxu0 0
    %4573 = vmatprep.mubr.bf16.mxu0 %v4073
    %4574 = vmatmul.mubr.bf16.gmra.mrb[0].mxu0 %v1716
    %v4575 = vpop.f32.mrb[0].mxu0
    %v4576 = vadd.f32 %v4535, %v4575
    %v4577 = vpop.f32.mrb[0].mxu0
    %v4578 = vadd.f32 %v4537, %v4577
    %v4579 = vpop.f32.mrb[0].mxu0
    %v4580 = vpop.f32.mrb[0].mxu0
    %4581 = vdwg.mxu0
    %4582 = vmatprep.subr.bf16.mxu0 0
    %4583 = vmatpush1.bf16.msra.mxu0 %v3170
    %4584 = vmatprep.subr.bf16.mxu0 0
    %4585 = vmatpush1.bf16.msra.mxu0 %v3175
    %4586 = vmatprep.subr.bf16.mxu0 0
    %4587 = vmatpush1.bf16.msra.mxu0 %v3180
    %4588 = vmatprep.subr.bf16.mxu0 0
    %4589 = vmatpush1.bf16.msra.mxu0 %v3185
    %4590 = vmatprep.subr.bf16.mxu0 0
    %4591 = vmatpush1.bf16.msra.mxu0 %v3190
    %4592 = vmatprep.subr.bf16.mxu0 0
    %4593 = vmatpush1.bf16.msra.mxu0 %v3195
    %4594 = vmatprep.subr.bf16.mxu0 0
    %4595 = vmatpush1.bf16.msra.mxu0 %v3200
    %4596 = vmatprep.subr.bf16.mxu0 0
    %4597 = vmatpush1.bf16.msra.mxu0 %v3205
    %4598 = vmatprep.subr.bf16.mxu0 0
    %4599 = vmatpush1.bf16.msra.mxu0 %v3210
    %4600 = vmatprep.subr.bf16.mxu0 0
    %4601 = vmatpush1.bf16.msra.mxu0 %v3215
    %4602 = vmatprep.subr.bf16.mxu0 0
    %4603 = vmatpush1.bf16.msra.mxu0 %v3220
    %4604 = vmatprep.subr.bf16.mxu0 0
    %4605 = vmatpush1.bf16.msra.mxu0 %v3225
    %4606 = vmatprep.subr.bf16.mxu0 0
    %4607 = vmatpush1.bf16.msra.mxu0 %v3230
    %4608 = vmatprep.subr.bf16.mxu0 0
    %4609 = vmatpush1.bf16.msra.mxu0 %v3235
    %4610 = vmatprep.subr.bf16.mxu0 0
    %4611 = vmatpush1.bf16.msra.mxu0 %v3240
    %4612 = vmatprep.subr.bf16.mxu0 0
    %4613 = vmatpush1.bf16.msra.mxu0 %v3245
    %4614 = vmatprep.mubr.bf16.mxu0 %v1707
    %4615 = vmatmul.mubr.bf16.gmra.mrb[0].mxu0 %v1706
    %v4616 = vpop.f32.mrb[0].mxu0
    %v4617 = vadd.f32 0.0, %v4616
    %v4618 = vpop.f32.mrb[0].mxu0
    %v4619 = vpop.f32.mrb[0].mxu0
    %v4620 = vpop.f32.mrb[0].mxu0
    %4621 = vdwg.mxu0
    %4622 = vmatprep.subr.bf16.mxu0 0
    %4623 = vmatpush1.bf16.msra.mxu0 %v3250
    %4624 = vmatprep.subr.bf16.mxu0 0
    %4625 = vmatpush1.bf16.msra.mxu0 %v3255
    %4626 = vmatprep.subr.bf16.mxu0 0
    %4627 = vmatpush1.bf16.msra.mxu0 %v3260
    %4628 = vmatprep.subr.bf16.mxu0 0
    %4629 = vmatpush1.bf16.msra.mxu0 %v3265
    %4630 = vmatprep.subr.bf16.mxu0 0
    %4631 = vmatpush1.bf16.msra.mxu0 %v3270
    %4632 = vmatprep.subr.bf16.mxu0 0
    %4633 = vmatpush1.bf16.msra.mxu0 %v3275
    %4634 = vmatprep.subr.bf16.mxu0 0
    %4635 = vmatpush1.bf16.msra.mxu0 %v3280
    %4636 = vmatprep.subr.bf16.mxu0 0
    %4637 = vmatpush1.bf16.msra.mxu0 %v3285
    %4638 = vmatprep.subr.bf16.mxu0 0
    %4639 = vmatpush1.bf16.msra.mxu0 %v3290
    %4640 = vmatprep.subr.bf16.mxu0 0
    %4641 = vmatpush1.bf16.msra.mxu0 %v3295
    %4642 = vmatprep.subr.bf16.mxu0 0
    %4643 = vmatpush1.bf16.msra.mxu0 %v3300
    %4644 = vmatprep.subr.bf16.mxu0 0
    %4645 = vmatpush1.bf16.msra.mxu0 %v3305
    %4646 = vmatprep.subr.bf16.mxu0 0
    %4647 = vmatpush1.bf16.msra.mxu0 %v3310
    %4648 = vmatprep.subr.bf16.mxu0 0
    %4649 = vmatpush1.bf16.msra.mxu0 %v3315
    %4650 = vmatprep.subr.bf16.mxu0 0
    %4651 = vmatpush1.bf16.msra.mxu0 %v3320
    %4652 = vmatprep.subr.bf16.mxu0 0
    %4653 = vmatpush1.bf16.msra.mxu0 %v3325
    %4654 = vmatprep.mubr.bf16.mxu0 %v1709
    %4655 = vmatmul.mubr.bf16.gmra.mrb[0].mxu0 %v1708
    %v4656 = vpop.f32.mrb[0].mxu0
    %v4657 = vadd.f32 %v4617, %v4656
    %v4658 = vpop.f32.mrb[0].mxu0
    %v4659 = vpop.f32.mrb[0].mxu0
    %v4660 = vpop.f32.mrb[0].mxu0
    %4661 = vdwg.mxu0
    %4662 = vmatprep.subr.bf16.mxu0 0
    %4663 = vmatpush1.bf16.msra.mxu0 %v3330
    %4664 = vmatprep.subr.bf16.mxu0 0
    %4665 = vmatpush1.bf16.msra.mxu0 %v3335
    %4666 = vmatprep.subr.bf16.mxu0 0
    %4667 = vmatpush1.bf16.msra.mxu0 %v3340
    %4668 = vmatprep.subr.bf16.mxu0 0
    %4669 = vmatpush1.bf16.msra.mxu0 %v3345
    %4670 = vmatprep.subr.bf16.mxu0 0
    %4671 = vmatpush1.bf16.msra.mxu0 %v3350
    %4672 = vmatprep.subr.bf16.mxu0 0
    %4673 = vmatpush1.bf16.msra.mxu0 %v3355
    %4674 = vmatprep.subr.bf16.mxu0 0
    %4675 = vmatpush1.bf16.msra.mxu0 %v3360
    %4676 = vmatprep.subr.bf16.mxu0 0
    %4677 = vmatpush1.bf16.msra.mxu0 %v3365
    %4678 = vmatprep.subr.bf16.mxu0 0
    %4679 = vmatpush1.bf16.msra.mxu0 %v3370
    %4680 = vmatprep.subr.bf16.mxu0 0
    %4681 = vmatpush1.bf16.msra.mxu0 %v3375
    %4682 = vmatprep.subr.bf16.mxu0 0
    %4683 = vmatpush1.bf16.msra.mxu0 %v3380
    %4684 = vmatprep.subr.bf16.mxu0 0
    %4685 = vmatpush1.bf16.msra.mxu0 %v3385
    %4686 = vmatprep.subr.bf16.mxu0 0
    %4687 = vmatpush1.bf16.msra.mxu0 %v3390
    %4688 = vmatprep.subr.bf16.mxu0 0
    %4689 = vmatpush1.bf16.msra.mxu0 %v3395
    %4690 = vmatprep.subr.bf16.mxu0 0
    %4691 = vmatpush1.bf16.msra.mxu0 %v3400
    %4692 = vmatprep.subr.bf16.mxu0 0
    %4693 = vmatpush1.bf16.msra.mxu0 %v3405
    %4694 = vmatprep.mubr.bf16.mxu0 %v1711
    %4695 = vmatmul.mubr.bf16.gmra.mrb[0].mxu0 %v1710
    %v4696 = vpop.f32.mrb[0].mxu0
    %v4697 = vadd.f32 %v4657, %v4696
    %v4698 = vpop.f32.mrb[0].mxu0
    %v4699 = vpop.f32.mrb[0].mxu0
    %v4700 = vpop.f32.mrb[0].mxu0
    %4701 = vdwg.mxu0
    %4702 = vmatprep.subr.bf16.mxu0 0
    %4703 = vmatpush1.bf16.msra.mxu0 %v3410
    %4704 = vmatprep.subr.bf16.mxu0 0
    %4705 = vmatpush1.bf16.msra.mxu0 %v3415
    %4706 = vmatprep.subr.bf16.mxu0 0
    %4707 = vmatpush1.bf16.msra.mxu0 %v3420
    %4708 = vmatprep.subr.bf16.mxu0 0
    %4709 = vmatpush1.bf16.msra.mxu0 %v3425
    %4710 = vmatprep.subr.bf16.mxu0 0
    %4711 = vmatpush1.bf16.msra.mxu0 %v3430
    %4712 = vmatprep.subr.bf16.mxu0 0
    %4713 = vmatpush1.bf16.msra.mxu0 %v3435
    %4714 = vmatprep.subr.bf16.mxu0 0
    %4715 = vmatpush1.bf16.msra.mxu0 %v3440
    %4716 = vmatprep.subr.bf16.mxu0 0
    %4717 = vmatpush1.bf16.msra.mxu0 %v3445
    %4718 = vmatprep.subr.bf16.mxu0 0
    %4719 = vmatpush1.bf16.msra.mxu0 %v3450
    %4720 = vmatprep.subr.bf16.mxu0 0
    %4721 = vmatpush1.bf16.msra.mxu0 %v3455
    %4722 = vmatprep.subr.bf16.mxu0 0
    %4723 = vmatpush1.bf16.msra.mxu0 %v3460
    %4724 = vmatprep.subr.bf16.mxu0 0
    %4725 = vmatpush1.bf16.msra.mxu0 %v3465
    %4726 = vmatprep.subr.bf16.mxu0 0
    %4727 = vmatpush1.bf16.msra.mxu0 %v3470
    %4728 = vmatprep.subr.bf16.mxu0 0
    %4729 = vmatpush1.bf16.msra.mxu0 %v3475
    %4730 = vmatprep.subr.bf16.mxu0 0
    %4731 = vmatpush1.bf16.msra.mxu0 %v3480
    %4732 = vmatprep.subr.bf16.mxu0 0
    %4733 = vmatpush1.bf16.msra.mxu0 %v3485
    %4734 = vmatprep.mubr.bf16.mxu0 %v1713
    %4735 = vmatmul.mubr.bf16.gmra.mrb[0].mxu0 %v1712
    %v4736 = vpop.f32.mrb[0].mxu0
    %v4737 = vadd.f32 %v4697, %v4736
    %v4738 = vpop.f32.mrb[0].mxu0
    %v4739 = vpop.f32.mrb[0].mxu0
    %v4740 = vpop.f32.mrb[0].mxu0
    %4741 = vdwg.mxu0
    %4742 = vmatprep.subr.bf16.mxu0 0
    %4743 = vmatpush1.bf16.msra.mxu0 %v3490
    %4744 = vmatprep.subr.bf16.mxu0 0
    %4745 = vmatpush1.bf16.msra.mxu0 %v3495
    %4746 = vmatprep.subr.bf16.mxu0 0
    %4747 = vmatpush1.bf16.msra.mxu0 %v3500
    %4748 = vmatprep.subr.bf16.mxu0 0
    %4749 = vmatpush1.bf16.msra.mxu0 %v3505
    %4750 = vmatprep.subr.bf16.mxu0 0
    %4751 = vmatpush1.bf16.msra.mxu0 %v3510
    %4752 = vmatprep.subr.bf16.mxu0 0
    %4753 = vmatpush1.bf16.msra.mxu0 %v3515
    %4754 = vmatprep.subr.bf16.mxu0 0
    %4755 = vmatpush1.bf16.msra.mxu0 %v3520
    %4756 = vmatprep.subr.bf16.mxu0 0
    %4757 = vmatpush1.bf16.msra.mxu0 %v3525
    %4758 = vmatprep.subr.bf16.mxu0 0
    %4759 = vmatpush1.bf16.msra.mxu0 %v3530
    %4760 = vmatprep.subr.bf16.mxu0 0
    %4761 = vmatpush1.bf16.msra.mxu0 %v3535
    %4762 = vmatprep.subr.bf16.mxu0 0
    %4763 = vmatpush1.bf16.msra.mxu0 %v3540
    %4764 = vmatprep.subr.bf16.mxu0 0
    %4765 = vmatpush1.bf16.msra.mxu0 %v3545
    %4766 = vmatprep.subr.bf16.mxu0 0
    %4767 = vmatpush1.bf16.msra.mxu0 %v3550
    %4768 = vmatprep.subr.bf16.mxu0 0
    %4769 = vmatpush1.bf16.msra.mxu0 %v3555
    %4770 = vmatprep.subr.bf16.mxu0 0
    %4771 = vmatpush1.bf16.msra.mxu0 %v3560
    %4772 = vmatprep.subr.bf16.mxu0 0
    %4773 = vmatpush1.bf16.msra.mxu0 %v3565
    %4774 = vmatprep.mubr.bf16.mxu0 %v1715
    %4775 = vmatmul.mubr.bf16.gmra.mrb[0].mxu0 %v1714
    %v4776 = vpop.f32.mrb[0].mxu0
    %v4777 = vadd.f32 %v4737, %v4776
    %v4778 = vpop.f32.mrb[0].mxu0
    %v4779 = vpop.f32.mrb[0].mxu0
    %v4780 = vpop.f32.mrb[0].mxu0
    %4781 = vdwg.mxu0
    %4782 = vmatprep.subr.bf16.mxu0 0
    %4783 = vmatpush1.bf16.msra.mxu0 %v3570
    %4784 = vmatprep.subr.bf16.mxu0 0
    %4785 = vmatpush1.bf16.msra.mxu0 %v3575
    %4786 = vmatprep.subr.bf16.mxu0 0
    %4787 = vmatpush1.bf16.msra.mxu0 %v3580
    %4788 = vmatprep.subr.bf16.mxu0 0
    %4789 = vmatpush1.bf16.msra.mxu0 %v3585
    %4790 = vmatprep.subr.bf16.mxu0 0
    %4791 = vmatpush1.bf16.msra.mxu0 %v3590
    %4792 = vmatprep.subr.bf16.mxu0 0
    %4793 = vmatpush1.bf16.msra.mxu0 %v3595
    %4794 = vmatprep.subr.bf16.mxu0 0
    %4795 = vmatpush1.bf16.msra.mxu0 %v3600
    %4796 = vmatprep.subr.bf16.mxu0 0
    %4797 = vmatpush1.bf16.msra.mxu0 %v3605
    %4798 = vmatprep.subr.bf16.mxu0 0
    %4799 = vmatpush1.bf16.msra.mxu0 %v3610
    %4800 = vmatprep.subr.bf16.mxu0 0
    %4801 = vmatpush1.bf16.msra.mxu0 %v3615
    %4802 = vmatprep.subr.bf16.mxu0 0
    %4803 = vmatpush1.bf16.msra.mxu0 %v4088
    %4804 = vmatprep.subr.bf16.mxu0 0
    %4805 = vmatpush1.bf16.msra.mxu0 0
    %4806 = vmatprep.subr.bf16.mxu0 0
    %4807 = vmatpush1.bf16.msra.mxu0 0
    %4808 = vmatprep.subr.bf16.mxu0 0
    %4809 = vmatpush1.bf16.msra.mxu0 0
    %4810 = vmatprep.subr.bf16.mxu0 0
    %4811 = vmatpush1.bf16.msra.mxu0 0
    %4812 = vmatprep.subr.bf16.mxu0 0
    %4813 = vmatpush1.bf16.msra.mxu0 0
    %4814 = vmatprep.mubr.bf16.mxu0 %v4073
    %4815 = vmatmul.mubr.bf16.gmra.mrb[0].mxu0 %v1716
    %v4816 = vpop.f32.mrb[0].mxu0
    %v4817 = vadd.f32 %v4777, %v4816
    %v4818 = vpop.f32.mrb[0].mxu0
    %v4819 = vpop.f32.mrb[0].mxu0
    %v4820 = vpop.f32.mrb[0].mxu0
    %4821 = vdwg.mxu0
    %vm4822 = vcmp.ge.f32.partialorder %v4330, 0.0
    %vm4823 = vcmp.ge.f32.partialorder %v4332, 0.0
    %vm4824 = vcmp.ge.f32.partialorder %v4576, 0.0
    %vm4825 = vcmp.ge.f32.partialorder %v4578, 0.0
    %vm4826 = vcmp.ge.f32.partialorder %v4817, 0.0
    %v4827 = vmul.f32 %v4330, 0.1
    %v4828 = vmul.f32 %v4332, 0.1
    %v4829 = vmul.f32 %v4576, 0.1
    %v4830 = vmul.f32 %v4578, 0.1
    %v4831 = vmul.f32 %v4817, 0.1
    %v4832 = vsel %vm4822, %v4330, %v4827
    %v4833 = vsel %vm4823, %v4332, %v4828
    %v4834 = vsel %vm4824, %v4576, %v4829
    %v4835 = vsel %vm4825, %v4578, %v4830
    %v4836 = vsel %vm4826, %v4817, %v4831
    %v4837 = vld [vmem:[%s2 + $0x240] sm:$0xf]
    %v4838 = vld [vmem:[%s2 + $0x248] sm:$0xf]
    %v4839 = vld [vmem:[%s2 + $0x250] sm:$0xf]
    %v4840 = vld [vmem:[%s2 + $0x258] sm:$0xf]
    %v4841 = vld [vmem:[%s2 + $0x260] sm:$0xf]
    %v4842 = vld [vmem:[%s2 + $0x268] sm:$0xf]
    %v4843 = vld [vmem:[%s2 + $0x270] sm:$0xf]
    %v4844 = vld [vmem:[%s2 + $0x278] sm:$0xf]
    %v4845 = vld [vmem:[%s2 + $0x280] sm:$0xf]
    %v4846 = vld [vmem:[%s2 + $0x288] sm:$0xf]
    %v4847 = vld [vmem:[%s2 + $0x290] sm:$0xf]
    %v4848 = vld [vmem:[%s2 + $0x298] sm:$0xf]
    %v4849 = vld [vmem:[%s2 + $0x2a0] sm:$0xf]
    %v4850 = vld [vmem:[%s2 + $0x2a8] sm:$0xf]
    %v4851 = vld [vmem:[%s2 + $0x2b0] sm:$0xf]
    %v4852 = vld [vmem:[%s2 + $0x2b8] sm:$0xf]
    %v4853 = vld [vmem:[%s2 + $0x2c0] sm:$0xf]
    %v4854 = vld [vmem:[%s2 + $0x2c8] sm:$0xf]
    %v4855 = vld [vmem:[%s2 + $0x2d0] sm:$0xf]
    %v4856 = vld [vmem:[%s2 + $0x2d8] sm:$0xf]
    %v4857 = vld [vmem:[%s2 + $0x2e0] sm:$0xf]
    %v4858 = vld [vmem:[%s2 + $0x2e8] sm:$0xf]
    %v4859 = vld [vmem:[%s2 + $0x2f0] sm:$0xf]
    %v4860 = vld [vmem:[%s2 + $0x2f8] sm:$0xf]
    %v4861 = vld [vmem:[%s2 + $0x300] sm:$0xf]
    %v4862 = vld [vmem:[%s2 + $0x308] sm:$0xf]
    %v4863 = vld [vmem:[%s2 + $0x310] sm:$0xf]
    %v4864 = vld [vmem:[%s2 + $0x318] sm:$0xf]
    %v4865 = vld [vmem:[%s2 + $0x320] sm:$0xf]
    %v4866 = vld [vmem:[%s2 + $0x328] sm:$0xf]
    %v4867 = vld [vmem:[%s2 + $0x330] sm:$0xf]
    %v4868 = vld [vmem:[%s2 + $0x338] sm:$0xf]
    %v4869 = vld [vmem:[%s2 + $0x340] sm:$0xf]
    %v4870 = vld [vmem:[%s2 + $0x348] sm:$0xf]
    %v4871 = vld [vmem:[%s2 + $0x350] sm:$0xf]
    %v4872 = vld [vmem:[%s2 + $0x358] sm:$0xf]
    %v4873 = vld [vmem:[%s2 + $0x360] sm:$0xf]
    %v4874 = vld [vmem:[%s2 + $0x368] sm:$0xf]
    %v4875 = vld [vmem:[%s2 + $0x370] sm:$0xf]
    %v4876 = vld [vmem:[%s2 + $0x378] sm:$0xf]
    %v4877 = vld [vmem:[%s2 + $0x380] sm:$0xf]
    %v4878 = vld [vmem:[%s2 + $0x388] sm:$0xf]
    %v4879 = vld [vmem:[%s2 + $0x390] sm:$0xf]
    %v4880 = vld [vmem:[%s2 + $0x398] sm:$0xf]
    %v4881 = vld [vmem:[%s2 + $0x3a0] sm:$0xf]
    %v4882 = vld [vmem:[%s2 + $0x3a8] sm:$0xf]
    %v4883 = vld [vmem:[%s2 + $0x3b0] sm:$0xf]
    %v4884 = vld [vmem:[%s2 + $0x3b8] sm:$0xf]
    %v4885 = vld [vmem:[%s2 + $0x3c0] sm:$0xf]
    %v4886 = vld [vmem:[%s2 + $0x3c8] sm:$0xf]
    %v4887 = vld [vmem:[%s2 + $0x3d0] sm:$0xf]
    %v4888 = vld [vmem:[%s2 + $0x3d8] sm:$0xf]
    %v4889 = vld [vmem:[%s2 + $0x3e0] sm:$0xf]
    %v4890 = vld [vmem:[%s2 + $0x3e8] sm:$0xf]
    %v4891 = vld [vmem:[%s2 + $0x3f0] sm:$0xf]
    %v4892 = vld [vmem:[%s2 + $0x3f8] sm:$0xf]
    %v4893 = vld [vmem:[%s2 + $0x400] sm:$0xf]
    %v4894 = vld [vmem:[%s2 + $0x408] sm:$0xf]
    %v4895 = vld [vmem:[%s2 + $0x410] sm:$0xf]
    %v4896 = vld [vmem:[%s2 + $0x418] sm:$0xf]
    %v4897 = vld [vmem:[%s2 + $0x420] sm:$0xf]
    %v4898 = vld [vmem:[%s2 + $0x428] sm:$0xf]
    %v4899 = vld [vmem:[%s2 + $0x430] sm:$0xf]
    %v4900 = vld [vmem:[%s2 + $0x438] sm:$0xf]
    %v4901 = vld [vmem:[%s2 + $0x440] sm:$0xf]
    %v4902 = vld [vmem:[%s2 + $0x448] sm:$0xf]
    %v4903 = vld [vmem:[%s2 + $0x450] sm:$0xf]
    %v4904 = vld [vmem:[%s2 + $0x458] sm:$0xf]
    %v4905 = vld [vmem:[%s2 + $0x460] sm:$0xf]
    %v4906 = vld [vmem:[%s2 + $0x468] sm:$0xf]
    %v4907 = vld [vmem:[%s2 + $0x470] sm:$0xf]
    %v4908 = vld [vmem:[%s2 + $0x478] sm:$0xf]
    %v4909 = vld [vmem:[%s2 + $0x480] sm:$0xf]
    %v4910 = vld [vmem:[%s2 + $0x488] sm:$0xf]
    %v4911 = vld [vmem:[%s2 + $0x490] sm:$0xf]
    %v4912 = vpack.c.bf16 %v4832, %v4832
    %v4913 = vpack.c.bf16 %v4833, %v4833
    %v4914 = vpack.c.bf16 %v4834, %v4834
    %v4915 = vpack.c.bf16 %v4835, %v4835
    %v4916 = vpack.c.bf16 %v4836, %v4836
    %v4917 = vld [vmem:[%s3 + $0x5] ss:$0 sm:$0xff]
    %v4993 = vunpack.c.l.b16 %v4837
    %v4994 = vunpack.c.l.b16 %v4838
    %v4995 = vunpack.c.l.b16 %v4839
    %v4996 = vunpack.c.l.b16 %v4840
    %v4997 = vunpack.c.l.b16 %v4841
    %v4998 = vunpack.c.l.b16 %v4842
    %v4999 = vunpack.c.l.b16 %v4843
    %v5000 = vunpack.c.l.b16 %v4844
    %v5001 = vunpack.c.l.b16 %v4845
    %v5002 = vunpack.c.l.b16 %v4846
    %v5003 = vunpack.c.l.b16 %v4847
    %v5004 = vunpack.c.l.b16 %v4848
    %v5005 = vunpack.c.l.b16 %v4849
    %v5006 = vunpack.c.l.b16 %v4850
    %v5007 = vunpack.c.l.b16 %v4851
    %v5008 = vunpack.c.l.b16 %v4852
    %v5009 = vunpack.c.l.b16 %v4853
    %v5010 = vunpack.c.l.b16 %v4854
    %v5011 = vunpack.c.l.b16 %v4855
    %v5012 = vunpack.c.l.b16 %v4856
    %v5013 = vunpack.c.l.b16 %v4857
    %v5014 = vunpack.c.l.b16 %v4858
    %v5015 = vunpack.c.l.b16 %v4859
    %v5016 = vunpack.c.l.b16 %v4860
    %v5017 = vunpack.c.l.b16 %v4861
    %v5018 = vunpack.c.l.b16 %v4862
    %v5019 = vunpack.c.l.b16 %v4863
    %v5020 = vunpack.c.l.b16 %v4864
    %v5021 = vunpack.c.l.b16 %v4865
    %v5022 = vunpack.c.l.b16 %v4866
    %v5023 = vunpack.c.l.b16 %v4867
    %v5024 = vunpack.c.l.b16 %v4868
    %v5025 = vunpack.c.l.b16 %v4869
    %v5026 = vunpack.c.l.b16 %v4870
    %v5027 = vunpack.c.l.b16 %v4871
    %v5028 = vunpack.c.l.b16 %v4872
    %v5029 = vunpack.c.l.b16 %v4873
    %v5030 = vunpack.c.l.b16 %v4874
    %v5031 = vunpack.c.l.b16 %v4875
    %v5032 = vunpack.c.l.b16 %v4876
    %v5033 = vunpack.c.l.b16 %v4877
    %v5034 = vunpack.c.l.b16 %v4878
    %v5035 = vunpack.c.l.b16 %v4879
    %v5036 = vunpack.c.l.b16 %v4880
    %v5037 = vunpack.c.l.b16 %v4881
    %v5038 = vunpack.c.l.b16 %v4882
    %v5039 = vunpack.c.l.b16 %v4883
    %v5040 = vunpack.c.l.b16 %v4884
    %v5041 = vunpack.c.l.b16 %v4885
    %v5042 = vunpack.c.l.b16 %v4886
    %v5043 = vunpack.c.l.b16 %v4887
    %v5044 = vunpack.c.l.b16 %v4888
    %v5045 = vunpack.c.l.b16 %v4889
    %v5046 = vunpack.c.l.b16 %v4890
    %v5047 = vunpack.c.l.b16 %v4891
    %v5048 = vunpack.c.l.b16 %v4892
    %v5049 = vunpack.c.l.b16 %v4893
    %v5050 = vunpack.c.l.b16 %v4894
    %v5051 = vunpack.c.l.b16 %v4895
    %v5052 = vunpack.c.l.b16 %v4896
    %v5053 = vunpack.c.l.b16 %v4897
    %v5054 = vunpack.c.l.b16 %v4898
    %v5055 = vunpack.c.l.b16 %v4899
    %v5056 = vunpack.c.l.b16 %v4900
    %v5057 = vunpack.c.l.b16 %v4901
    %v5058 = vunpack.c.l.b16 %v4902
    %v5059 = vunpack.c.l.b16 %v4903
    %v5060 = vunpack.c.l.b16 %v4904
    %v5061 = vunpack.c.l.b16 %v4905
    %v5062 = vunpack.c.l.b16 %v4906
    %v5063 = vunpack.c.l.b16 %v4907
    %v5064 = vunpack.c.l.b16 %v4908
    %v5065 = vunpack.c.l.b16 %v4909
    %v5066 = vunpack.c.l.b16 %v4910
    %v5067 = vunpack.c.l.b16 %v4911
    %v5068 = vpack.c.b16 %v4994, %v4993
    %v5069 = vpack.c.b16 %v4996, %v4995
    %v5070 = vpack.c.b16 %v4998, %v4997
    %v5071 = vpack.c.b16 %v5000, %v4999
    %v5072 = vpack.c.b16 %v5002, %v5001
    %v5073 = vpack.c.b16 %v5004, %v5003
    %v5074 = vpack.c.b16 %v5006, %v5005
    %v5075 = vpack.c.b16 %v5008, %v5007
    %v5076 = vpack.c.b16 %v5010, %v5009
    %v5077 = vpack.c.b16 %v5012, %v5011
    %v5078 = vpack.c.b16 %v5014, %v5013
    %v5079 = vpack.c.b16 %v5016, %v5015
    %v5080 = vpack.c.b16 %v5018, %v5017
    %v5081 = vpack.c.b16 %v5020, %v5019
    %v5082 = vpack.c.b16 %v5022, %v5021
    %v5083 = vpack.c.b16 %v5024, %v5023
    %v5084 = vpack.c.b16 %v5026, %v5025
    %v5085 = vpack.c.b16 %v5028, %v5027
    %v5086 = vpack.c.b16 %v5030, %v5029
    %v5087 = vpack.c.b16 %v5032, %v5031
    %v5088 = vpack.c.b16 %v5034, %v5033
    %v5089 = vpack.c.b16 %v5036, %v5035
    %v5090 = vpack.c.b16 %v5038, %v5037
    %v5091 = vpack.c.b16 %v5040, %v5039
    %v5092 = vpack.c.b16 %v5042, %v5041
    %v5093 = vpack.c.b16 %v5044, %v5043
    %v5094 = vpack.c.b16 %v5046, %v5045
    %v5095 = vpack.c.b16 %v5048, %v5047
    %v5096 = vpack.c.b16 %v5050, %v5049
    %v5097 = vpack.c.b16 %v5052, %v5051
    %v5098 = vpack.c.b16 %v5054, %v5053
    %v5099 = vpack.c.b16 %v5056, %v5055
    %v5100 = vpack.c.b16 %v5058, %v5057
    %v5101 = vpack.c.b16 %v5060, %v5059
    %v5102 = vpack.c.b16 %v5062, %v5061
    %v5103 = vpack.c.b16 %v5064, %v5063
    %v5104 = vpack.c.b16 %v5066, %v5065
    %v5105 = vpack.c.b16 %v5067, %v5067
    %vm5143 = vcmask 719872
    %v5145 = vsel %vm5143, %v4916, 0
    %v5148 = vsel %vm361, %v5105, 0
    %5150 = vmatprep.subr.bf16.mxu0 0
    %5151 = vmatpush1.bf16.msra.mxu0 %v5068
    %5152 = vmatprep.subr.bf16.mxu0 0
    %5153 = vmatpush1.bf16.msra.mxu0 %v5069
    %5154 = vmatprep.subr.bf16.mxu0 0
    %5155 = vmatpush1.bf16.msra.mxu0 %v5070
    %5156 = vmatprep.subr.bf16.mxu0 0
    %5157 = vmatpush1.bf16.msra.mxu0 %v5071
    %5158 = vmatprep.subr.bf16.mxu0 0
    %5159 = vmatpush1.bf16.msra.mxu0 %v5072
    %5160 = vmatprep.subr.bf16.mxu0 0
    %5161 = vmatpush1.bf16.msra.mxu0 %v5073
    %5162 = vmatprep.subr.bf16.mxu0 0
    %5163 = vmatpush1.bf16.msra.mxu0 %v5074
    %5164 = vmatprep.subr.bf16.mxu0 0
    %5165 = vmatpush1.bf16.msra.mxu0 %v5075
    %5166 = vmatprep.subr.bf16.mxu0 0
    %5167 = vmatpush1.bf16.msra.mxu0 %v5076
    %5168 = vmatprep.subr.bf16.mxu0 0
    %5169 = vmatpush1.bf16.msra.mxu0 %v5077
    %5170 = vmatprep.subr.bf16.mxu0 0
    %5171 = vmatpush1.bf16.msra.mxu0 %v5078
    %5172 = vmatprep.subr.bf16.mxu0 0
    %5173 = vmatpush1.bf16.msra.mxu0 %v5079
    %5174 = vmatprep.subr.bf16.mxu0 0
    %5175 = vmatpush1.bf16.msra.mxu0 %v5080
    %5176 = vmatprep.subr.bf16.mxu0 0
    %5177 = vmatpush1.bf16.msra.mxu0 %v5081
    %5178 = vmatprep.subr.bf16.mxu0 0
    %5179 = vmatpush1.bf16.msra.mxu0 %v5082
    %5180 = vmatprep.subr.bf16.mxu0 0
    %5181 = vmatpush1.bf16.msra.mxu0 %v5083
    %5182 = vmatprep.mubr.bf16.mxu0 %v4913
    %5183 = vmatmul.mubr.bf16.gmra.mrb[0].mxu0 %v4912
    %v5184 = vpop.f32.mrb[0].mxu0
    %v5185 = vadd.f32 %v4917, %v5184
    %v5186 = vpop.f32.mrb[0].mxu0
    %v5187 = vpop.f32.mrb[0].mxu0
    %v5188 = vpop.f32.mrb[0].mxu0
    %5189 = vdwg.mxu0
    %5190 = vmatprep.subr.bf16.mxu0 0
    %5191 = vmatpush1.bf16.msra.mxu0 %v5084
    %5192 = vmatprep.subr.bf16.mxu0 0
    %5193 = vmatpush1.bf16.msra.mxu0 %v5085
    %5194 = vmatprep.subr.bf16.mxu0 0
    %5195 = vmatpush1.bf16.msra.mxu0 %v5086
    %5196 = vmatprep.subr.bf16.mxu0 0
    %5197 = vmatpush1.bf16.msra.mxu0 %v5087
    %5198 = vmatprep.subr.bf16.mxu0 0
    %5199 = vmatpush1.bf16.msra.mxu0 %v5088
    %5200 = vmatprep.subr.bf16.mxu0 0
    %5201 = vmatpush1.bf16.msra.mxu0 %v5089
    %5202 = vmatprep.subr.bf16.mxu0 0
    %5203 = vmatpush1.bf16.msra.mxu0 %v5090
    %5204 = vmatprep.subr.bf16.mxu0 0
    %5205 = vmatpush1.bf16.msra.mxu0 %v5091
    %5206 = vmatprep.subr.bf16.mxu0 0
    %5207 = vmatpush1.bf16.msra.mxu0 %v5092
    %5208 = vmatprep.subr.bf16.mxu0 0
    %5209 = vmatpush1.bf16.msra.mxu0 %v5093
    %5210 = vmatprep.subr.bf16.mxu0 0
    %5211 = vmatpush1.bf16.msra.mxu0 %v5094
    %5212 = vmatprep.subr.bf16.mxu0 0
    %5213 = vmatpush1.bf16.msra.mxu0 %v5095
    %5214 = vmatprep.subr.bf16.mxu0 0
    %5215 = vmatpush1.bf16.msra.mxu0 %v5096
    %5216 = vmatprep.subr.bf16.mxu0 0
    %5217 = vmatpush1.bf16.msra.mxu0 %v5097
    %5218 = vmatprep.subr.bf16.mxu0 0
    %5219 = vmatpush1.bf16.msra.mxu0 %v5098
    %5220 = vmatprep.subr.bf16.mxu0 0
    %5221 = vmatpush1.bf16.msra.mxu0 %v5099
    %5222 = vmatprep.mubr.bf16.mxu0 %v4915
    %5223 = vmatmul.mubr.bf16.gmra.mrb[0].mxu0 %v4914
    %v5224 = vpop.f32.mrb[0].mxu0
    %v5225 = vadd.f32 %v5185, %v5224
    %v5226 = vpop.f32.mrb[0].mxu0
    %v5227 = vpop.f32.mrb[0].mxu0
    %v5228 = vpop.f32.mrb[0].mxu0
    %5229 = vdwg.mxu0
    %5230 = vmatprep.subr.bf16.mxu0 0
    %5231 = vmatpush1.bf16.msra.mxu0 %v5100
    %5232 = vmatprep.subr.bf16.mxu0 0
    %5233 = vmatpush1.bf16.msra.mxu0 %v5101
    %5234 = vmatprep.subr.bf16.mxu0 0
    %5235 = vmatpush1.bf16.msra.mxu0 %v5102
    %5236 = vmatprep.subr.bf16.mxu0 0
    %5237 = vmatpush1.bf16.msra.mxu0 %v5103
    %5238 = vmatprep.subr.bf16.mxu0 0
    %5239 = vmatpush1.bf16.msra.mxu0 %v5104
    %5240 = vmatprep.subr.bf16.mxu0 0
    %5241 = vmatpush1.bf16.msra.mxu0 %v5148
    %5242 = vmatprep.subr.bf16.mxu0 0
    %5243 = vmatpush1.bf16.msra.mxu0 0
    %5244 = vmatprep.subr.bf16.mxu0 0
    %5245 = vmatpush1.bf16.msra.mxu0 0
    %5246 = vmatprep.subr.bf16.mxu0 0
    %5247 = vmatpush1.bf16.msra.mxu0 0
    %5248 = vmatprep.subr.bf16.mxu0 0
    %5249 = vmatpush1.bf16.msra.mxu0 0
    %5250 = vmatprep.subr.bf16.mxu0 0
    %5251 = vmatpush1.bf16.msra.mxu0 0
    %5252 = vmatprep.subr.bf16.mxu0 0
    %5253 = vmatpush1.bf16.msra.mxu0 0
    %5254 = vmatprep.subr.bf16.mxu0 0
    %5255 = vmatpush1.bf16.msra.mxu0 0
    %5256 = vmatprep.subr.bf16.mxu0 0
    %5257 = vmatpush1.bf16.msra.mxu0 0
    %5258 = vmatprep.subr.bf16.mxu0 0
    %5259 = vmatpush1.bf16.msra.mxu0 0
    %5260 = vmatprep.subr.bf16.mxu0 0
    %5261 = vmatpush1.bf16.msra.mxu0 0
    %5262 = vmatprep.mubr.bf16.mxu0 0
    %5263 = vmatmul.mubr.bf16.gmra.mrb[0].mxu0 %v5145
    %v5264 = vpop.f32.mrb[0].mxu0
    %v5265 = vadd.f32 %v5225, %v5264
    %v5266 = vpop.f32.mrb[0].mxu0
    %v5267 = vpop.f32.mrb[0].mxu0
    %v5268 = vpop.f32.mrb[0].mxu0
    %5269 = vdwg.mxu0
    %vm5270 = vcmp.ge.f32.partialorder %v5265, 0.0
    %v5271 = vmul.f32 %v5265, 0.1
    %v5272 = vsel %vm5270, %v5265, %v5271
    %v5273 = vld [vmem:[%s0] sm:$0x3]
    %v5274 = vld [vmem:[%s2 + $0x4a0] sm:$0xf]
    %v5275 = vld [vmem:[%s2 + $0x4a8] sm:$0xf]
    %v5276 = vld [vmem:[%s2 + $0x4b0] sm:$0xf]
    %v5277 = vld [vmem:[%s2 + $0x4b8] sm:$0x3]
    %v5278 = vpack.c.bf16 %v5273, %v5273
    %v5279 = vld [vmem:[%s3 + $0x6] ss:$0 sm:$0xff]
    %5281 = vrot.lane.b32.xlu0 %v5278, 127
    %v5282 = vpop.permute.xlu0 %5281
    %v5287 = vunpack.c.l.b16 %v5274
    %v5288 = vunpack.c.l.b16 %v5275
    %v5289 = vunpack.c.l.b16 %v5276
    %v5290 = vunpack.c.l.b16 %v5277
    %v5291 = vpack.c.b16 %v5288, %v5287
    %v5292 = vpack.c.b16 %v5290, %v5289
    %vm5294 = vcmask 220160
    %v5296 = vsel %vm5294, %v5282, 0
    %vm5298 = vcmask 1044480
    %v5299 = vsel %vm5298, 4294967295, 65535
    %v5300 = vsel %vm153, %v5299, 0
    %v5302 = vand.u32 %v5292, %v5300
    %5304 = vmatprep.subr.bf16.mxu0 0
    %5305 = vmatpush1.bf16.msra.mxu0 %v5291
    %5306 = vmatprep.subr.bf16.mxu0 0
    %5307 = vmatpush1.bf16.msra.mxu0 %v5302
    %5308 = vmatprep.subr.bf16.mxu0 0
    %5309 = vmatpush1.bf16.msra.mxu0 0
    %5310 = vmatprep.subr.bf16.mxu0 0
    %5311 = vmatpush1.bf16.msra.mxu0 0
    %5312 = vmatprep.subr.bf16.mxu0 0
    %5313 = vmatpush1.bf16.msra.mxu0 0
    %5314 = vmatprep.subr.bf16.mxu0 0
    %5315 = vmatpush1.bf16.msra.mxu0 0
    %5316 = vmatprep.subr.bf16.mxu0 0
    %5317 = vmatpush1.bf16.msra.mxu0 0
    %5318 = vmatprep.subr.bf16.mxu0 0
    %5319 = vmatpush1.bf16.msra.mxu0 0
    %5320 = vmatprep.subr.bf16.mxu0 0
    %5321 = vmatpush1.bf16.msra.mxu0 0
    %5322 = vmatprep.subr.bf16.mxu0 0
    %5323 = vmatpush1.bf16.msra.mxu0 0
    %5324 = vmatprep.subr.bf16.mxu0 0
    %5325 = vmatpush1.bf16.msra.mxu0 0
    %5326 = vmatprep.subr.bf16.mxu0 0
    %5327 = vmatpush1.bf16.msra.mxu0 0
    %5328 = vmatprep.subr.bf16.mxu0 0
    %5329 = vmatpush1.bf16.msra.mxu0 0
    %5330 = vmatprep.subr.bf16.mxu0 0
    %5331 = vmatpush1.bf16.msra.mxu0 0
    %5332 = vmatprep.subr.bf16.mxu0 0
    %5333 = vmatpush1.bf16.msra.mxu0 0
    %5334 = vmatprep.subr.bf16.mxu0 0
    %5335 = vmatpush1.bf16.msra.mxu0 0
    %5336 = vmatprep.mubr.bf16.mxu0 0
    %5337 = vmatmul.mubr.bf16.gmra.mrb[0].mxu0 %v5296
    %v5338 = vpop.f32.mrb[0].mxu0
    %v5339 = vadd.f32 %v5279, %v5338
    %v5340 = vpop.f32.mrb[0].mxu0
    %v5341 = vpop.f32.mrb[0].mxu0
    %v5342 = vpop.f32.mrb[0].mxu0
    %5343 = vdwg.mxu0
    %vm5344 = vcmp.ge.f32.partialorder %v5339, 0.0
    %v5345 = vmul.f32 %v5339, 0.1
    %v5346 = vsel %vm5344, %v5339, %v5345
    %v5347 = vld [vmem:[%s2 + $0x4c0] sm:$0xf]
    %v5348 = vld [vmem:[%s2 + $0x4c8] sm:$0xf]
    %v5349 = vld [vmem:[%s2 + $0x4d0] sm:$0xf]
    %v5350 = vld [vmem:[%s2 + $0x4d8] sm:$0x3]
    %v5351 = vpack.c.bf16 %v5346, %v5346
    %v5352 = vld [vmem:[%s3 + $0x7] ss:$0 sm:$0xff]
    %v5357 = vunpack.c.l.b16 %v5347
    %v5358 = vunpack.c.l.b16 %v5348
    %v5359 = vunpack.c.l.b16 %v5349
    %v5360 = vunpack.c.l.b16 %v5350
    %v5361 = vpack.c.b16 %v5358, %v5357
    %v5362 = vpack.c.b16 %v5360, %v5359
    %v5365 = vsel %vm5294, %v5351, 0
    %v5368 = vand.u32 %v5362, %v5300
    %5370 = vmatprep.subr.bf16.mxu0 0
    %5371 = vmatpush1.bf16.msra.mxu0 %v5361
    %5372 = vmatprep.subr.bf16.mxu0 0
    %5373 = vmatpush1.bf16.msra.mxu0 %v5368
    %5374 = vmatprep.subr.bf16.mxu0 0
    %5375 = vmatpush1.bf16.msra.mxu0 0
    %5376 = vmatprep.subr.bf16.mxu0 0
    %5377 = vmatpush1.bf16.msra.mxu0 0
    %5378 = vmatprep.subr.bf16.mxu0 0
    %5379 = vmatpush1.bf16.msra.mxu0 0
    %5380 = vmatprep.subr.bf16.mxu0 0
    %5381 = vmatpush1.bf16.msra.mxu0 0
    %5382 = vmatprep.subr.bf16.mxu0 0
    %5383 = vmatpush1.bf16.msra.mxu0 0
    %5384 = vmatprep.subr.bf16.mxu0 0
    %5385 = vmatpush1.bf16.msra.mxu0 0
    %5386 = vmatprep.subr.bf16.mxu0 0
    %5387 = vmatpush1.bf16.msra.mxu0 0
    %5388 = vmatprep.subr.bf16.mxu0 0
    %5389 = vmatpush1.bf16.msra.mxu0 0
    %5390 = vmatprep.subr.bf16.mxu0 0
    %5391 = vmatpush1.bf16.msra.mxu0 0
    %5392 = vmatprep.subr.bf16.mxu0 0
    %5393 = vmatpush1.bf16.msra.mxu0 0
    %5394 = vmatprep.subr.bf16.mxu0 0
    %5395 = vmatpush1.bf16.msra.mxu0 0
    %5396 = vmatprep.subr.bf16.mxu0 0
    %5397 = vmatpush1.bf16.msra.mxu0 0
    %5398 = vmatprep.subr.bf16.mxu0 0
    %5399 = vmatpush1.bf16.msra.mxu0 0
    %5400 = vmatprep.subr.bf16.mxu0 0
    %5401 = vmatpush1.bf16.msra.mxu0 0
    %5402 = vmatprep.mubr.bf16.mxu0 0
    %5403 = vmatmul.mubr.bf16.gmra.mrb[0].mxu0 %v5365
    %v5404 = vpop.f32.mrb[0].mxu0
    %v5405 = vadd.f32 %v5352, %v5404
    %v5406 = vpop.f32.mrb[0].mxu0
    %v5407 = vpop.f32.mrb[0].mxu0
    %v5408 = vpop.f32.mrb[0].mxu0
    %5409 = vdwg.mxu0
    %vm5410 = vcmp.ge.f32.partialorder %v5405, 0.0
    %v5411 = vmul.f32 %v5405, 0.1
    %v5412 = vsel %vm5410, %v5405, %v5411
    %v5413 = vld [vmem:[%s2 + $0x4e0] sm:$0xf]
    %v5414 = vld [vmem:[%s2 + $0x4e8] sm:$0xf]
    %v5415 = vld [vmem:[%s2 + $0x4f0] sm:$0x3]
    %v5416 = vpack.c.bf16 %v5412, %v5412
    %v5417 = vld [vmem:[%s3 + $0x10] ss:$0 sm:$0xff]
    %v5421 = vunpack.c.l.b16 %v5413
    %v5422 = vunpack.c.l.b16 %v5414
    %v5423 = vunpack.c.l.b16 %v5415
    %v5424 = vpack.c.b16 %v5422, %v5421
    %v5425 = vpack.c.b16 %v5423, %v5423
    %vm5427 = vcmask 162816
    %v5429 = vsel %vm5427, %v5416, 0
    %v5432 = vsel %vm418, %v5425, 0
    %5434 = vmatprep.subr.bf16.mxu0 0
    %5435 = vmatpush1.bf16.msra.mxu0 %v5424
    %5436 = vmatprep.subr.bf16.mxu0 0
    %5437 = vmatpush1.bf16.msra.mxu0 %v5432
    %5438 = vmatprep.subr.bf16.mxu0 0
    %5439 = vmatpush1.bf16.msra.mxu0 0
    %5440 = vmatprep.subr.bf16.mxu0 0
    %5441 = vmatpush1.bf16.msra.mxu0 0
    %5442 = vmatprep.subr.bf16.mxu0 0
    %5443 = vmatpush1.bf16.msra.mxu0 0
    %5444 = vmatprep.subr.bf16.mxu0 0
    %5445 = vmatpush1.bf16.msra.mxu0 0
    %5446 = vmatprep.subr.bf16.mxu0 0
    %5447 = vmatpush1.bf16.msra.mxu0 0
    %5448 = vmatprep.subr.bf16.mxu0 0
    %5449 = vmatpush1.bf16.msra.mxu0 0
    %5450 = vmatprep.subr.bf16.mxu0 0
    %5451 = vmatpush1.bf16.msra.mxu0 0
    %5452 = vmatprep.subr.bf16.mxu0 0
    %5453 = vmatpush1.bf16.msra.mxu0 0
    %5454 = vmatprep.subr.bf16.mxu0 0
    %5455 = vmatpush1.bf16.msra.mxu0 0
    %5456 = vmatprep.subr.bf16.mxu0 0
    %5457 = vmatpush1.bf16.msra.mxu0 0
    %5458 = vmatprep.subr.bf16.mxu0 0
    %5459 = vmatpush1.bf16.msra.mxu0 0
    %5460 = vmatprep.subr.bf16.mxu0 0
    %5461 = vmatpush1.bf16.msra.mxu0 0
    %5462 = vmatprep.subr.bf16.mxu0 0
    %5463 = vmatpush1.bf16.msra.mxu0 0
    %5464 = vmatprep.subr.bf16.mxu0 0
    %5465 = vmatpush1.bf16.msra.mxu0 0
    %5466 = vmatprep.mubr.bf16.mxu0 0
    %5467 = vmatmul.mubr.bf16.gmra.mrb[0].mxu0 %v5429
    %v5468 = vpop.f32.mrb[0].mxu0
    %v5469 = vadd.f32 %v5417, %v5468
    %v5470 = vpop.f32.mrb[0].mxu0
    %v5471 = vpop.f32.mrb[0].mxu0
    %v5472 = vpop.f32.mrb[0].mxu0
    %5473 = vdwg.mxu0
    %vm5474 = vcmp.ge.f32.partialorder %v5469, 0.0
    %v5475 = vmul.f32 %v5469, 0.1
    %v5476 = vsel %vm5474, %v5469, %v5475
    %v5477 = vld [vmem:[%s2 + $0x500] sm:$0xf]
    %v5478 = vld [vmem:[%s2 + $0x508] sm:$0x3]
    %v5479 = vpack.c.bf16 %v5476, %v5476
    %v5480 = vld [vmem:[%s2 + $0x510] sm:$0xf]
    %v5481 = vld [vmem:[%s2 + $0x518] sm:$0xf]
    %v5482 = vld [vmem:[%s2 + $0x520] sm:$0xf]
    %v5483 = vld [vmem:[%s2 + $0x528] sm:$0xf]
    %v5484 = vld [vmem:[%s2 + $0x530] sm:$0xf]
    %v5485 = vld [vmem:[%s2 + $0x538] sm:$0xf]
    %v5486 = vld [vmem:[%s2 + $0x540] sm:$0xf]
    %v5487 = vld [vmem:[%s2 + $0x548] sm:$0xf]
    %v5488 = vld [vmem:[%s2 + $0x550] sm:$0xf]
    %v5489 = vld [vmem:[%s2 + $0x558] sm:$0xf]
    %v5490 = vld [vmem:[%s2 + $0x560] sm:$0xf]
    %v5491 = vld [vmem:[%s2 + $0x568] sm:$0xf]
    %v5492 = vld [vmem:[%s2 + $0x570] sm:$0xf]
    %v5493 = vld [vmem:[%s2 + $0x578] sm:$0xf]
    %v5494 = vld [vmem:[%s2 + $0x580] sm:$0xf]
    %v5495 = vld [vmem:[%s2 + $0x588] sm:$0xf]
    %v5496 = vpack.c.bf16 %v5272, %v5272
    %v5513 = vunpack.c.l.b16 %v5480
    %v5514 = vunpack.c.l.b16 %v5481
    %v5515 = vunpack.c.l.b16 %v5482
    %v5516 = vunpack.c.l.b16 %v5483
    %v5517 = vunpack.c.l.b16 %v5484
    %v5518 = vunpack.c.l.b16 %v5485
    %v5519 = vunpack.c.l.b16 %v5486
    %v5520 = vunpack.c.l.b16 %v5487
    %v5521 = vunpack.c.l.b16 %v5488
    %v5522 = vunpack.c.l.b16 %v5489
    %v5523 = vunpack.c.l.b16 %v5490
    %v5524 = vunpack.c.l.b16 %v5491
    %v5525 = vunpack.c.l.b16 %v5492
    %v5526 = vunpack.c.l.b16 %v5493
    %v5527 = vunpack.c.l.b16 %v5494
    %v5528 = vunpack.c.l.b16 %v5495
    %v5529 = vpack.c.b16 %v5514, %v5513
    %v5530 = vpack.c.b16 %v5516, %v5515
    %v5531 = vpack.c.b16 %v5518, %v5517
    %v5532 = vpack.c.b16 %v5520, %v5519
    %v5533 = vpack.c.b16 %v5522, %v5521
    %v5534 = vpack.c.b16 %v5524, %v5523
    %v5535 = vpack.c.b16 %v5526, %v5525
    %v5536 = vpack.c.b16 %v5528, %v5527
    %5545 = vmatprep.subr.bf16.mxu0 0
    %5546 = vmatpush1.bf16.msra.mxu0 %v5529
    %5547 = vmatprep.subr.bf16.mxu0 0
    %5548 = vmatpush1.bf16.msra.mxu0 %v5530
    %5549 = vmatprep.subr.bf16.mxu0 0
    %5550 = vmatpush1.bf16.msra.mxu0 %v5531
    %5551 = vmatprep.subr.bf16.mxu0 0
    %5552 = vmatpush1.bf16.msra.mxu0 %v5532
    %5553 = vmatprep.subr.bf16.mxu0 0
    %5554 = vmatpush1.bf16.msra.mxu0 %v5533
    %5555 = vmatprep.subr.bf16.mxu0 0
    %5556 = vmatpush1.bf16.msra.mxu0 %v5534
    %5557 = vmatprep.subr.bf16.mxu0 0
    %5558 = vmatpush1.bf16.msra.mxu0 %v5535
    %5559 = vmatprep.subr.bf16.mxu0 0
    %5560 = vmatpush1.bf16.msra.mxu0 %v5536
    %5561 = vmatprep.subr.bf16.mxu0 0
    %5562 = vmatpush1.bf16.msra.mxu0 0
    %5563 = vmatprep.subr.bf16.mxu0 0
    %5564 = vmatpush1.bf16.msra.mxu0 0
    %5565 = vmatprep.subr.bf16.mxu0 0
    %5566 = vmatpush1.bf16.msra.mxu0 0
    %5567 = vmatprep.subr.bf16.mxu0 0
    %5568 = vmatpush1.bf16.msra.mxu0 0
    %5569 = vmatprep.subr.bf16.mxu0 0
    %5570 = vmatpush1.bf16.msra.mxu0 0
    %5571 = vmatprep.subr.bf16.mxu0 0
    %5572 = vmatpush1.bf16.msra.mxu0 0
    %5573 = vmatprep.subr.bf16.mxu0 0
    %5574 = vmatpush1.bf16.msra.mxu0 0
    %5575 = vmatprep.subr.bf16.mxu0 0
    %5576 = vmatpush1.bf16.msra.mxu0 0
    %5577 = vmatprep.mubr.bf16.mxu0 0
    %5578 = vmatmul.mubr.bf16.gmra.mrb[0].mxu0 %v5496
    %v5579 = vpop.f32.mrb[0].mxu0
    %v5580 = vadd.f32 0.0, %v5579
    %v5581 = vpop.f32.mrb[0].mxu0
    %v5582 = vpop.f32.mrb[0].mxu0
    %v5583 = vpop.f32.mrb[0].mxu0
    %5584 = vdwg.mxu0
    %v5587 = vunpack.c.l.b16 %v5477
    %v5588 = vunpack.c.l.b16 %v5478
    %v5589 = vpack.c.b16 %v5588, %v5587
    %vm5590 = vcmask 97280
    %v5592 = vsel %vm5590, %v5479, 0
    %v5595 = vsel %vm153, %v5589, 0
    %5597 = vmatprep.subr.bf16.mxu0 0
    %5598 = vmatpush1.bf16.msra.mxu0 %v5595
    %5599 = vmatprep.subr.bf16.mxu0 0
    %5600 = vmatpush1.bf16.msra.mxu0 0
    %5601 = vmatprep.subr.bf16.mxu0 0
    %5602 = vmatpush1.bf16.msra.mxu0 0
    %5603 = vmatprep.subr.bf16.mxu0 0
    %5604 = vmatpush1.bf16.msra.mxu0 0
    %5605 = vmatprep.subr.bf16.mxu0 0
    %5606 = vmatpush1.bf16.msra.mxu0 0
    %5607 = vmatprep.subr.bf16.mxu0 0
    %5608 = vmatpush1.bf16.msra.mxu0 0
    %5609 = vmatprep.subr.bf16.mxu0 0
    %5610 = vmatpush1.bf16.msra.mxu0 0
    %5611 = vmatprep.subr.bf16.mxu0 0
    %5612 = vmatpush1.bf16.msra.mxu0 0
    %5613 = vmatprep.subr.bf16.mxu0 0
    %5614 = vmatpush1.bf16.msra.mxu0 0
    %5615 = vmatprep.subr.bf16.mxu0 0
    %5616 = vmatpush1.bf16.msra.mxu0 0
    %5617 = vmatprep.subr.bf16.mxu0 0
    %5618 = vmatpush1.bf16.msra.mxu0 0
    %5619 = vmatprep.subr.bf16.mxu0 0
    %5620 = vmatpush1.bf16.msra.mxu0 0
    %5621 = vmatprep.subr.bf16.mxu0 0
    %5622 = vmatpush1.bf16.msra.mxu0 0
    %5623 = vmatprep.subr.bf16.mxu0 0
    %5624 = vmatpush1.bf16.msra.mxu0 0
    %5625 = vmatprep.subr.bf16.mxu0 0
    %5626 = vmatpush1.bf16.msra.mxu0 0
    %5627 = vmatprep.subr.bf16.mxu0 0
    %5628 = vmatpush1.bf16.msra.mxu0 0
    %5629 = vmatprep.mubr.bf16.mxu0 0
    %5630 = vmatmul.mubr.bf16.gmra.mrb[0].mxu0 %v5592
    %v5631 = vpop.f32.mrb[0].mxu0
    %v5632 = vadd.f32 %v5580, %v5631
    %v5633 = vpop.f32.mrb[0].mxu0
    %v5634 = vpop.f32.mrb[0].mxu0
    %v5635 = vpop.f32.mrb[0].mxu0
    %5636 = vdwg.mxu0
    %v5637 = vld [vmem:[%s3 + $0x11] ss:$0 sm:$0xff]
    %v5638 = vadd.f32 %v5632, %v5637
    %vm5639 = vcmp.ge.f32.partialorder %v5638, 0.0
    %v5640 = vmul.f32 %v5638, 0.1
    %v5641 = vsel %vm5639, %v5638, %v5640
    %v5642 = vld [vmem:[%s2 + $0x590] sm:$0xf]
    %v5643 = vld [vmem:[%s2 + $0x598] sm:$0xf]
    %v5644 = vld [vmem:[%s2 + $0x5a0] sm:$0xf]
    %v5645 = vld [vmem:[%s2 + $0x5a8] sm:$0xf]
    %v5646 = vld [vmem:[%s2 + $0x5b0] sm:$0xf]
    %v5647 = vld [vmem:[%s2 + $0x5b8] sm:$0xf]
    %v5648 = vld [vmem:[%s2 + $0x5c0] sm:$0xf]
    %v5649 = vld [vmem:[%s2 + $0x5c8] sm:$0x3]
    %v5650 = vpack.c.bf16 %v5641, %v5641
    %v5651 = vld [vmem:[%s3 + $0x12] ss:$0 sm:$0xff]
    %v5660 = vunpack.c.l.b16 %v5642
    %v5661 = vunpack.c.l.b16 %v5643
    %v5662 = vunpack.c.l.b16 %v5644
    %v5663 = vunpack.c.l.b16 %v5645
    %v5664 = vunpack.c.l.b16 %v5646
    %v5665 = vunpack.c.l.b16 %v5647
    %v5666 = vunpack.c.l.b16 %v5648
    %v5667 = vunpack.c.l.b16 %v5649
    %v5668 = vpack.c.b16 %v5661, %v5660
    %v5669 = vpack.c.b16 %v5663, %v5662
    %v5670 = vpack.c.b16 %v5665, %v5664
    %v5671 = vpack.c.b16 %v5667, %v5666
    %v5676 = vsel %vm146, %v5650, 0
    %v5679 = vsel %vm153, %v5671, 0
    %5681 = vmatprep.subr.bf16.mxu0 0
    %5682 = vmatpush1.bf16.msra.mxu0 %v5668
    %5683 = vmatprep.subr.bf16.mxu0 0
    %5684 = vmatpush1.bf16.msra.mxu0 %v5669
    %5685 = vmatprep.subr.bf16.mxu0 0
    %5686 = vmatpush1.bf16.msra.mxu0 %v5670
    %5687 = vmatprep.subr.bf16.mxu0 0
    %5688 = vmatpush1.bf16.msra.mxu0 %v5679
    %5689 = vmatprep.subr.bf16.mxu0 0
    %5690 = vmatpush1.bf16.msra.mxu0 0
    %5691 = vmatprep.subr.bf16.mxu0 0
    %5692 = vmatpush1.bf16.msra.mxu0 0
    %5693 = vmatprep.subr.bf16.mxu0 0
    %5694 = vmatpush1.bf16.msra.mxu0 0
    %5695 = vmatprep.subr.bf16.mxu0 0
    %5696 = vmatpush1.bf16.msra.mxu0 0
    %5697 = vmatprep.subr.bf16.mxu0 0
    %5698 = vmatpush1.bf16.msra.mxu0 0
    %5699 = vmatprep.subr.bf16.mxu0 0
    %5700 = vmatpush1.bf16.msra.mxu0 0
    %5701 = vmatprep.subr.bf16.mxu0 0
    %5702 = vmatpush1.bf16.msra.mxu0 0
    %5703 = vmatprep.subr.bf16.mxu0 0
    %5704 = vmatpush1.bf16.msra.mxu0 0
    %5705 = vmatprep.subr.bf16.mxu0 0
    %5706 = vmatpush1.bf16.msra.mxu0 0
    %5707 = vmatprep.subr.bf16.mxu0 0
    %5708 = vmatpush1.bf16.msra.mxu0 0
    %5709 = vmatprep.subr.bf16.mxu0 0
    %5710 = vmatpush1.bf16.msra.mxu0 0
    %5711 = vmatprep.subr.bf16.mxu0 0
    %5712 = vmatpush1.bf16.msra.mxu0 0
    %5713 = vmatprep.mubr.bf16.mxu0 0
    %5714 = vmatmul.mubr.bf16.gmra.mrb[0].mxu0 %v5676
    %v5715 = vpop.f32.mrb[0].mxu0
    %v5716 = vadd.f32 %v5651, %v5715
    %v5717 = vpop.f32.mrb[0].mxu0
    %v5718 = vpop.f32.mrb[0].mxu0
    %v5719 = vpop.f32.mrb[0].mxu0
    %5720 = vdwg.mxu0
    %vm5721 = vcmp.ge.f32.partialorder %v5716, 0.0
    %v5722 = vmul.f32 %v5716, 0.1
    %v5723 = vsel %vm5721, %v5716, %v5722
    %v5724 = vld [vmem:[%s2 + $0x5d0] sm:$0xf]
    %v5725 = vld [vmem:[%s2 + $0x5d8] sm:$0xf]
    %v5726 = vld [vmem:[%s2 + $0x5e0] sm:$0xf]
    %v5727 = vld [vmem:[%s2 + $0x5e8] sm:$0x7]
    %v5728 = vpack.c.bf16 %v5723, %v5723
    %v5729 = vld [vmem:[%s3 + $0x13] ss:$0 sm:$0xff]
    %v5734 = vunpack.c.l.b16 %v5724
    %v5735 = vunpack.c.l.b16 %v5725
    %v5736 = vunpack.c.l.b16 %v5726
    %v5737 = vunpack.c.l.b16 %v5727
    %v5738 = vpack.c.b16 %v5735, %v5734
    %v5739 = vpack.c.b16 %v5737, %v5736
    %vm5741 = vcmask 244736
    %v5743 = vsel %vm5741, %v5728, 0
    %vm5745 = vcmask 1046528
    %v5747 = vsel %vm5745, %v5739, 0
    %5749 = vmatprep.subr.bf16.mxu0 0
    %5750 = vmatpush1.bf16.msra.mxu0 %v5738
    %5751 = vmatprep.subr.bf16.mxu0 0
    %5752 = vmatpush1.bf16.msra.mxu0 %v5747
    %5753 = vmatprep.subr.bf16.mxu0 0
    %5754 = vmatpush1.bf16.msra.mxu0 0
    %5755 = vmatprep.subr.bf16.mxu0 0
    %5756 = vmatpush1.bf16.msra.mxu0 0
    %5757 = vmatprep.subr.bf16.mxu0 0
    %5758 = vmatpush1.bf16.msra.mxu0 0
    %5759 = vmatprep.subr.bf16.mxu0 0
    %5760 = vmatpush1.bf16.msra.mxu0 0
    %5761 = vmatprep.subr.bf16.mxu0 0
    %5762 = vmatpush1.bf16.msra.mxu0 0
    %5763 = vmatprep.subr.bf16.mxu0 0
    %5764 = vmatpush1.bf16.msra.mxu0 0
    %5765 = vmatprep.subr.bf16.mxu0 0
    %5766 = vmatpush1.bf16.msra.mxu0 0
    %5767 = vmatprep.subr.bf16.mxu0 0
    %5768 = vmatpush1.bf16.msra.mxu0 0
    %5769 = vmatprep.subr.bf16.mxu0 0
    %5770 = vmatpush1.bf16.msra.mxu0 0
    %5771 = vmatprep.subr.bf16.mxu0 0
    %5772 = vmatpush1.bf16.msra.mxu0 0
    %5773 = vmatprep.subr.bf16.mxu0 0
    %5774 = vmatpush1.bf16.msra.mxu0 0
    %5775 = vmatprep.subr.bf16.mxu0 0
    %5776 = vmatpush1.bf16.msra.mxu0 0
    %5777 = vmatprep.subr.bf16.mxu0 0
    %5778 = vmatpush1.bf16.msra.mxu0 0
    %5779 = vmatprep.subr.bf16.mxu0 0
    %5780 = vmatpush1.bf16.msra.mxu0 0
    %5781 = vmatprep.mubr.bf16.mxu0 0
    %5782 = vmatmul.mubr.bf16.gmra.mrb[0].mxu0 %v5743
    %v5783 = vpop.f32.mrb[0].mxu0
    %v5784 = vadd.f32 %v5729, %v5783
    %v5785 = vpop.f32.mrb[0].mxu0
    %v5786 = vpop.f32.mrb[0].mxu0
    %v5787 = vpop.f32.mrb[0].mxu0
    %5788 = vdwg.mxu0
    %vm5789 = vcmp.ge.f32.partialorder %v5784, 0.0
    %v5790 = vmul.f32 %v5784, 0.1
    %v5791 = vsel %vm5789, %v5784, %v5790
    %v5792 = vld [vmem:[%s2 + $0x5f0] sm:$0xf]
    %v5793 = vld [vmem:[%s2 + $0x5f8] sm:$0xf]
    %v5794 = vld [vmem:[%s2 + $0x600] sm:$0x3]
    %v5795 = vpack.c.bf16 %v5791, %v5791
    %v5796 = vld [vmem:[%s3 + $0x14] ss:$0 sm:$0xff]
    %v5800 = vunpack.c.l.b16 %v5792
    %v5801 = vunpack.c.l.b16 %v5793
    %v5802 = vunpack.c.l.b16 %v5794
    %v5803 = vpack.c.b16 %v5801, %v5800
    %v5804 = vpack.c.b16 %v5802, %v5802
    %v5807 = vsel %vm5427, %v5795, 0
    %v5810 = vsel %vm418, %v5804, 0
    %5812 = vmatprep.subr.bf16.mxu0 0
    %5813 = vmatpush1.bf16.msra.mxu0 %v5803
    %5814 = vmatprep.subr.bf16.mxu0 0
    %5815 = vmatpush1.bf16.msra.mxu0 %v5810
    %5816 = vmatprep.subr.bf16.mxu0 0
    %5817 = vmatpush1.bf16.msra.mxu0 0
    %5818 = vmatprep.subr.bf16.mxu0 0
    %5819 = vmatpush1.bf16.msra.mxu0 0
    %5820 = vmatprep.subr.bf16.mxu0 0
    %5821 = vmatpush1.bf16.msra.mxu0 0
    %5822 = vmatprep.subr.bf16.mxu0 0
    %5823 = vmatpush1.bf16.msra.mxu0 0
    %5824 = vmatprep.subr.bf16.mxu0 0
    %5825 = vmatpush1.bf16.msra.mxu0 0
    %5826 = vmatprep.subr.bf16.mxu0 0
    %5827 = vmatpush1.bf16.msra.mxu0 0
    %5828 = vmatprep.subr.bf16.mxu0 0
    %5829 = vmatpush1.bf16.msra.mxu0 0
    %5830 = vmatprep.subr.bf16.mxu0 0
    %5831 = vmatpush1.bf16.msra.mxu0 0
    %5832 = vmatprep.subr.bf16.mxu0 0
    %5833 = vmatpush1.bf16.msra.mxu0 0
    %5834 = vmatprep.subr.bf16.mxu0 0
    %5835 = vmatpush1.bf16.msra.mxu0 0
    %5836 = vmatprep.subr.bf16.mxu0 0
    %5837 = vmatpush1.bf16.msra.mxu0 0
    %5838 = vmatprep.subr.bf16.mxu0 0
    %5839 = vmatpush1.bf16.msra.mxu0 0
    %5840 = vmatprep.subr.bf16.mxu0 0
    %5841 = vmatpush1.bf16.msra.mxu0 0
    %5842 = vmatprep.subr.bf16.mxu0 0
    %5843 = vmatpush1.bf16.msra.mxu0 0
    %5844 = vmatprep.mubr.bf16.mxu0 0
    %5845 = vmatmul.mubr.bf16.gmra.mrb[0].mxu0 %v5807
    %v5846 = vpop.f32.mrb[0].mxu0
    %v5847 = vadd.f32 %v5796, %v5846
    %v5848 = vpop.f32.mrb[0].mxu0
    %v5849 = vpop.f32.mrb[0].mxu0
    %v5850 = vpop.f32.mrb[0].mxu0
    %5851 = vdwg.mxu0
    %vm5852 = vcmp.ge.f32.partialorder %v5847, 0.0
    %v5853 = vmul.f32 %v5847, 0.1
    %v5854 = vsel %vm5852, %v5847, %v5853
    %v5855 = vld [vmem:[%s2 + $0x610] sm:$0xf]
    %v5856 = vpack.c.bf16 %v5854, %v5854
    %v5857 = vld [vmem:[%s2 + $0x620] sm:$0x1]
    %5858 = vrot.lane.b32.xlu0 %v5278, 100
    %v5859 = vpop.permute.xlu0 %5858
    %vm5860 = vcmask 15360
    %v5862 = vsel %vm5860, %v5859, 0
    %vm5864 = vcmask 1040384
    %v5866 = vsel %vm5864, %v5857, 0
    %5868 = vmatprep.subr.bf16.mxu0 0
    %5869 = vmatpush1.bf16.msra.mxu0 %v5866
    %5870 = vmatprep.subr.bf16.mxu0 0
    %5871 = vmatpush1.bf16.msra.mxu0 0
    %5872 = vmatprep.subr.bf16.mxu0 0
    %5873 = vmatpush1.bf16.msra.mxu0 0
    %5874 = vmatprep.subr.bf16.mxu0 0
    %5875 = vmatpush1.bf16.msra.mxu0 0
    %5876 = vmatprep.subr.bf16.mxu0 0
    %5877 = vmatpush1.bf16.msra.mxu0 0
    %5878 = vmatprep.subr.bf16.mxu0 0
    %5879 = vmatpush1.bf16.msra.mxu0 0
    %5880 = vmatprep.subr.bf16.mxu0 0
    %5881 = vmatpush1.bf16.msra.mxu0 0
    %5882 = vmatprep.subr.bf16.mxu0 0
    %5883 = vmatpush1.bf16.msra.mxu0 0
    %5884 = vmatprep.subr.bf16.mxu0 0
    %5885 = vmatpush1.bf16.msra.mxu0 0
    %5886 = vmatprep.subr.bf16.mxu0 0
    %5887 = vmatpush1.bf16.msra.mxu0 0
    %5888 = vmatprep.subr.bf16.mxu0 0
    %5889 = vmatpush1.bf16.msra.mxu0 0
    %5890 = vmatprep.subr.bf16.mxu0 0
    %5891 = vmatpush1.bf16.msra.mxu0 0
    %5892 = vmatprep.subr.bf16.mxu0 0
    %5893 = vmatpush1.bf16.msra.mxu0 0
    %5894 = vmatprep.subr.bf16.mxu0 0
    %5895 = vmatpush1.bf16.msra.mxu0 0
    %5896 = vmatprep.subr.bf16.mxu0 0
    %5897 = vmatpush1.bf16.msra.mxu0 0
    %5898 = vmatprep.subr.bf16.mxu0 0
    %5899 = vmatpush1.bf16.msra.mxu0 0
    %5900 = vmatprep.mubr.bf16.mxu0 0
    %5901 = vmatmul.mubr.bf16.gmra.mrb[0].mxu0 %v5862
    %v5902 = vpop.f32.mrb[0].mxu0
    %v5903 = vadd.f32 0.0, %v5902
    %v5904 = vpop.f32.mrb[0].mxu0
    %v5905 = vpop.f32.mrb[0].mxu0
    %v5906 = vpop.f32.mrb[0].mxu0
    %5907 = vdwg.mxu0
    %vm5908 = vcmask 56320
    %v5910 = vsel %vm5908, %v5856, 0
    %vm5912 = vcmask 1042432
    %v5913 = vsel %vm5912, 4294967295, 65535
    %v5914 = vsel %vm361, %v5913, 0
    %v5916 = vand.u32 %v5855, %v5914
    %5918 = vmatprep.subr.bf16.mxu0 0
    %5919 = vmatpush1.bf16.msra.mxu0 %v5916
    %5920 = vmatprep.subr.bf16.mxu0 0
    %5921 = vmatpush1.bf16.msra.mxu0 0
    %5922 = vmatprep.subr.bf16.mxu0 0
    %5923 = vmatpush1.bf16.msra.mxu0 0
    %5924 = vmatprep.subr.bf16.mxu0 0
    %5925 = vmatpush1.bf16.msra.mxu0 0
    %5926 = vmatprep.subr.bf16.mxu0 0
    %5927 = vmatpush1.bf16.msra.mxu0 0
    %5928 = vmatprep.subr.bf16.mxu0 0
    %5929 = vmatpush1.bf16.msra.mxu0 0
    %5930 = vmatprep.subr.bf16.mxu0 0
    %5931 = vmatpush1.bf16.msra.mxu0 0
    %5932 = vmatprep.subr.bf16.mxu0 0
    %5933 = vmatpush1.bf16.msra.mxu0 0
    %5934 = vmatprep.subr.bf16.mxu0 0
    %5935 = vmatpush1.bf16.msra.mxu0 0
    %5936 = vmatprep.subr.bf16.mxu0 0
    %5937 = vmatpush1.bf16.msra.mxu0 0
    %5938 = vmatprep.subr.bf16.mxu0 0
    %5939 = vmatpush1.bf16.msra.mxu0 0
    %5940 = vmatprep.subr.bf16.mxu0 0
    %5941 = vmatpush1.bf16.msra.mxu0 0
    %5942 = vmatprep.subr.bf16.mxu0 0
    %5943 = vmatpush1.bf16.msra.mxu0 0
    %5944 = vmatprep.subr.bf16.mxu0 0
    %5945 = vmatpush1.bf16.msra.mxu0 0
    %5946 = vmatprep.subr.bf16.mxu0 0
    %5947 = vmatpush1.bf16.msra.mxu0 0
    %5948 = vmatprep.subr.bf16.mxu0 0
    %5949 = vmatpush1.bf16.msra.mxu0 0
    %5950 = vmatprep.mubr.bf16.mxu0 0
    %5951 = vmatmul.mubr.bf16.gmra.mrb[0].mxu0 %v5910
    %v5952 = vpop.f32.mrb[0].mxu0
    %v5953 = vadd.f32 %v5903, %v5952
    %v5954 = vpop.f32.mrb[0].mxu0
    %v5955 = vpop.f32.mrb[0].mxu0
    %v5956 = vpop.f32.mrb[0].mxu0
    %5957 = vdwg.mxu0
    %v5958 = vld [vmem:[%s3 + $0x15] ss:$0 sm:$0xff]
    %v5959 = vadd.f32 %v5953, %v5958
    %vm5960 = vcmp.ge.f32.partialorder %v5959, 0.0
    %v5961 = vmul.f32 %v5959, 0.1
    %v5962 = vsel %vm5960, %v5959, %v5961
    %v5963 = vld [vmem:[%s2 + $0x630] sm:$0x7]
    %v5964 = vpack.c.bf16 %v5962, %v5962
    %v5965 = vld [vmem:[%s3 + $0x16] ss:$0 sm:$0xff]
    %vm5966 = vcmask 48128
    %v5968 = vsel %vm5966, %v5964, 0
    %v5971 = vsel %vm5912, %v5963, 0
    %5973 = vmatprep.subr.bf16.mxu0 0
    %5974 = vmatpush1.bf16.msra.mxu0 %v5971
    %5975 = vmatprep.subr.bf16.mxu0 0
    %5976 = vmatpush1.bf16.msra.mxu0 0
    %5977 = vmatprep.subr.bf16.mxu0 0
    %5978 = vmatpush1.bf16.msra.mxu0 0
    %5979 = vmatprep.subr.bf16.mxu0 0
    %5980 = vmatpush1.bf16.msra.mxu0 0
    %5981 = vmatprep.subr.bf16.mxu0 0
    %5982 = vmatpush1.bf16.msra.mxu0 0
    %5983 = vmatprep.subr.bf16.mxu0 0
    %5984 = vmatpush1.bf16.msra.mxu0 0
    %5985 = vmatprep.subr.bf16.mxu0 0
    %5986 = vmatpush1.bf16.msra.mxu0 0
    %5987 = vmatprep.subr.bf16.mxu0 0
    %5988 = vmatpush1.bf16.msra.mxu0 0
    %5989 = vmatprep.subr.bf16.mxu0 0
    %5990 = vmatpush1.bf16.msra.mxu0 0
    %5991 = vmatprep.subr.bf16.mxu0 0
    %5992 = vmatpush1.bf16.msra.mxu0 0
    %5993 = vmatprep.subr.bf16.mxu0 0
    %5994 = vmatpush1.bf16.msra.mxu0 0
    %5995 = vmatprep.subr.bf16.mxu0 0
    %5996 = vmatpush1.bf16.msra.mxu0 0
    %5997 = vmatprep.subr.bf16.mxu0 0
    %5998 = vmatpush1.bf16.msra.mxu0 0
    %5999 = vmatprep.subr.bf16.mxu0 0
    %6000 = vmatpush1.bf16.msra.mxu0 0
    %6001 = vmatprep.subr.bf16.mxu0 0
    %6002 = vmatpush1.bf16.msra.mxu0 0
    %6003 = vmatprep.subr.bf16.mxu0 0
    %6004 = vmatpush1.bf16.msra.mxu0 0
    %6005 = vmatprep.mubr.bf16.mxu0 0
    %6006 = vmatmul.mubr.bf16.gmra.mrb[0].mxu0 %v5968
    %v6007 = vpop.f32.mrb[0].mxu0
    %v6008 = vadd.f32 %v5965, %v6007
    %v6009 = vpop.f32.mrb[0].mxu0
    %v6010 = vpop.f32.mrb[0].mxu0
    %v6011 = vpop.f32.mrb[0].mxu0
    %6012 = vdwg.mxu0
    %vm6013 = vcmask 17408
    %6014 = vst.msk [vmem:[#allocation2] sm:$0x3] %vm6013, %v6008
    // Predicated region
    $region18: #{tpu_custom_call.1} parent=1 // pred_check
      _
    $region19: #{tpu_custom_call.1} parent=1 // pred_check_branch
      %6016 = sbr.rel (0) target = $region21
    $region20: #{tpu_custom_call.1} parent=1 // pred_region
      %s6018 = ssub.s32 32, 32
      %6019 = vsyncadd [#allocation3], %s6018
      %s6021 = sshll.u32 [#allocation2], 4
      %s6022 = int_to_ptr.vmem [resolvable:$true] %s6021
      %6024 = dma.vmem_to_hbm [thread:$0]  %s6022, 32, %s4, [#allocation3]
    $region21: #{tpu_custom_call.1} parent=1 // pred_fallthru
      _
    // Predicated region
    $region22: #{tpu_custom_call.1} parent=1 // pred_check
      _
    $region23: #{tpu_custom_call.1} parent=1 // pred_check_branch
      %6026 = sbr.rel (0) target = $region25
    $region24: #{tpu_custom_call.1} parent=1 // pred_region
      %6027 = dma.done [#allocation3], 32
    $region25: #{tpu_custom_call.1} parent=1 // pred_fallthru
      _
    %6028 = vsyncpa [#allocation3], 1

</llo_original>
